<compile_context>
chip_gen: v7x
topology: tpu7x:2x2x1
jax: 0.10.0
libtpu: 0.0.40
codegen_flags: <defaults>
</compile_context>

<pallas_src>
import numpy as np

import jax
import jax.numpy as jnp
from jax import lax
from jax.experimental import pallas as pl
from jax.experimental.pallas import tpu as pltpu

_F32 = jnp.float32
_BF16 = jnp.bfloat16


# ----------------------------------------------------------------------------
# Host-side constant builders (run once at parameter/operand build time).
# ----------------------------------------------------------------------------
def _toeplitz_weights(w, W):
    """w: (3,3,Cin,Cout) numpy f32 (kh,kw,ci,co).

    Returns T of shape (3, W*Cin, W*Cout) such that, for a height-zero-padded,
    width-flattened activation slab P (H+2, W*Cin),
        out (H, W*Cout) = sum_dh  P[dh:dh+H, :] @ T[dh]
    equals a 3x3 convolution with padding=1 (width zero-padding is encoded by
    simply omitting the out-of-range taps from T).
    """
    _, _, cin, cout = w.shape
    t = np.zeros((3, W * cin, W * cout), np.float32)
    for dh in range(3):
        for dw in range(3):
            for wo in range(W):
                wi = wo + dw - 1
                if 0 <= wi < W:
                    t[dh, wi * cin:(wi + 1) * cin,
                      wo * cout:(wo + 1) * cout] += w[dh, dw]
    return t


def _toeplitz_weights_upfused(w, W_out):
    """Block-Toeplitz with nearest-x2 COLUMN doubling folded in.

    The input slab has W_in = W_out // 2 spatial columns (pre-upsample, each
    Cin channels wide); the output has W_out columns.  Several width taps of
    the (virtually) upsampled image map back to the same pre-upsample column,
    so kernel blocks accumulate (+=).
    """
    _, _, cin, cout = w.shape
    w_in = W_out // 2
    t = np.zeros((3, w_in * cin, W_out * cout), np.float32)
    for dh in range(3):
        for dw in range(3):
            for wo in range(W_out):
                wi2 = wo + dw - 1          # column in the upsampled image
                if 0 <= wi2 < W_out:
                    wi = wi2 // 2          # fold back to pre-upsample column
                    t[dh, wi * cin:(wi + 1) * cin,
                      wo * cout:(wo + 1) * cout] += w[dh, dw]
    return t


def _row_double_matrix(H):
    """(2H, H) 0/1 matrix: R @ A duplicates every row (nearest x2 along H)."""
    r = np.zeros((2 * H, H), np.float32)
    for h in range(H):
        r[2 * h, h] = 1.0
        r[2 * h + 1, h] = 1.0
    return r


# ----------------------------------------------------------------------------
# Fused decoder kernel (one image per grid step; everything stays in VMEM).
# ----------------------------------------------------------------------------
def _make_decoder_kernel(plan):
    n_layers = len(plan)

    def kernel(*refs):
        # ---- parse refs: x, per-layer (r)?, t, b ..., out, scratch pads ----
        x_ref = refs[0]
        idx = 1
        layer_refs = []
        for lp in plan:
            if lp["up"]:
                r_ref, t_ref, b_ref = refs[idx:idx + 3]
                idx += 3
            else:
                r_ref = None
                t_ref, b_ref = refs[idx:idx + 2]
                idx += 2
            layer_refs.append((r_ref, t_ref, b_ref))
        o_ref = refs[idx]
        pad_refs = refs[idx + 1: idx + 1 + n_layers]

        # lane-dense (H, W*Cin) activation slab
        a = x_ref[0].astype(_F32)

        for lp, (r_ref, t_ref, b_ref), p_ref in zip(
                plan, layer_refs, pad_refs):
            Hc = lp["Hc"]                       # conv output height
            n_out = lp["Wc"] * lp["Cout"]       # conv output lane width

            if lp["up"]:
                # nearest-x2 row doubling as a tiny 0/1 MXU matmul; column
                # doubling is already folded into the block-Toeplitz weights.
                a = jnp.dot(r_ref[...], a.astype(_BF16),
                            preferred_element_type=_F32)

            # height zero-padding in a VMEM scratch slab (width padding is
            # already folded into the block-Toeplitz weights)
            zrow = jnp.zeros((1, p_ref.shape[1]), _F32)
            p_ref[0:1, :] = zrow
            p_ref[Hc + 1:Hc + 2, :] = zrow
            p_ref[1:Hc + 1, :] = a

            # 3x3 conv == 3 lane-dense MXU matmuls (one per row tap)
            acc = jnp.zeros((Hc, n_out), _F32)
            for dh in range(3):
                acc = acc + jnp.dot(p_ref[dh:dh + Hc, :].astype(_BF16),
                                    t_ref[dh],
                                    preferred_element_type=_F32)
            acc = acc + b_ref[...]              # (1, W*Cout) sublane broadcast

            if lp["act"] == "relu":
                acc = jnp.maximum(acc, 0.0)
            elif lp["act"] == "sigmoid":
                acc = jax.nn.sigmoid(acc)
            a = acc

        o_ref[0] = a.astype(o_ref.dtype)        # (H_out, W_out*Cout) lane-dense

    return kernel


# ----------------------------------------------------------------------------
# Parameter construction (PyTorch Conv2d default init distribution).
# ----------------------------------------------------------------------------
def build_decoder_params(key, in_channels, base_channels, out_channels):
    ch_multipliers = [4, 2, 1]
    channels = [base_channels * m for m in ch_multipliers] + [out_channels]
    specs = [(in_channels, channels[0], "none", False)]           # decoder_blocks[0]
    for i in range(len(channels) - 1):                            # VQVAEUpBlocks
        specs.append((channels[i], channels[i + 1], "relu", True))
    specs.append((channels[-1], out_channels, "sigmoid", False))  # VQVAEOutBlock

    keys = jax.random.split(key, len(specs))
    params = []
    for k, (cin, cout, act, up) in zip(keys, specs):
        kw_, kb_ = jax.random.split(k)
        bound = 1.0 / float(np.sqrt(9 * cin))  # kaiming_uniform(a=sqrt(5)) bound
        w = jax.random.uniform(kw_, (3, 3, cin, cout), _F32, -bound, bound)
        b = jax.random.uniform(kb_, (cout,), _F32, -bound, bound)
        params.append({"w": w, "b": b, "act": act, "up": up})
    return params


# ----------------------------------------------------------------------------
# Decoder forward (NCHW in/out, like the PyTorch module).
# ----------------------------------------------------------------------------
def vqvae_decoder_forward(x_nchw, params):
    N, cin0, H0, W0 = x_nchw.shape

    # per-layer plan: conv output spatial size and the slab K (columns) it reads
    plan = []
    h, w = H0, W0
    for p in params:
        cin, cout = int(p["w"].shape[2]), int(p["w"].shape[3])
        if p["up"]:
            h, w = 2 * h, 2 * w
            k_cols = (w // 2) * cin        # column doubling folded into weights
        else:
            k_cols = w * cin
        plan.append(dict(Hc=h, Wc=w, Cin=cin, Cout=cout, K=k_cols,
                         act=p["act"], up=p["up"]))
    assert plan[0]["Cin"] == cin0

    # operands: lane-dense flattened input + per-layer constants
    x_flat = jnp.transpose(x_nchw, (0, 2, 3, 1)).reshape(N, H0, W0 * cin0)
    ops = [x_flat]
    in_specs = [pl.BlockSpec((1, H0, W0 * cin0), lambda n: (n, 0, 0))]
    for p, lp in zip(params, plan):
        w_np = np.asarray(p["w"], np.float32)
        if lp["up"]:
            r = _row_double_matrix(lp["Hc"] // 2)
            ops.append(jnp.asarray(r, _BF16))
            in_specs.append(pl.BlockSpec(r.shape, lambda n: (0, 0)))
            t = _toeplitz_weights_upfused(w_np, lp["Wc"])
        else:
            t = _toeplitz_weights(w_np, lp["Wc"])
        bias = np.tile(np.asarray(p["b"], np.float32), lp["Wc"])[None, :]
        ops += [jnp.asarray(t, _BF16), jnp.asarray(bias, _F32)]
        in_specs += [pl.BlockSpec(t.shape, lambda n: (0, 0, 0)),
                     pl.BlockSpec(bias.shape, lambda n: (0, 0))]

    Hout, Wout, Cout = plan[-1]["Hc"], plan[-1]["Wc"], plan[-1]["Cout"]
    out_flat = pl.pallas_call(
        _make_decoder_kernel(plan),
        out_shape=jax.ShapeDtypeStruct((N, Hout, Wout * Cout), _F32),
        grid_spec=pltpu.PrefetchScalarGridSpec(
            num_scalar_prefetch=0,
            grid=(N,),
            in_specs=in_specs,
            out_specs=pl.BlockSpec((1, Hout, Wout * Cout), lambda n: (n, 0, 0)),
            scratch_shapes=[
                pltpu.VMEM((lp["Hc"] + 2, lp["K"]), _F32) for lp in plan
            ],
        ),
        compiler_params=pltpu.CompilerParams(
            # batch blocks are independent -> both TensorCores on megacore parts
            dimension_semantics=("parallel",),
        ),
    )(*ops)

    out = out_flat.reshape(N, Hout, Wout, Cout)
    return jnp.transpose(out, (0, 3, 1, 2))   # NHWC -> NCHW


# ----------------------------------------------------------------------------
# Pure-XLA reference (for correctness check only).
# ----------------------------------------------------------------------------
def _reference_forward(x_nchw, params):
    x = jnp.transpose(x_nchw, (0, 2, 3, 1))
    for p in params:
        if p["up"]:
            x = jnp.repeat(jnp.repeat(x, 2, axis=1), 2, axis=2)
        x = lax.conv_general_dilated(
            x, p["w"], window_strides=(1, 1), padding=((1, 1), (1, 1)),
            dimension_numbers=("NHWC", "HWIO", "NHWC")) + p["b"]
        if p["act"] == "relu":
            x = jnp.maximum(x, 0.0)
        elif p["act"] == "sigmoid":
            x = jax.nn.sigmoid(x)
    return jnp.transpose(x, (0, 3, 1, 2))


if __name__ == "__main__":
    batch = 2
    in_channels = 8      # latent channels entering the decoder
    base_channels = 4    # -> channels [16, 8, 4]
    out_channels = 3
    spatial = 8          # latent spatial size; output spatial = 8 * 2^3 = 64

    root = jax.random.PRNGKey(0)
    k_x, k_p = jax.random.split(root)
    x = jax.random.normal(k_x, (batch, in_channels, spatial, spatial), _F32)
    params = build_decoder_params(k_p, in_channels, base_channels, out_channels)

    out = jax.block_until_ready(vqvae_decoder_forward(x, params))

    expected = (batch, out_channels, spatial * 8, spatial * 8)
    assert out.shape == expected, (out.shape, expected)
    assert out.dtype == jnp.float32
    assert bool(jnp.all(jnp.isfinite(out)))

    # correctness vs pure-XLA reference (bf16 MXU operands -> loose tolerance)
    ref = jax.block_until_ready(_reference_forward(x, params))
    max_err = float(jnp.max(jnp.abs(out - ref)))
    assert max_err < 5e-2, f"max abs error vs reference: {max_err}"

    print("KERNEL_OK")
</pallas_src>

<mosaic_0001>
module attributes {stable_mosaic.version = 11 : i64} {
  func.func @kernel(%arg0: i32, %arg1: memref<1x8x64xf32, #tpu.memory_space<vmem>>, %arg2: memref<3x64x128xbf16, #tpu.memory_space<vmem>>, %arg3: memref<1x128xf32, #tpu.memory_space<vmem>>, %arg4: memref<16x8xbf16, #tpu.memory_space<vmem>>, %arg5: memref<3x128x128xbf16, #tpu.memory_space<vmem>>, %arg6: memref<1x128xf32, #tpu.memory_space<vmem>>, %arg7: memref<32x16xbf16, #tpu.memory_space<vmem>>, %arg8: memref<3x128x128xbf16, #tpu.memory_space<vmem>>, %arg9: memref<1x128xf32, #tpu.memory_space<vmem>>, %arg10: memref<64x32xbf16, #tpu.memory_space<vmem>>, %arg11: memref<3x128x192xbf16, #tpu.memory_space<vmem>>, %arg12: memref<1x192xf32, #tpu.memory_space<vmem>>, %arg13: memref<3x192x192xbf16, #tpu.memory_space<vmem>>, %arg14: memref<1x192xf32, #tpu.memory_space<vmem>>, %arg15: memref<1x64x192xf32, #tpu.memory_space<vmem>>, %arg16: memref<10x64xf32, #tpu.memory_space<vmem>>, %arg17: memref<18x128xf32, #tpu.memory_space<vmem>>, %arg18: memref<34x128xf32, #tpu.memory_space<vmem>>, %arg19: memref<66x128xf32, #tpu.memory_space<vmem>>, %arg20: memref<66x192xf32, #tpu.memory_space<vmem>>) attributes {dimension_semantics = [#tpu.dimension_semantics<parallel>], iteration_bounds = array<i64: 2>, scalar_prefetch = 0 : i64, scratch_operands = 5 : i64, tpu.core_type = #tpu.core_type<tc>, window_params = [{transform_indices = @transform_0, window_bounds = array<i64: 1, 8, 64>}, {pipeline_mode = #tpu.pipeline_mode<synchronous>, transform_indices = @transform_1, window_bounds = array<i64: 3, 64, 128>}, {pipeline_mode = #tpu.pipeline_mode<synchronous>, transform_indices = @transform_2, window_bounds = array<i64: 1, 128>}, {pipeline_mode = #tpu.pipeline_mode<synchronous>, transform_indices = @transform_3, window_bounds = array<i64: 16, 8>}, {pipeline_mode = #tpu.pipeline_mode<synchronous>, transform_indices = @transform_4, window_bounds = array<i64: 3, 128, 128>}, {pipeline_mode = #tpu.pipeline_mode<synchronous>, transform_indices = @transform_5, window_bounds = array<i64: 1, 128>}, {pipeline_mode = #tpu.pipeline_mode<synchronous>, transform_indices = @transform_6, window_bounds = array<i64: 32, 16>}, {pipeline_mode = #tpu.pipeline_mode<synchronous>, transform_indices = @transform_7, window_bounds = array<i64: 3, 128, 128>}, {pipeline_mode = #tpu.pipeline_mode<synchronous>, transform_indices = @transform_8, window_bounds = array<i64: 1, 128>}, {pipeline_mode = #tpu.pipeline_mode<synchronous>, transform_indices = @transform_9, window_bounds = array<i64: 64, 32>}, {pipeline_mode = #tpu.pipeline_mode<synchronous>, transform_indices = @transform_10, window_bounds = array<i64: 3, 128, 192>}, {pipeline_mode = #tpu.pipeline_mode<synchronous>, transform_indices = @transform_11, window_bounds = array<i64: 1, 192>}, {pipeline_mode = #tpu.pipeline_mode<synchronous>, transform_indices = @transform_12, window_bounds = array<i64: 3, 192, 192>}, {pipeline_mode = #tpu.pipeline_mode<synchronous>, transform_indices = @transform_13, window_bounds = array<i64: 1, 192>}, {transform_indices = @transform_14, window_bounds = array<i64: 1, 64, 192>}]} {
    %c0 = arith.constant 0 : index
    %c0_0 = arith.constant 0 : index
    %c0_1 = arith.constant 0 : index
    %0 = vector.load %arg1[%c0, %c0_0, %c0_1] : memref<1x8x64xf32, #tpu.memory_space<vmem>>, vector<1x8x64xf32>
    %1 = vector.shape_cast %0 : vector<1x8x64xf32> to vector<8x64xf32>
    %cst = arith.constant 0.000000e+00 : f32
    %2 = vector.broadcast %cst : f32 to vector<1x64xf32>
    %c0_2 = arith.constant 0 : index
    %c0_3 = arith.constant 0 : index
    %3 = vector.load %arg16[%c0_2, %c0_3] : memref<10x64xf32, #tpu.memory_space<vmem>>, vector<1x64xf32>
    tpu.vector_store %arg16[%c0_2, %c0_3], %2 {strides = array<i32>} : memref<10x64xf32, #tpu.memory_space<vmem>>, vector<1x64xf32>,
    %c9 = arith.constant 9 : index
    %c0_4 = arith.constant 0 : index
    %4 = vector.load %arg16[%c9, %c0_4] : memref<10x64xf32, #tpu.memory_space<vmem>>, vector<1x64xf32>
    tpu.vector_store %arg16[%c9, %c0_4], %2 {strides = array<i32>} : memref<10x64xf32, #tpu.memory_space<vmem>>, vector<1x64xf32>,
    %c1 = arith.constant 1 : index
    %c0_5 = arith.constant 0 : index
    %5 = vector.load %arg16[%c1, %c0_5] : memref<10x64xf32, #tpu.memory_space<vmem>>, vector<8x64xf32>
    tpu.vector_store %arg16[%c1, %c0_5], %1 {strides = array<i32>} : memref<10x64xf32, #tpu.memory_space<vmem>>, vector<8x64xf32>,
    %cst_6 = arith.constant 0.000000e+00 : f32
    %6 = vector.broadcast %cst_6 : f32 to vector<8x128xf32>
    %c0_7 = arith.constant 0 : index
    %c0_8 = arith.constant 0 : index
    %7 = vector.load %arg16[%c0_7, %c0_8] : memref<10x64xf32, #tpu.memory_space<vmem>>, vector<8x64xf32>
    %8 = arith.truncf %7 : vector<8x64xf32> to vector<8x64xbf16>
    %c0_9 = arith.constant 0 : index
    %c0_10 = arith.constant 0 : index
    %c0_11 = arith.constant 0 : index
    %9 = vector.load %arg2[%c0_9, %c0_10, %c0_11] : memref<3x64x128xbf16, #tpu.memory_space<vmem>>, vector<1x64x128xbf16>
    %10 = vector.shape_cast %9 : vector<1x64x128xbf16> to vector<64x128xbf16>
    %cst_12 = arith.constant dense<0.000000e+00> : vector<8x128xf32>
    %11 = tpu.matmul %8, %10, %cst_12 {dimension_numbers = #tpu.dot_dimension_numbers<[1], [0], [0], [1], [0, 0, 1, 1], [], []>} : vector<8x64xbf16>, vector<64x128xbf16>, vector<8x128xf32> -> vector<8x128xf32>
    %12 = arith.addf %6, %11 : vector<8x128xf32>
    %c1_13 = arith.constant 1 : index
    %c0_14 = arith.constant 0 : index
    %13 = vector.load %arg16[%c1_13, %c0_14] : memref<10x64xf32, #tpu.memory_space<vmem>>, vector<8x64xf32>
    %14 = arith.truncf %13 : vector<8x64xf32> to vector<8x64xbf16>
    %c1_15 = arith.constant 1 : index
    %c0_16 = arith.constant 0 : index
    %c0_17 = arith.constant 0 : index
    %15 = vector.load %arg2[%c1_15, %c0_16, %c0_17] : memref<3x64x128xbf16, #tpu.memory_space<vmem>>, vector<1x64x128xbf16>
    %16 = vector.shape_cast %15 : vector<1x64x128xbf16> to vector<64x128xbf16>
    %cst_18 = arith.constant dense<0.000000e+00> : vector<8x128xf32>
    %17 = tpu.matmul %14, %16, %cst_18 {dimension_numbers = #tpu.dot_dimension_numbers<[1], [0], [0], [1], [0, 0, 1, 1], [], []>} : vector<8x64xbf16>, vector<64x128xbf16>, vector<8x128xf32> -> vector<8x128xf32>
    %18 = arith.addf %12, %17 : vector<8x128xf32>
    %c2 = arith.constant 2 : index
    %c0_19 = arith.constant 0 : index
    %19 = vector.load %arg16[%c2, %c0_19] : memref<10x64xf32, #tpu.memory_space<vmem>>, vector<8x64xf32>
    %20 = arith.truncf %19 : vector<8x64xf32> to vector<8x64xbf16>
    %c2_20 = arith.constant 2 : index
    %c0_21 = arith.constant 0 : index
    %c0_22 = arith.constant 0 : index
    %21 = vector.load %arg2[%c2_20, %c0_21, %c0_22] : memref<3x64x128xbf16, #tpu.memory_space<vmem>>, vector<1x64x128xbf16>
    %22 = vector.shape_cast %21 : vector<1x64x128xbf16> to vector<64x128xbf16>
    %cst_23 = arith.constant dense<0.000000e+00> : vector<8x128xf32>
    %23 = tpu.matmul %20, %22, %cst_23 {dimension_numbers = #tpu.dot_dimension_numbers<[1], [0], [0], [1], [0, 0, 1, 1], [], []>} : vector<8x64xbf16>, vector<64x128xbf16>, vector<8x128xf32> -> vector<8x128xf32>
    %24 = arith.addf %18, %23 : vector<8x128xf32>
    %c0_24 = arith.constant 0 : index
    %c0_25 = arith.constant 0 : index
    %25 = vector.load %arg3[%c0_24, %c0_25] : memref<1x128xf32, #tpu.memory_space<vmem>>, vector<1x128xf32>
    %26 = vector.broadcast %25 : vector<1x128xf32> to vector<8x128xf32>
    %27 = arith.addf %24, %26 : vector<8x128xf32>
    %c0_26 = arith.constant 0 : index
    %c0_27 = arith.constant 0 : index
    %28 = vector.load %arg4[%c0_26, %c0_27] : memref<16x8xbf16, #tpu.memory_space<vmem>>, vector<16x8xbf16>
    %29 = arith.truncf %27 : vector<8x128xf32> to vector<8x128xbf16>
    %cst_28 = arith.constant dense<0.000000e+00> : vector<16x128xf32>
    %30 = tpu.matmul %28, %29, %cst_28 {dimension_numbers = #tpu.dot_dimension_numbers<[1], [0], [0], [1], [0, 0, 1, 1], [], []>} : vector<16x8xbf16>, vector<8x128xbf16>, vector<16x128xf32> -> vector<16x128xf32>
    %cst_29 = arith.constant 0.000000e+00 : f32
    %31 = vector.broadcast %cst_29 : f32 to vector<1x128xf32>
    %c0_30 = arith.constant 0 : index
    %c0_31 = arith.constant 0 : index
    %32 = vector.load %arg17[%c0_30, %c0_31] : memref<18x128xf32, #tpu.memory_space<vmem>>, vector<1x128xf32>
    tpu.vector_store %arg17[%c0_30, %c0_31], %31 {strides = array<i32>} : memref<18x128xf32, #tpu.memory_space<vmem>>, vector<1x128xf32>,
    %c17 = arith.constant 17 : index
    %c0_32 = arith.constant 0 : index
    %33 = vector.load %arg17[%c17, %c0_32] : memref<18x128xf32, #tpu.memory_space<vmem>>, vector<1x128xf32>
    tpu.vector_store %arg17[%c17, %c0_32], %31 {strides = array<i32>} : memref<18x128xf32, #tpu.memory_space<vmem>>, vector<1x128xf32>,
    %c1_33 = arith.constant 1 : index
    %c0_34 = arith.constant 0 : index
    %34 = vector.load %arg17[%c1_33, %c0_34] : memref<18x128xf32, #tpu.memory_space<vmem>>, vector<16x128xf32>
    tpu.vector_store %arg17[%c1_33, %c0_34], %30 {strides = array<i32>} : memref<18x128xf32, #tpu.memory_space<vmem>>, vector<16x128xf32>,
    %cst_35 = arith.constant 0.000000e+00 : f32
    %35 = vector.broadcast %cst_35 : f32 to vector<16x128xf32>
    %c0_36 = arith.constant 0 : index
    %c0_37 = arith.constant 0 : index
    %36 = vector.load %arg17[%c0_36, %c0_37] : memref<18x128xf32, #tpu.memory_space<vmem>>, vector<16x128xf32>
    %37 = arith.truncf %36 : vector<16x128xf32> to vector<16x128xbf16>
    %c0_38 = arith.constant 0 : index
    %c0_39 = arith.constant 0 : index
    %c0_40 = arith.constant 0 : index
    %38 = vector.load %arg5[%c0_38, %c0_39, %c0_40] : memref<3x128x128xbf16, #tpu.memory_space<vmem>>, vector<1x128x128xbf16>
    %39 = vector.shape_cast %38 : vector<1x128x128xbf16> to vector<128x128xbf16>
    %cst_41 = arith.constant dense<0.000000e+00> : vector<16x128xf32>
    %40 = tpu.matmul %37, %39, %cst_41 {dimension_numbers = #tpu.dot_dimension_numbers<[1], [0], [0], [1], [0, 0, 1, 1], [], []>} : vector<16x128xbf16>, vector<128x128xbf16>, vector<16x128xf32> -> vector<16x128xf32>
    %41 = arith.addf %35, %40 : vector<16x128xf32>
    %c1_42 = arith.constant 1 : index
    %c0_43 = arith.constant 0 : index
    %42 = vector.load %arg17[%c1_42, %c0_43] : memref<18x128xf32, #tpu.memory_space<vmem>>, vector<16x128xf32>
    %43 = arith.truncf %42 : vector<16x128xf32> to vector<16x128xbf16>
    %c1_44 = arith.constant 1 : index
    %c0_45 = arith.constant 0 : index
    %c0_46 = arith.constant 0 : index
    %44 = vector.load %arg5[%c1_44, %c0_45, %c0_46] : memref<3x128x128xbf16, #tpu.memory_space<vmem>>, vector<1x128x128xbf16>
    %45 = vector.shape_cast %44 : vector<1x128x128xbf16> to vector<128x128xbf16>
    %cst_47 = arith.constant dense<0.000000e+00> : vector<16x128xf32>
    %46 = tpu.matmul %43, %45, %cst_47 {dimension_numbers = #tpu.dot_dimension_numbers<[1], [0], [0], [1], [0, 0, 1, 1], [], []>} : vector<16x128xbf16>, vector<128x128xbf16>, vector<16x128xf32> -> vector<16x128xf32>
    %47 = arith.addf %41, %46 : vector<16x128xf32>
    %c2_48 = arith.constant 2 : index
    %c0_49 = arith.constant 0 : index
    %48 = vector.load %arg17[%c2_48, %c0_49] : memref<18x128xf32, #tpu.memory_space<vmem>>, vector<16x128xf32>
    %49 = arith.truncf %48 : vector<16x128xf32> to vector<16x128xbf16>
    %c2_50 = arith.constant 2 : index
    %c0_51 = arith.constant 0 : index
    %c0_52 = arith.constant 0 : index
    %50 = vector.load %arg5[%c2_50, %c0_51, %c0_52] : memref<3x128x128xbf16, #tpu.memory_space<vmem>>, vector<1x128x128xbf16>
    %51 = vector.shape_cast %50 : vector<1x128x128xbf16> to vector<128x128xbf16>
    %cst_53 = arith.constant dense<0.000000e+00> : vector<16x128xf32>
    %52 = tpu.matmul %49, %51, %cst_53 {dimension_numbers = #tpu.dot_dimension_numbers<[1], [0], [0], [1], [0, 0, 1, 1], [], []>} : vector<16x128xbf16>, vector<128x128xbf16>, vector<16x128xf32> -> vector<16x128xf32>
    %53 = arith.addf %47, %52 : vector<16x128xf32>
    %c0_54 = arith.constant 0 : index
    %c0_55 = arith.constant 0 : index
    %54 = vector.load %arg6[%c0_54, %c0_55] : memref<1x128xf32, #tpu.memory_space<vmem>>, vector<1x128xf32>
    %55 = vector.broadcast %54 : vector<1x128xf32> to vector<16x128xf32>
    %56 = arith.addf %53, %55 : vector<16x128xf32>
    %cst_56 = arith.constant 0.000000e+00 : f32
    %57 = vector.broadcast %cst_56 : f32 to vector<16x128xf32>
    %58 = arith.maximumf %56, %57 : vector<16x128xf32>
    %c0_57 = arith.constant 0 : index
    %c0_58 = arith.constant 0 : index
    %59 = vector.load %arg7[%c0_57, %c0_58] : memref<32x16xbf16, #tpu.memory_space<vmem>>, vector<32x16xbf16>
    %60 = arith.truncf %58 : vector<16x128xf32> to vector<16x128xbf16>
    %cst_59 = arith.constant dense<0.000000e+00> : vector<32x128xf32>
    %61 = tpu.matmul %59, %60, %cst_59 {dimension_numbers = #tpu.dot_dimension_numbers<[1], [0], [0], [1], [0, 0, 1, 1], [], []>} : vector<32x16xbf16>, vector<16x128xbf16>, vector<32x128xf32> -> vector<32x128xf32>
    %cst_60 = arith.constant 0.000000e+00 : f32
    %62 = vector.broadcast %cst_60 : f32 to vector<1x128xf32>
    %c0_61 = arith.constant 0 : index
    %c0_62 = arith.constant 0 : index
    %63 = vector.load %arg18[%c0_61, %c0_62] : memref<34x128xf32, #tpu.memory_space<vmem>>, vector<1x128xf32>
    tpu.vector_store %arg18[%c0_61, %c0_62], %62 {strides = array<i32>} : memref<34x128xf32, #tpu.memory_space<vmem>>, vector<1x128xf32>,
    %c33 = arith.constant 33 : index
    %c0_63 = arith.constant 0 : index
    %64 = vector.load %arg18[%c33, %c0_63] : memref<34x128xf32, #tpu.memory_space<vmem>>, vector<1x128xf32>
    tpu.vector_store %arg18[%c33, %c0_63], %62 {strides = array<i32>} : memref<34x128xf32, #tpu.memory_space<vmem>>, vector<1x128xf32>,
    %c1_64 = arith.constant 1 : index
    %c0_65 = arith.constant 0 : index
    %65 = vector.load %arg18[%c1_64, %c0_65] : memref<34x128xf32, #tpu.memory_space<vmem>>, vector<32x128xf32>
    tpu.vector_store %arg18[%c1_64, %c0_65], %61 {strides = array<i32>} : memref<34x128xf32, #tpu.memory_space<vmem>>, vector<32x128xf32>,
    %cst_66 = arith.constant 0.000000e+00 : f32
    %66 = vector.broadcast %cst_66 : f32 to vector<32x128xf32>
    %c0_67 = arith.constant 0 : index
    %c0_68 = arith.constant 0 : index
    %67 = vector.load %arg18[%c0_67, %c0_68] : memref<34x128xf32, #tpu.memory_space<vmem>>, vector<32x128xf32>
    %68 = arith.truncf %67 : vector<32x128xf32> to vector<32x128xbf16>
    %c0_69 = arith.constant 0 : index
    %c0_70 = arith.constant 0 : index
    %c0_71 = arith.constant 0 : index
    %69 = vector.load %arg8[%c0_69, %c0_70, %c0_71] : memref<3x128x128xbf16, #tpu.memory_space<vmem>>, vector<1x128x128xbf16>
    %70 = vector.shape_cast %69 : vector<1x128x128xbf16> to vector<128x128xbf16>
    %cst_72 = arith.constant dense<0.000000e+00> : vector<32x128xf32>
    %71 = tpu.matmul %68, %70, %cst_72 {dimension_numbers = #tpu.dot_dimension_numbers<[1], [0], [0], [1], [0, 0, 1, 1], [], []>} : vector<32x128xbf16>, vector<128x128xbf16>, vector<32x128xf32> -> vector<32x128xf32>
    %72 = arith.addf %66, %71 : vector<32x128xf32>
    %c1_73 = arith.constant 1 : index
    %c0_74 = arith.constant 0 : index
    %73 = vector.load %arg18[%c1_73, %c0_74] : memref<34x128xf32, #tpu.memory_space<vmem>>, vector<32x128xf32>
    %74 = arith.truncf %73 : vector<32x128xf32> to vector<32x128xbf16>
    %c1_75 = arith.constant 1 : index
    %c0_76 = arith.constant 0 : index
    %c0_77 = arith.constant 0 : index
    %75 = vector.load %arg8[%c1_75, %c0_76, %c0_77] : memref<3x128x128xbf16, #tpu.memory_space<vmem>>, vector<1x128x128xbf16>
    %76 = vector.shape_cast %75 : vector<1x128x128xbf16> to vector<128x128xbf16>
    %cst_78 = arith.constant dense<0.000000e+00> : vector<32x128xf32>
    %77 = tpu.matmul %74, %76, %cst_78 {dimension_numbers = #tpu.dot_dimension_numbers<[1], [0], [0], [1], [0, 0, 1, 1], [], []>} : vector<32x128xbf16>, vector<128x128xbf16>, vector<32x128xf32> -> vector<32x128xf32>
    %78 = arith.addf %72, %77 : vector<32x128xf32>
    %c2_79 = arith.constant 2 : index
    %c0_80 = arith.constant 0 : index
    %79 = vector.load %arg18[%c2_79, %c0_80] : memref<34x128xf32, #tpu.memory_space<vmem>>, vector<32x128xf32>
    %80 = arith.truncf %79 : vector<32x128xf32> to vector<32x128xbf16>
    %c2_81 = arith.constant 2 : index
    %c0_82 = arith.constant 0 : index
    %c0_83 = arith.constant 0 : index
    %81 = vector.load %arg8[%c2_81, %c0_82, %c0_83] : memref<3x128x128xbf16, #tpu.memory_space<vmem>>, vector<1x128x128xbf16>
    %82 = vector.shape_cast %81 : vector<1x128x128xbf16> to vector<128x128xbf16>
    %cst_84 = arith.constant dense<0.000000e+00> : vector<32x128xf32>
    %83 = tpu.matmul %80, %82, %cst_84 {dimension_numbers = #tpu.dot_dimension_numbers<[1], [0], [0], [1], [0, 0, 1, 1], [], []>} : vector<32x128xbf16>, vector<128x128xbf16>, vector<32x128xf32> -> vector<32x128xf32>
    %84 = arith.addf %78, %83 : vector<32x128xf32>
    %c0_85 = arith.constant 0 : index
    %c0_86 = arith.constant 0 : index
    %85 = vector.load %arg9[%c0_85, %c0_86] : memref<1x128xf32, #tpu.memory_space<vmem>>, vector<1x128xf32>
    %86 = vector.broadcast %85 : vector<1x128xf32> to vector<32x128xf32>
    %87 = arith.addf %84, %86 : vector<32x128xf32>
    %cst_87 = arith.constant 0.000000e+00 : f32
    %88 = vector.broadcast %cst_87 : f32 to vector<32x128xf32>
    %89 = arith.maximumf %87, %88 : vector<32x128xf32>
    %c0_88 = arith.constant 0 : index
    %c0_89 = arith.constant 0 : index
    %90 = vector.load %arg10[%c0_88, %c0_89] : memref<64x32xbf16, #tpu.memory_space<vmem>>, vector<64x32xbf16>
    %91 = arith.truncf %89 : vector<32x128xf32> to vector<32x128xbf16>
    %cst_90 = arith.constant dense<0.000000e+00> : vector<64x128xf32>
    %92 = tpu.matmul %90, %91, %cst_90 {dimension_numbers = #tpu.dot_dimension_numbers<[1], [0], [0], [1], [0, 0, 1, 1], [], []>} : vector<64x32xbf16>, vector<32x128xbf16>, vector<64x128xf32> -> vector<64x128xf32>
    %cst_91 = arith.constant 0.000000e+00 : f32
    %93 = vector.broadcast %cst_91 : f32 to vector<1x128xf32>
    %c0_92 = arith.constant 0 : index
    %c0_93 = arith.constant 0 : index
    %94 = vector.load %arg19[%c0_92, %c0_93] : memref<66x128xf32, #tpu.memory_space<vmem>>, vector<1x128xf32>
    tpu.vector_store %arg19[%c0_92, %c0_93], %93 {strides = array<i32>} : memref<66x128xf32, #tpu.memory_space<vmem>>, vector<1x128xf32>,
    %c65 = arith.constant 65 : index
    %c0_94 = arith.constant 0 : index
    %95 = vector.load %arg19[%c65, %c0_94] : memref<66x128xf32, #tpu.memory_space<vmem>>, vector<1x128xf32>
    tpu.vector_store %arg19[%c65, %c0_94], %93 {strides = array<i32>} : memref<66x128xf32, #tpu.memory_space<vmem>>, vector<1x128xf32>,
    %c1_95 = arith.constant 1 : index
    %c0_96 = arith.constant 0 : index
    %96 = vector.load %arg19[%c1_95, %c0_96] : memref<66x128xf32, #tpu.memory_space<vmem>>, vector<64x128xf32>
    tpu.vector_store %arg19[%c1_95, %c0_96], %92 {strides = array<i32>} : memref<66x128xf32, #tpu.memory_space<vmem>>, vector<64x128xf32>,
    %cst_97 = arith.constant 0.000000e+00 : f32
    %97 = vector.broadcast %cst_97 : f32 to vector<64x192xf32>
    %c0_98 = arith.constant 0 : index
    %c0_99 = arith.constant 0 : index
    %98 = vector.load %arg19[%c0_98, %c0_99] : memref<66x128xf32, #tpu.memory_space<vmem>>, vector<64x128xf32>
    %99 = arith.truncf %98 : vector<64x128xf32> to vector<64x128xbf16>
    %c0_100 = arith.constant 0 : index
    %c0_101 = arith.constant 0 : index
    %c0_102 = arith.constant 0 : index
    %100 = vector.load %arg11[%c0_100, %c0_101, %c0_102] : memref<3x128x192xbf16, #tpu.memory_space<vmem>>, vector<1x128x192xbf16>
    %101 = vector.shape_cast %100 : vector<1x128x192xbf16> to vector<128x192xbf16>
    %cst_103 = arith.constant dense<0.000000e+00> : vector<64x192xf32>
    %102 = tpu.matmul %99, %101, %cst_103 {dimension_numbers = #tpu.dot_dimension_numbers<[1], [0], [0], [1], [0, 0, 1, 1], [], []>} : vector<64x128xbf16>, vector<128x192xbf16>, vector<64x192xf32> -> vector<64x192xf32>
    %103 = arith.addf %97, %102 : vector<64x192xf32>
    %c1_104 = arith.constant 1 : index
    %c0_105 = arith.constant 0 : index
    %104 = vector.load %arg19[%c1_104, %c0_105] : memref<66x128xf32, #tpu.memory_space<vmem>>, vector<64x128xf32>
    %105 = arith.truncf %104 : vector<64x128xf32> to vector<64x128xbf16>
    %c1_106 = arith.constant 1 : index
    %c0_107 = arith.constant 0 : index
    %c0_108 = arith.constant 0 : index
    %106 = vector.load %arg11[%c1_106, %c0_107, %c0_108] : memref<3x128x192xbf16, #tpu.memory_space<vmem>>, vector<1x128x192xbf16>
    %107 = vector.shape_cast %106 : vector<1x128x192xbf16> to vector<128x192xbf16>
    %cst_109 = arith.constant dense<0.000000e+00> : vector<64x192xf32>
    %108 = tpu.matmul %105, %107, %cst_109 {dimension_numbers = #tpu.dot_dimension_numbers<[1], [0], [0], [1], [0, 0, 1, 1], [], []>} : vector<64x128xbf16>, vector<128x192xbf16>, vector<64x192xf32> -> vector<64x192xf32>
    %109 = arith.addf %103, %108 : vector<64x192xf32>
    %c2_110 = arith.constant 2 : index
    %c0_111 = arith.constant 0 : index
    %110 = vector.load %arg19[%c2_110, %c0_111] : memref<66x128xf32, #tpu.memory_space<vmem>>, vector<64x128xf32>
    %111 = arith.truncf %110 : vector<64x128xf32> to vector<64x128xbf16>
    %c2_112 = arith.constant 2 : index
    %c0_113 = arith.constant 0 : index
    %c0_114 = arith.constant 0 : index
    %112 = vector.load %arg11[%c2_112, %c0_113, %c0_114] : memref<3x128x192xbf16, #tpu.memory_space<vmem>>, vector<1x128x192xbf16>
    %113 = vector.shape_cast %112 : vector<1x128x192xbf16> to vector<128x192xbf16>
    %cst_115 = arith.constant dense<0.000000e+00> : vector<64x192xf32>
    %114 = tpu.matmul %111, %113, %cst_115 {dimension_numbers = #tpu.dot_dimension_numbers<[1], [0], [0], [1], [0, 0, 1, 1], [], []>} : vector<64x128xbf16>, vector<128x192xbf16>, vector<64x192xf32> -> vector<64x192xf32>
    %115 = arith.addf %109, %114 : vector<64x192xf32>
    %c0_116 = arith.constant 0 : index
    %c0_117 = arith.constant 0 : index
    %116 = vector.load %arg12[%c0_116, %c0_117] : memref<1x192xf32, #tpu.memory_space<vmem>>, vector<1x192xf32>
    %117 = vector.broadcast %116 : vector<1x192xf32> to vector<64x192xf32>
    %118 = arith.addf %115, %117 : vector<64x192xf32>
    %cst_118 = arith.constant 0.000000e+00 : f32
    %119 = vector.broadcast %cst_118 : f32 to vector<64x192xf32>
    %120 = arith.maximumf %118, %119 : vector<64x192xf32>
    %cst_119 = arith.constant 0.000000e+00 : f32
    %121 = vector.broadcast %cst_119 : f32 to vector<1x192xf32>
    %c0_120 = arith.constant 0 : index
    %c0_121 = arith.constant 0 : index
    %122 = vector.load %arg20[%c0_120, %c0_121] : memref<66x192xf32, #tpu.memory_space<vmem>>, vector<1x192xf32>
    tpu.vector_store %arg20[%c0_120, %c0_121], %121 {strides = array<i32>} : memref<66x192xf32, #tpu.memory_space<vmem>>, vector<1x192xf32>,
    %c65_122 = arith.constant 65 : index
    %c0_123 = arith.constant 0 : index
    %123 = vector.load %arg20[%c65_122, %c0_123] : memref<66x192xf32, #tpu.memory_space<vmem>>, vector<1x192xf32>
    tpu.vector_store %arg20[%c65_122, %c0_123], %121 {strides = array<i32>} : memref<66x192xf32, #tpu.memory_space<vmem>>, vector<1x192xf32>,
    %c1_124 = arith.constant 1 : index
    %c0_125 = arith.constant 0 : index
    %124 = vector.load %arg20[%c1_124, %c0_125] : memref<66x192xf32, #tpu.memory_space<vmem>>, vector<64x192xf32>
    tpu.vector_store %arg20[%c1_124, %c0_125], %120 {strides = array<i32>} : memref<66x192xf32, #tpu.memory_space<vmem>>, vector<64x192xf32>,
    %cst_126 = arith.constant 0.000000e+00 : f32
    %125 = vector.broadcast %cst_126 : f32 to vector<64x192xf32>
    %c0_127 = arith.constant 0 : index
    %c0_128 = arith.constant 0 : index
    %126 = vector.load %arg20[%c0_127, %c0_128] : memref<66x192xf32, #tpu.memory_space<vmem>>, vector<64x192xf32>
    %127 = arith.truncf %126 : vector<64x192xf32> to vector<64x192xbf16>
    %c0_129 = arith.constant 0 : index
    %c0_130 = arith.constant 0 : index
    %c0_131 = arith.constant 0 : index
    %128 = vector.load %arg13[%c0_129, %c0_130, %c0_131] : memref<3x192x192xbf16, #tpu.memory_space<vmem>>, vector<1x192x192xbf16>
    %129 = vector.shape_cast %128 : vector<1x192x192xbf16> to vector<192x192xbf16>
    %cst_132 = arith.constant dense<0.000000e+00> : vector<64x192xf32>
    %130 = tpu.matmul %127, %129, %cst_132 {dimension_numbers = #tpu.dot_dimension_numbers<[1], [0], [0], [1], [0, 0, 1, 1], [], []>} : vector<64x192xbf16>, vector<192x192xbf16>, vector<64x192xf32> -> vector<64x192xf32>
    %131 = arith.addf %125, %130 : vector<64x192xf32>
    %c1_133 = arith.constant 1 : index
    %c0_134 = arith.constant 0 : index
    %132 = vector.load %arg20[%c1_133, %c0_134] : memref<66x192xf32, #tpu.memory_space<vmem>>, vector<64x192xf32>
    %133 = arith.truncf %132 : vector<64x192xf32> to vector<64x192xbf16>
    %c1_135 = arith.constant 1 : index
    %c0_136 = arith.constant 0 : index
    %c0_137 = arith.constant 0 : index
    %134 = vector.load %arg13[%c1_135, %c0_136, %c0_137] : memref<3x192x192xbf16, #tpu.memory_space<vmem>>, vector<1x192x192xbf16>
    %135 = vector.shape_cast %134 : vector<1x192x192xbf16> to vector<192x192xbf16>
    %cst_138 = arith.constant dense<0.000000e+00> : vector<64x192xf32>
    %136 = tpu.matmul %133, %135, %cst_138 {dimension_numbers = #tpu.dot_dimension_numbers<[1], [0], [0], [1], [0, 0, 1, 1], [], []>} : vector<64x192xbf16>, vector<192x192xbf16>, vector<64x192xf32> -> vector<64x192xf32>
    %137 = arith.addf %131, %136 : vector<64x192xf32>
    %c2_139 = arith.constant 2 : index
    %c0_140 = arith.constant 0 : index
    %138 = vector.load %arg20[%c2_139, %c0_140] : memref<66x192xf32, #tpu.memory_space<vmem>>, vector<64x192xf32>
    %139 = arith.truncf %138 : vector<64x192xf32> to vector<64x192xbf16>
    %c2_141 = arith.constant 2 : index
    %c0_142 = arith.constant 0 : index
    %c0_143 = arith.constant 0 : index
    %140 = vector.load %arg13[%c2_141, %c0_142, %c0_143] : memref<3x192x192xbf16, #tpu.memory_space<vmem>>, vector<1x192x192xbf16>
    %141 = vector.shape_cast %140 : vector<1x192x192xbf16> to vector<192x192xbf16>
    %cst_144 = arith.constant dense<0.000000e+00> : vector<64x192xf32>
    %142 = tpu.matmul %139, %141, %cst_144 {dimension_numbers = #tpu.dot_dimension_numbers<[1], [0], [0], [1], [0, 0, 1, 1], [], []>} : vector<64x192xbf16>, vector<192x192xbf16>, vector<64x192xf32> -> vector<64x192xf32>
    %143 = arith.addf %137, %142 : vector<64x192xf32>
    %c0_145 = arith.constant 0 : index
    %c0_146 = arith.constant 0 : index
    %144 = vector.load %arg14[%c0_145, %c0_146] : memref<1x192xf32, #tpu.memory_space<vmem>>, vector<1x192xf32>
    %145 = vector.broadcast %144 : vector<1x192xf32> to vector<64x192xf32>
    %146 = arith.addf %143, %145 : vector<64x192xf32>
    %147 = arith.negf %146 : vector<64x192xf32>
    %148 = math.exp %147 : vector<64x192xf32>
    %cst_147 = arith.constant 1.000000e+00 : f32
    %149 = vector.broadcast %cst_147 : f32 to vector<64x192xf32>
    %150 = arith.addf %149, %148 : vector<64x192xf32>
    %151 = arith.divf %149, %150 : vector<64x192xf32>
    %c0_148 = arith.constant 0 : index
    %c0_149 = arith.constant 0 : index
    %c0_150 = arith.constant 0 : index
    %152 = vector.load %arg15[%c0_148, %c0_149, %c0_150] : memref<1x64x192xf32, #tpu.memory_space<vmem>>, vector<1x64x192xf32>
    %153 = vector.shape_cast %152 : vector<1x64x192xf32> to vector<64x192xf32>
    %154 = vector.shape_cast %151 : vector<64x192xf32> to vector<1x64x192xf32>
    tpu.vector_store %arg15[%c0_148, %c0_149, %c0_150], %154 {strides = array<i32>} : memref<1x64x192xf32, #tpu.memory_space<vmem>>, vector<1x64x192xf32>,
    return
  }
  func.func @transform_0(%arg0: i32) -> (i32, i32, i32) {
    %c0_i32 = arith.constant 0 : i32
    %c0_i32_0 = arith.constant 0 : i32
    %c0_i32_1 = arith.constant 0 : i32
    return %arg0, %c0_i32, %c0_i32_0 : i32, i32, i32
  }
  func.func @transform_1(%arg0: i32) -> (i32, i32, i32) {
    %c0_i32 = arith.constant 0 : i32
    %c0_i32_0 = arith.constant 0 : i32
    %c0_i32_1 = arith.constant 0 : i32
    %c0_i32_2 = arith.constant 0 : i32
    return %c0_i32, %c0_i32_0, %c0_i32_1 : i32, i32, i32
  }
  func.func @transform_2(%arg0: i32) -> (i32, i32) {
    %c0_i32 = arith.constant 0 : i32
    %c0_i32_0 = arith.constant 0 : i32
    %c0_i32_1 = arith.constant 0 : i32
    return %c0_i32, %c0_i32_0 : i32, i32
  }
  func.func @transform_3(%arg0: i32) -> (i32, i32) {
    %c0_i32 = arith.constant 0 : i32
    %c0_i32_0 = arith.constant 0 : i32
    %c0_i32_1 = arith.constant 0 : i32
    return %c0_i32, %c0_i32_0 : i32, i32
  }
  func.func @transform_4(%arg0: i32) -> (i32, i32, i32) {
    %c0_i32 = arith.constant 0 : i32
    %c0_i32_0 = arith.constant 0 : i32
    %c0_i32_1 = arith.constant 0 : i32
    %c0_i32_2 = arith.constant 0 : i32
    return %c0_i32, %c0_i32_0, %c0_i32_1 : i32, i32, i32
  }
  func.func @transform_5(%arg0: i32) -> (i32, i32) {
    %c0_i32 = arith.constant 0 : i32
    %c0_i32_0 = arith.constant 0 : i32
    %c0_i32_1 = arith.constant 0 : i32
    return %c0_i32, %c0_i32_0 : i32, i32
  }
  func.func @transform_6(%arg0: i32) -> (i32, i32) {
    %c0_i32 = arith.constant 0 : i32
    %c0_i32_0 = arith.constant 0 : i32
    %c0_i32_1 = arith.constant 0 : i32
    return %c0_i32, %c0_i32_0 : i32, i32
  }
  func.func @transform_7(%arg0: i32) -> (i32, i32, i32) {
    %c0_i32 = arith.constant 0 : i32
    %c0_i32_0 = arith.constant 0 : i32
    %c0_i32_1 = arith.constant 0 : i32
    %c0_i32_2 = arith.constant 0 : i32
    return %c0_i32, %c0_i32_0, %c0_i32_1 : i32, i32, i32
  }
  func.func @transform_8(%arg0: i32) -> (i32, i32) {
    %c0_i32 = arith.constant 0 : i32
    %c0_i32_0 = arith.constant 0 : i32
    %c0_i32_1 = arith.constant 0 : i32
    return %c0_i32, %c0_i32_0 : i32, i32
  }
  func.func @transform_9(%arg0: i32) -> (i32, i32) {
    %c0_i32 = arith.constant 0 : i32
    %c0_i32_0 = arith.constant 0 : i32
    %c0_i32_1 = arith.constant 0 : i32
    return %c0_i32, %c0_i32_0 : i32, i32
  }
  func.func @transform_10(%arg0: i32) -> (i32, i32, i32) {
    %c0_i32 = arith.constant 0 : i32
    %c0_i32_0 = arith.constant 0 : i32
    %c0_i32_1 = arith.constant 0 : i32
    %c0_i32_2 = arith.constant 0 : i32
    return %c0_i32, %c0_i32_0, %c0_i32_1 : i32, i32, i32
  }
  func.func @transform_11(%arg0: i32) -> (i32, i32) {
    %c0_i32 = arith.constant 0 : i32
    %c0_i32_0 = arith.constant 0 : i32
    %c0_i32_1 = arith.constant 0 : i32
    return %c0_i32, %c0_i32_0 : i32, i32
  }
  func.func @transform_12(%arg0: i32) -> (i32, i32, i32) {
    %c0_i32 = arith.constant 0 : i32
    %c0_i32_0 = arith.constant 0 : i32
    %c0_i32_1 = arith.constant 0 : i32
    %c0_i32_2 = arith.constant 0 : i32
    return %c0_i32, %c0_i32_0, %c0_i32_1 : i32, i32, i32
  }
  func.func @transform_13(%arg0: i32) -> (i32, i32) {
    %c0_i32 = arith.constant 0 : i32
    %c0_i32_0 = arith.constant 0 : i32
    %c0_i32_1 = arith.constant 0 : i32
    return %c0_i32, %c0_i32_0 : i32, i32
  }
  func.func @transform_14(%arg0: i32) -> (i32, i32, i32) {
    %c0_i32 = arith.constant 0 : i32
    %c0_i32_0 = arith.constant 0 : i32
    %c0_i32_1 = arith.constant 0 : i32
    return %arg0, %c0_i32, %c0_i32_0 : i32, i32, i32
  }
}

</mosaic_0001>

<llo_original>
// kernel: tpu_custom_call.1
$region0: #{tpu_custom_call.1}
  #allocation0 [shape = 'u32[]', space=smem, size = 0x4, offset = 0x4, fixed_abs, tag = 'smem constant byte address 0x4 - core index']
  #allocation1 [shape = 'u32[144,128]{1,0:T(1,128)}', space=vmem, size = 0x12000, scoped, tag = 'internal scratch']
  #allocation2 [shape = 'f32[10,64]{1,0:T(8,128)}', space=vmem, size = 0x2000, scoped, tag = 'scratch operand']
  #allocation3 [shape = 'f32[18,128]{1,0:T(8,128)}', space=vmem, size = 0x3000, scoped, tag = 'scratch operand']
  #allocation4 [shape = 'f32[34,128]{1,0:T(8,128)}', space=vmem, size = 0x5000, scoped, tag = 'scratch operand']
  #allocation5 [shape = 'f32[66,128]{1,0:T(8,128)}', space=vmem, size = 0x9000, scoped, tag = 'scratch operand']
  #allocation6 [shape = 'f32[66,192]{1,0:T(8,128)}', space=vmem, size = 0x12000, scoped, tag = 'scratch operand']
  %s0 = inlined_call_operand.vmem [shape: f32[2,8,64], index: 0, kind: input, shape index: {}]
  %s1 = inlined_call_operand.hbm [shape: bf16[3,64,128], index: 1, kind: input, shape index: {}]
  %s2 = inlined_call_operand.vmem [shape: f32[1,128], index: 2, kind: input, shape index: {}]
  %s3 = inlined_call_operand.vmem [shape: bf16[16,8], index: 3, kind: input, shape index: {}]
  %s4 = inlined_call_operand.vmem [shape: bf16[3,128,128], index: 4, kind: input, shape index: {}]
  %s5 = inlined_call_operand.vmem [shape: f32[1,128], index: 5, kind: input, shape index: {}]
  %s6 = inlined_call_operand.vmem [shape: bf16[32,16], index: 6, kind: input, shape index: {}]
  %s7 = inlined_call_operand.hbm [shape: bf16[3,128,128], index: 7, kind: input, shape index: {}]
  %s8 = inlined_call_operand.vmem [shape: f32[1,128], index: 8, kind: input, shape index: {}]
  %s9 = inlined_call_operand.vmem [shape: bf16[64,32], index: 9, kind: input, shape index: {}]
  %s10 = inlined_call_operand.vmem [shape: bf16[3,128,192], index: 10, kind: input, shape index: {}]
  %s11 = inlined_call_operand.vmem [shape: f32[1,192], index: 11, kind: input, shape index: {}]
  %s12 = inlined_call_operand.vmem [shape: bf16[3,192,192], index: 12, kind: input, shape index: {}]
  %s13 = inlined_call_operand.vmem [shape: f32[1,192], index: 13, kind: input, shape index: {}]
  %s14 = inlined_call_operand.hbm [shape: f32[2,64,192], index: 14, kind: output, shape index: {}]
  %s15 = sld [smem:[#allocation0]]
  $region97: #{tpu_custom_call.1} parent=0
    _
  %s17 = ssub.s32 1, %s15
  %s18 = scalar_select 0, %s17, %s15
  $region1: #{tpu_custom_call.1} parent=0
    #allocation7 [shape = 'u8[49152]{0}', space=vmem, size = 0xc000, scoped, tag = 'input window, operand 1, single buffered']
    #allocation8 [shape = 's32[2]{0}', space=sflag, size = 0x8, scoped, tag = 'scoped memory for tpu_custom_call.1']
    #allocation9 [shape = 's32[2]{0}', space=sflag, size = 0x8, scoped, tag = 'scoped memory for tpu_custom_call.1']
    #allocation10 [shape = 'u8[98304]{0}', space=vmem, size = 0x18000, scoped, tag = 'input window, operand 7, single buffered']
    #allocation11 [shape = 's32[1]{0}', space=sflag, size = 0x4, scoped, tag = 'scoped memory for tpu_custom_call.1']
    #allocation12 [shape = 'u8[131072]{0}', space=vmem, size = 0x20000, scoped, tag = 'output window, operand 0']
    %19 = vsyncpa [#allocation8], 0
    %20 = vsyncpa [#allocation11], 0
    %21 = vsyncpa [#allocation9], 0
    %s22 = scalar_lea.sflag [#allocation9], 1
    %23 = vsyncpa %s22, 0
    loop: start=0, step=1, limit=4
    $region2: #{tpu_custom_call.1} parent=1 // loop_pre_header
      _
    $region3: #{tpu_custom_call.1} parent=1 // loop_header
      %s25 = sphi 0, %s29
      %p26 = scmp.ge.s32.totalorder %s25, 4
      %s35 = sphi 0, %s37
      %s38 = sphi 0, %s35
      %s39 = sphi 0, %s38
      %s55 = sphi 0, %s39
      %s59 = sphi 0, %s59
      %s61 = sphi 0, %s59
      %s62 = sphi 0, %s61
      %s76 = sphi 0, %s62
      %s80 = sphi 0, %s80
      %s82 = sphi 0, %s80
      %s83 = sphi 0, %s82
      %s97 = sphi 0, %s83
      %s101 = sphi 0, %s101
      %s103 = sphi 0, %s101
      %s104 = sphi 0, %s103
      %s118 = sphi 0, %s104
      %s122 = sphi 0, %s122
      %s124 = sphi 0, %s122
      %s125 = sphi 0, %s124
      %s139 = sphi 0, %s125
      %s143 = sphi 0, %s143
      %s145 = sphi 0, %s143
      %s146 = sphi 0, %s145
      %s160 = sphi 0, %s146
      %s164 = sphi 0, %s164
      %s166 = sphi 0, %s164
      %s167 = sphi 0, %s166
      %s181 = sphi 0, %s167
      %s185 = sphi 0, %s185
      %s187 = sphi 0, %s185
      %s188 = sphi 0, %s187
      %s202 = sphi 0, %s188
      %s206 = sphi 0, %s206
      %s208 = sphi 0, %s206
      %s209 = sphi 0, %s208
      %s223 = sphi 0, %s209
      %s227 = sphi 0, %s227
      %s229 = sphi 0, %s227
      %s230 = sphi 0, %s229
      %s244 = sphi 0, %s230
      %s248 = sphi 0, %s248
      %s250 = sphi 0, %s248
      %s251 = sphi 0, %s250
      %s265 = sphi 0, %s251
      %s269 = sphi 0, %s269
      %s271 = sphi 0, %s269
      %s272 = sphi 0, %s271
      %s286 = sphi 0, %s272
      %s290 = sphi 0, %s290
      %s292 = sphi 0, %s290
      %s293 = sphi 0, %s292
      %s307 = sphi 0, %s293
      %s311 = sphi 0, %s311
      %s313 = sphi 0, %s311
      %s314 = sphi 0, %s313
      %s328 = sphi 0, %s314
      %s334 = sphi 0, %s336
      %s337 = sphi 0, %s334
      %s338 = sphi 0, %s337
      %s354 = sphi 0, %s338
    $region4: #{tpu_custom_call.1} parent=1 // loop_header_branch
      %28 = sbr.rel (%p26) target = $region8
    $region5: #{tpu_custom_call.1} parent=1 // loop_body
      %s30 = ssub.s32 %s25, 1
      %s31 = ssub.s32 %s25, 2
      %s32 = sadd.s32 %s25, 1
      %s33 = ssub.s32 %s25, %s32
      %p34 = scmp.eq.s32.totalorder %s33, 0
      %s36 = sadd.s32 %s35, 1
      %s37 = scalar_select %p34, %s35, %s36
      %p40 = pneg %p34
      %p41 = scmp.eq.s32.totalorder %s25, 1
      %p42 = por %p40, %p41
      %p43 = scmp.ne.s32.totalorder %s35, %s38
      %p44 = scmp.eq.s32.totalorder %s25, 0
      %p45 = por %p43, %p44
      %p46 = scmp.ne.s32.totalorder %s35, %s38
      %p47 = scmp.eq.s32.totalorder %s30, 1
      %p48 = por %p46, %p47
      %p49 = scmp.ne.s32.totalorder %s38, %s39
      %p50 = scmp.eq.s32.totalorder %s30, 0
      %p51 = por %p49, %p50
      %p52 = scmp.ne.s32.totalorder %s38, %s39
      %p53 = scmp.eq.s32.totalorder %s31, 1
      %p54 = por %p52, %p53
      %p56 = scmp.ne.s32.totalorder %s39, %s55
      %p57 = scmp.eq.s32.totalorder %s31, 0
      %p58 = por %p56, %p57
      %s60 = sadd.s32 %s59, 1
      %p63 = scmp.eq.s32.totalorder %s25, 1
      %p64 = scmp.ne.s32.totalorder %s59, %s61
      %p65 = scmp.eq.s32.totalorder %s25, 0
      %p66 = por %p64, %p65
      %p67 = scmp.ne.s32.totalorder %s59, %s61
      %p68 = scmp.eq.s32.totalorder %s30, 1
      %p69 = por %p67, %p68
      %p70 = scmp.ne.s32.totalorder %s61, %s62
      %p71 = scmp.eq.s32.totalorder %s30, 0
      %p72 = por %p70, %p71
      %p73 = scmp.ne.s32.totalorder %s61, %s62
      %p74 = scmp.eq.s32.totalorder %s31, 1
      %p75 = por %p73, %p74
      %p77 = scmp.ne.s32.totalorder %s62, %s76
      %p78 = scmp.eq.s32.totalorder %s31, 0
      %p79 = por %p77, %p78
      %s81 = sadd.s32 %s80, 1
      %p84 = scmp.eq.s32.totalorder %s25, 1
      %p85 = scmp.ne.s32.totalorder %s80, %s82
      %p86 = scmp.eq.s32.totalorder %s25, 0
      %p87 = por %p85, %p86
      %p88 = scmp.ne.s32.totalorder %s80, %s82
      %p89 = scmp.eq.s32.totalorder %s30, 1
      %p90 = por %p88, %p89
      %p91 = scmp.ne.s32.totalorder %s82, %s83
      %p92 = scmp.eq.s32.totalorder %s30, 0
      %p93 = por %p91, %p92
      %p94 = scmp.ne.s32.totalorder %s82, %s83
      %p95 = scmp.eq.s32.totalorder %s31, 1
      %p96 = por %p94, %p95
      %p98 = scmp.ne.s32.totalorder %s83, %s97
      %p99 = scmp.eq.s32.totalorder %s31, 0
      %p100 = por %p98, %p99
      %s102 = sadd.s32 %s101, 1
      %p105 = scmp.eq.s32.totalorder %s25, 1
      %p106 = scmp.ne.s32.totalorder %s101, %s103
      %p107 = scmp.eq.s32.totalorder %s25, 0
      %p108 = por %p106, %p107
      %p109 = scmp.ne.s32.totalorder %s101, %s103
      %p110 = scmp.eq.s32.totalorder %s30, 1
      %p111 = por %p109, %p110
      %p112 = scmp.ne.s32.totalorder %s103, %s104
      %p113 = scmp.eq.s32.totalorder %s30, 0
      %p114 = por %p112, %p113
      %p115 = scmp.ne.s32.totalorder %s103, %s104
      %p116 = scmp.eq.s32.totalorder %s31, 1
      %p117 = por %p115, %p116
      %p119 = scmp.ne.s32.totalorder %s104, %s118
      %p120 = scmp.eq.s32.totalorder %s31, 0
      %p121 = por %p119, %p120
      %s123 = sadd.s32 %s122, 1
      %p126 = scmp.eq.s32.totalorder %s25, 1
      %p127 = scmp.ne.s32.totalorder %s122, %s124
      %p128 = scmp.eq.s32.totalorder %s25, 0
      %p129 = por %p127, %p128
      %p130 = scmp.ne.s32.totalorder %s122, %s124
      %p131 = scmp.eq.s32.totalorder %s30, 1
      %p132 = por %p130, %p131
      %p133 = scmp.ne.s32.totalorder %s124, %s125
      %p134 = scmp.eq.s32.totalorder %s30, 0
      %p135 = por %p133, %p134
      %p136 = scmp.ne.s32.totalorder %s124, %s125
      %p137 = scmp.eq.s32.totalorder %s31, 1
      %p138 = por %p136, %p137
      %p140 = scmp.ne.s32.totalorder %s125, %s139
      %p141 = scmp.eq.s32.totalorder %s31, 0
      %p142 = por %p140, %p141
      %s144 = sadd.s32 %s143, 1
      %p147 = scmp.eq.s32.totalorder %s25, 1
      %p148 = scmp.ne.s32.totalorder %s143, %s145
      %p149 = scmp.eq.s32.totalorder %s25, 0
      %p150 = por %p148, %p149
      %p151 = scmp.ne.s32.totalorder %s143, %s145
      %p152 = scmp.eq.s32.totalorder %s30, 1
      %p153 = por %p151, %p152
      %p154 = scmp.ne.s32.totalorder %s145, %s146
      %p155 = scmp.eq.s32.totalorder %s30, 0
      %p156 = por %p154, %p155
      %p157 = scmp.ne.s32.totalorder %s145, %s146
      %p158 = scmp.eq.s32.totalorder %s31, 1
      %p159 = por %p157, %p158
      %p161 = scmp.ne.s32.totalorder %s146, %s160
      %p162 = scmp.eq.s32.totalorder %s31, 0
      %p163 = por %p161, %p162
      %s165 = sadd.s32 %s164, 1
      %p168 = scmp.eq.s32.totalorder %s25, 1
      %p169 = scmp.ne.s32.totalorder %s164, %s166
      %p170 = scmp.eq.s32.totalorder %s25, 0
      %p171 = por %p169, %p170
      %p172 = scmp.ne.s32.totalorder %s164, %s166
      %p173 = scmp.eq.s32.totalorder %s30, 1
      %p174 = por %p172, %p173
      %p175 = scmp.ne.s32.totalorder %s166, %s167
      %p176 = scmp.eq.s32.totalorder %s30, 0
      %p177 = por %p175, %p176
      %p178 = scmp.ne.s32.totalorder %s166, %s167
      %p179 = scmp.eq.s32.totalorder %s31, 1
      %p180 = por %p178, %p179
      %p182 = scmp.ne.s32.totalorder %s167, %s181
      %p183 = scmp.eq.s32.totalorder %s31, 0
      %p184 = por %p182, %p183
      %s186 = sadd.s32 %s185, 1
      %p189 = scmp.eq.s32.totalorder %s25, 1
      %p190 = scmp.ne.s32.totalorder %s185, %s187
      %p191 = scmp.eq.s32.totalorder %s25, 0
      %p192 = por %p190, %p191
      %p193 = scmp.ne.s32.totalorder %s185, %s187
      %p194 = scmp.eq.s32.totalorder %s30, 1
      %p195 = por %p193, %p194
      %p196 = scmp.ne.s32.totalorder %s187, %s188
      %p197 = scmp.eq.s32.totalorder %s30, 0
      %p198 = por %p196, %p197
      %p199 = scmp.ne.s32.totalorder %s187, %s188
      %p200 = scmp.eq.s32.totalorder %s31, 1
      %p201 = por %p199, %p200
      %p203 = scmp.ne.s32.totalorder %s188, %s202
      %p204 = scmp.eq.s32.totalorder %s31, 0
      %p205 = por %p203, %p204
      %s207 = sadd.s32 %s206, 1
      %p210 = scmp.eq.s32.totalorder %s25, 1
      %p211 = scmp.ne.s32.totalorder %s206, %s208
      %p212 = scmp.eq.s32.totalorder %s25, 0
      %p213 = por %p211, %p212
      %p214 = scmp.ne.s32.totalorder %s206, %s208
      %p215 = scmp.eq.s32.totalorder %s30, 1
      %p216 = por %p214, %p215
      %p217 = scmp.ne.s32.totalorder %s208, %s209
      %p218 = scmp.eq.s32.totalorder %s30, 0
      %p219 = por %p217, %p218
      %p220 = scmp.ne.s32.totalorder %s208, %s209
      %p221 = scmp.eq.s32.totalorder %s31, 1
      %p222 = por %p220, %p221
      %p224 = scmp.ne.s32.totalorder %s209, %s223
      %p225 = scmp.eq.s32.totalorder %s31, 0
      %p226 = por %p224, %p225
      %s228 = sadd.s32 %s227, 1
      %p231 = scmp.eq.s32.totalorder %s25, 1
      %p232 = scmp.ne.s32.totalorder %s227, %s229
      %p233 = scmp.eq.s32.totalorder %s25, 0
      %p234 = por %p232, %p233
      %p235 = scmp.ne.s32.totalorder %s227, %s229
      %p236 = scmp.eq.s32.totalorder %s30, 1
      %p237 = por %p235, %p236
      %p238 = scmp.ne.s32.totalorder %s229, %s230
      %p239 = scmp.eq.s32.totalorder %s30, 0
      %p240 = por %p238, %p239
      %p241 = scmp.ne.s32.totalorder %s229, %s230
      %p242 = scmp.eq.s32.totalorder %s31, 1
      %p243 = por %p241, %p242
      %p245 = scmp.ne.s32.totalorder %s230, %s244
      %p246 = scmp.eq.s32.totalorder %s31, 0
      %p247 = por %p245, %p246
      %s249 = sadd.s32 %s248, 1
      %p252 = scmp.eq.s32.totalorder %s25, 1
      %p253 = scmp.ne.s32.totalorder %s248, %s250
      %p254 = scmp.eq.s32.totalorder %s25, 0
      %p255 = por %p253, %p254
      %p256 = scmp.ne.s32.totalorder %s248, %s250
      %p257 = scmp.eq.s32.totalorder %s30, 1
      %p258 = por %p256, %p257
      %p259 = scmp.ne.s32.totalorder %s250, %s251
      %p260 = scmp.eq.s32.totalorder %s30, 0
      %p261 = por %p259, %p260
      %p262 = scmp.ne.s32.totalorder %s250, %s251
      %p263 = scmp.eq.s32.totalorder %s31, 1
      %p264 = por %p262, %p263
      %p266 = scmp.ne.s32.totalorder %s251, %s265
      %p267 = scmp.eq.s32.totalorder %s31, 0
      %p268 = por %p266, %p267
      %s270 = sadd.s32 %s269, 1
      %p273 = scmp.eq.s32.totalorder %s25, 1
      %p274 = scmp.ne.s32.totalorder %s269, %s271
      %p275 = scmp.eq.s32.totalorder %s25, 0
      %p276 = por %p274, %p275
      %p277 = scmp.ne.s32.totalorder %s269, %s271
      %p278 = scmp.eq.s32.totalorder %s30, 1
      %p279 = por %p277, %p278
      %p280 = scmp.ne.s32.totalorder %s271, %s272
      %p281 = scmp.eq.s32.totalorder %s30, 0
      %p282 = por %p280, %p281
      %p283 = scmp.ne.s32.totalorder %s271, %s272
      %p284 = scmp.eq.s32.totalorder %s31, 1
      %p285 = por %p283, %p284
      %p287 = scmp.ne.s32.totalorder %s272, %s286
      %p288 = scmp.eq.s32.totalorder %s31, 0
      %p289 = por %p287, %p288
      %s291 = sadd.s32 %s290, 1
      %p294 = scmp.eq.s32.totalorder %s25, 1
      %p295 = scmp.ne.s32.totalorder %s290, %s292
      %p296 = scmp.eq.s32.totalorder %s25, 0
      %p297 = por %p295, %p296
      %p298 = scmp.ne.s32.totalorder %s290, %s292
      %p299 = scmp.eq.s32.totalorder %s30, 1
      %p300 = por %p298, %p299
      %p301 = scmp.ne.s32.totalorder %s292, %s293
      %p302 = scmp.eq.s32.totalorder %s30, 0
      %p303 = por %p301, %p302
      %p304 = scmp.ne.s32.totalorder %s292, %s293
      %p305 = scmp.eq.s32.totalorder %s31, 1
      %p306 = por %p304, %p305
      %p308 = scmp.ne.s32.totalorder %s293, %s307
      %p309 = scmp.eq.s32.totalorder %s31, 0
      %p310 = por %p308, %p309
      %s312 = sadd.s32 %s311, 1
      %p315 = scmp.eq.s32.totalorder %s25, 1
      %p316 = scmp.ne.s32.totalorder %s311, %s313
      %p317 = scmp.eq.s32.totalorder %s25, 0
      %p318 = por %p316, %p317
      %p319 = scmp.ne.s32.totalorder %s311, %s313
      %p320 = scmp.eq.s32.totalorder %s30, 1
      %p321 = por %p319, %p320
      %p322 = scmp.ne.s32.totalorder %s313, %s314
      %p323 = scmp.eq.s32.totalorder %s30, 0
      %p324 = por %p322, %p323
      %p325 = scmp.ne.s32.totalorder %s313, %s314
      %p326 = scmp.eq.s32.totalorder %s31, 1
      %p327 = por %p325, %p326
      %p329 = scmp.ne.s32.totalorder %s314, %s328
      %p330 = scmp.eq.s32.totalorder %s31, 0
      %p331 = por %p329, %p330
      %s332 = ssub.s32 %s25, %s32
      %p333 = scmp.eq.s32.totalorder %s332, 0
      %s335 = sadd.s32 %s334, 1
      %s336 = scalar_select %p333, %s334, %s335
      %p339 = pneg %p333
      %p340 = scmp.eq.s32.totalorder %s25, 1
      %p341 = por %p339, %p340
      %p342 = scmp.ne.s32.totalorder %s334, %s337
      %p343 = scmp.eq.s32.totalorder %s25, 0
      %p344 = por %p342, %p343
      %p345 = scmp.ne.s32.totalorder %s334, %s337
      %p346 = scmp.eq.s32.totalorder %s30, 1
      %p347 = por %p345, %p346
      %p348 = scmp.ne.s32.totalorder %s337, %s338
      %p349 = scmp.eq.s32.totalorder %s30, 0
      %p350 = por %p348, %p349
      %p351 = scmp.ne.s32.totalorder %s337, %s338
      %p352 = scmp.eq.s32.totalorder %s31, 1
      %p353 = por %p351, %p352
      %p355 = scmp.ne.s32.totalorder %s338, %s354
      %p356 = scmp.eq.s32.totalorder %s31, 0
      %p357 = por %p355, %p356
      %p358 = scmp.le.s32.totalorder 1, %s25
      %p359 = scmp.lt.s32.totalorder %s25, 3
      %p360 = pnand %p358, %p359
      %p361 = pneg %p360
      // Predicated region
      $region9: #{tpu_custom_call.1} parent=5 // pred_check
        _
      $region10: #{tpu_custom_call.1} parent=5 // pred_check_branch
        %363 = sbr.rel (%p360) target = $region12
      $region11: #{tpu_custom_call.1} parent=5 // pred_region
        %s364 = ssub.s32 %s25, 1
        // Predicated region
        $region13: #{tpu_custom_call.1} parent=11 // pred_check
          %p365 = pneg %p72
        $region14: #{tpu_custom_call.1} parent=11 // pred_check_branch
          %367 = sbr.rel (%p365) target = $region16
        $region15: #{tpu_custom_call.1} parent=11 // pred_region
          %s369 = ssub.s32 1536, 1536
          %370 = vsyncadd [#allocation8], %s369
          %s371 = sshll.u32 [#allocation7], 4
          %s372 = int_to_ptr.vmem [resolvable:$true] %s371
          %377 = dma.hbm_to_vmem [thread:$0]  %s1, 1536, %s372, [#allocation8], 64, 64, 4
        $region16: #{tpu_custom_call.1} parent=11 // pred_fallthru
          _
        // Predicated region
        $region17: #{tpu_custom_call.1} parent=11 // pred_check
          %p378 = pneg %p93
        $region18: #{tpu_custom_call.1} parent=11 // pred_check_branch
          %380 = sbr.rel (%p378) target = $region20
        $region19: #{tpu_custom_call.1} parent=11 // pred_region
          _
        $region20: #{tpu_custom_call.1} parent=11 // pred_fallthru
          _
        // Predicated region
        $region21: #{tpu_custom_call.1} parent=11 // pred_check
          %p381 = pneg %p114
        $region22: #{tpu_custom_call.1} parent=11 // pred_check_branch
          %383 = sbr.rel (%p381) target = $region24
        $region23: #{tpu_custom_call.1} parent=11 // pred_region
          _
        $region24: #{tpu_custom_call.1} parent=11 // pred_fallthru
          _
        // Predicated region
        $region25: #{tpu_custom_call.1} parent=11 // pred_check
          %p384 = pneg %p135
        $region26: #{tpu_custom_call.1} parent=11 // pred_check_branch
          %386 = sbr.rel (%p384) target = $region28
        $region27: #{tpu_custom_call.1} parent=11 // pred_region
          _
        $region28: #{tpu_custom_call.1} parent=11 // pred_fallthru
          _
        // Predicated region
        $region29: #{tpu_custom_call.1} parent=11 // pred_check
          %p387 = pneg %p156
        $region30: #{tpu_custom_call.1} parent=11 // pred_check_branch
          %389 = sbr.rel (%p387) target = $region32
        $region31: #{tpu_custom_call.1} parent=11 // pred_region
          _
        $region32: #{tpu_custom_call.1} parent=11 // pred_fallthru
          _
        // Predicated region
        $region33: #{tpu_custom_call.1} parent=11 // pred_check
          %p390 = pneg %p177
        $region34: #{tpu_custom_call.1} parent=11 // pred_check_branch
          %392 = sbr.rel (%p390) target = $region36
        $region35: #{tpu_custom_call.1} parent=11 // pred_region
          _
        $region36: #{tpu_custom_call.1} parent=11 // pred_fallthru
          _
        // Predicated region
        $region37: #{tpu_custom_call.1} parent=11 // pred_check
          %p393 = pneg %p198
        $region38: #{tpu_custom_call.1} parent=11 // pred_check_branch
          %395 = sbr.rel (%p393) target = $region40
        $region39: #{tpu_custom_call.1} parent=11 // pred_region
          %s397 = ssub.s32 3072, 3072
          %398 = vsyncadd [#allocation11], %s397
          %s399 = sshll.u32 [#allocation10], 4
          %s400 = int_to_ptr.vmem [resolvable:$true] %s399
          %405 = dma.hbm_to_vmem [thread:$0]  %s7, 3072, %s400, [#allocation11], 64, 64, 4
        $region40: #{tpu_custom_call.1} parent=11 // pred_fallthru
          _
        // Predicated region
        $region41: #{tpu_custom_call.1} parent=11 // pred_check
          %p406 = pneg %p219
        $region42: #{tpu_custom_call.1} parent=11 // pred_check_branch
          %408 = sbr.rel (%p406) target = $region44
        $region43: #{tpu_custom_call.1} parent=11 // pred_region
          _
        $region44: #{tpu_custom_call.1} parent=11 // pred_fallthru
          _
        // Predicated region
        $region45: #{tpu_custom_call.1} parent=11 // pred_check
          %p409 = pneg %p240
        $region46: #{tpu_custom_call.1} parent=11 // pred_check_branch
          %411 = sbr.rel (%p409) target = $region48
        $region47: #{tpu_custom_call.1} parent=11 // pred_region
          _
        $region48: #{tpu_custom_call.1} parent=11 // pred_fallthru
          _
        // Predicated region
        $region49: #{tpu_custom_call.1} parent=11 // pred_check
          %p412 = pneg %p261
        $region50: #{tpu_custom_call.1} parent=11 // pred_check_branch
          %414 = sbr.rel (%p412) target = $region52
        $region51: #{tpu_custom_call.1} parent=11 // pred_region
          _
        $region52: #{tpu_custom_call.1} parent=11 // pred_fallthru
          _
        // Predicated region
        $region53: #{tpu_custom_call.1} parent=11 // pred_check
          %p415 = pneg %p282
        $region54: #{tpu_custom_call.1} parent=11 // pred_check_branch
          %417 = sbr.rel (%p415) target = $region56
        $region55: #{tpu_custom_call.1} parent=11 // pred_region
          _
        $region56: #{tpu_custom_call.1} parent=11 // pred_fallthru
          _
        // Predicated region
        $region57: #{tpu_custom_call.1} parent=11 // pred_check
          %p418 = pneg %p303
        $region58: #{tpu_custom_call.1} parent=11 // pred_check_branch
          %420 = sbr.rel (%p418) target = $region60
        $region59: #{tpu_custom_call.1} parent=11 // pred_region
          _
        $region60: #{tpu_custom_call.1} parent=11 // pred_fallthru
          _
        // Predicated region
        $region61: #{tpu_custom_call.1} parent=11 // pred_check
          %p421 = pneg %p324
        $region62: #{tpu_custom_call.1} parent=11 // pred_check_branch
          %423 = sbr.rel (%p421) target = $region64
        $region63: #{tpu_custom_call.1} parent=11 // pred_region
          _
        $region64: #{tpu_custom_call.1} parent=11 // pred_fallthru
          _
      $region12: #{tpu_custom_call.1} parent=5 // pred_fallthru
        _
      %p424 = scmp.lt.s32.totalorder %s25, 2
      // Predicated region
      $region65: #{tpu_custom_call.1} parent=5 // pred_check
        %p425 = pneg %p424
      $region66: #{tpu_custom_call.1} parent=5 // pred_check_branch
        %427 = sbr.rel (%p425) target = $region68
      $region67: #{tpu_custom_call.1} parent=5 // pred_region
        // Predicated region
        $region69: #{tpu_custom_call.1} parent=67 // pred_check
          %p428 = pneg %p45
        $region70: #{tpu_custom_call.1} parent=67 // pred_check_branch
          %430 = sbr.rel (%p428) target = $region72
        $region71: #{tpu_custom_call.1} parent=67 // pred_region
          %p431 = scmp.lt.s32.totalorder %s25, 1
          %s432 = scalar_select %p431, %s25, 1
          %s433 = smul.addr %s432, 8
          %s434 = scalar_lea.vmem %s0, %s433
        $region72: #{tpu_custom_call.1} parent=67 // pred_fallthru
          _
      $region68: #{tpu_custom_call.1} parent=5 // pred_fallthru
        _
      %p435 = scmp.le.s32.totalorder 1, %s25
      %p436 = scmp.lt.s32.totalorder %s25, 3
      %p437 = pnand %p435, %p436
      %p438 = pneg %p437
      // Predicated region
      $region73: #{tpu_custom_call.1} parent=5 // pred_check
        _
      $region74: #{tpu_custom_call.1} parent=5 // pred_check_branch
        %440 = sbr.rel (%p437) target = $region76
      $region75: #{tpu_custom_call.1} parent=5 // pred_region
        %s441 = ssub.s32 %s25, 1
        // Predicated region
        $region77: #{tpu_custom_call.1} parent=75 // pred_check
          %p442 = pneg %p72
        $region78: #{tpu_custom_call.1} parent=75 // pred_check_branch
          %444 = sbr.rel (%p442) target = $region80
        $region79: #{tpu_custom_call.1} parent=75 // pred_region
          %445 = dma.done [#allocation8], 1536
        $region80: #{tpu_custom_call.1} parent=75 // pred_fallthru
          _
        // Predicated region
        $region81: #{tpu_custom_call.1} parent=75 // pred_check
          %p446 = pneg %p198
        $region82: #{tpu_custom_call.1} parent=75 // pred_check_branch
          %448 = sbr.rel (%p446) target = $region84
        $region83: #{tpu_custom_call.1} parent=75 // pred_region
          %449 = dma.done [#allocation11], 3072
        $region84: #{tpu_custom_call.1} parent=75 // pred_fallthru
          _
        %p450 = scmp.lt.s32.totalorder %s30, 1
        %s451 = scalar_select %p450, %s30, 1
        %s452 = smul.addr %s451, 8
        %s453 = scalar_lea.vmem %s0, %s452
        %p454 = pneg %p51
        %p455 = pneg %p48
        %p456 = pneg %p72
        %p457 = pneg %p69
        %p458 = pneg %p93
        %p459 = pneg %p90
        %p460 = pneg %p114
        %p461 = pneg %p111
        %p462 = pneg %p135
        %p463 = pneg %p132
        %p464 = pneg %p156
        %p465 = pneg %p153
        %p466 = pneg %p177
        %p467 = pneg %p174
        %p468 = pneg %p198
        %p469 = pneg %p195
        %p470 = pneg %p219
        %p471 = pneg %p216
        %p472 = pneg %p240
        %p473 = pneg %p237
        %p474 = pneg %p261
        %p475 = pneg %p258
        %p476 = pneg %p282
        %p477 = pneg %p279
        %p478 = pneg %p303
        %p479 = pneg %p300
        %p480 = pneg %p324
        %p481 = pneg %p321
        %p482 = pneg %p350
        %p483 = pneg %p347
        %s484 = sand.u32 %s337, 1
        %s485 = scalar_lea.sflag [#allocation9], %s484
        %s486 = sand.u32 %s337, 1
        %s487 = smul.addr %s486, 128
        %s488 = scalar_lea.vmem [#allocation12], %s487
        %p489 = scmp.lt.s32.totalorder %s30, 1
        %s490 = scalar_select %p489, %s30, 1
        %s491 = smul.addr %s490, 8
        %s492 = scalar_lea.vmem %s0, %s491
        %v494 = vld [vmem:[%s492] sm:$0xff]
        %vm495 = vcmask 516096
        %496 = vst.msk [vmem:[#allocation2] sm:$0x1] %vm495, 0.0
        %497 = vst.msk [vmem:[#allocation2 + $0x9] sm:$0x1] %vm495, 0.0
        %vm498 = vcmask 523264
        %499 = vst.msk [vmem:[#allocation2 + $0x1] sm:$0xff] %vm498, %v494
        %v500 = vld [vmem:[#allocation2] sm:$0xff]
        %v501 = vpack.c.bf16 %v500, %v500
        %v502 = vld [vmem:[#allocation7] sm:$0xf]
        %v503 = vld [vmem:[#allocation7 + $0x4] sm:$0xf]
        %v504 = vld [vmem:[#allocation7 + $0x8] sm:$0xf]
        %v505 = vld [vmem:[#allocation7 + $0xc] sm:$0xf]
        %v506 = vld [vmem:[#allocation7 + $0x10] sm:$0xf]
        %v507 = vld [vmem:[#allocation7 + $0x14] sm:$0xf]
        %v508 = vld [vmem:[#allocation7 + $0x18] sm:$0xf]
        %v509 = vld [vmem:[#allocation7 + $0x1c] sm:$0xf]
        %v510 = vld [vmem:[#allocation2 + $0x1] sm:$0xff]
        %v511 = vpack.c.bf16 %v510, %v510
        %s512 = scalar_lea.vmem [#allocation7], 32
        %v513 = vld [vmem:[%s512] sm:$0xf]
        %v514 = vld [vmem:[%s512 + $0x4] sm:$0xf]
        %v515 = vld [vmem:[%s512 + $0x8] sm:$0xf]
        %v516 = vld [vmem:[%s512 + $0xc] sm:$0xf]
        %v517 = vld [vmem:[%s512 + $0x10] sm:$0xf]
        %v518 = vld [vmem:[%s512 + $0x14] sm:$0xf]
        %v519 = vld [vmem:[%s512 + $0x18] sm:$0xf]
        %v520 = vld [vmem:[%s512 + $0x1c] sm:$0xf]
        %v529 = vunpack.c.l.b16 %v513
        %v530 = vunpack.c.l.b16 %v514
        %v531 = vunpack.c.l.b16 %v515
        %v532 = vunpack.c.l.b16 %v516
        %v533 = vunpack.c.l.b16 %v517
        %v534 = vunpack.c.l.b16 %v518
        %v535 = vunpack.c.l.b16 %v519
        %v536 = vunpack.c.l.b16 %v520
        %v537 = vpack.c.b16 %v530, %v529
        %v538 = vpack.c.b16 %v532, %v531
        %v539 = vpack.c.b16 %v534, %v533
        %v540 = vpack.c.b16 %v536, %v535
        %v546 = vsel %vm498, %v511, 0
        %548 = vmatprep.subr.bf16.mxu0 0
        %549 = vmatpush1.bf16.msra.mxu0 %v537
        %550 = vmatprep.subr.bf16.mxu0 0
        %551 = vmatpush1.bf16.msra.mxu0 %v538
        %552 = vmatprep.subr.bf16.mxu0 0
        %553 = vmatpush1.bf16.msra.mxu0 %v539
        %554 = vmatprep.subr.bf16.mxu0 0
        %555 = vmatpush1.bf16.msra.mxu0 %v540
        %556 = vmatprep.subr.bf16.mxu0 0
        %557 = vmatpush1.bf16.msra.mxu0 0
        %558 = vmatprep.subr.bf16.mxu0 0
        %559 = vmatpush1.bf16.msra.mxu0 0
        %560 = vmatprep.subr.bf16.mxu0 0
        %561 = vmatpush1.bf16.msra.mxu0 0
        %562 = vmatprep.subr.bf16.mxu0 0
        %563 = vmatpush1.bf16.msra.mxu0 0
        %564 = vmatprep.subr.bf16.mxu0 0
        %565 = vmatpush1.bf16.msra.mxu0 0
        %566 = vmatprep.subr.bf16.mxu0 0
        %567 = vmatpush1.bf16.msra.mxu0 0
        %568 = vmatprep.subr.bf16.mxu0 0
        %569 = vmatpush1.bf16.msra.mxu0 0
        %570 = vmatprep.subr.bf16.mxu0 0
        %571 = vmatpush1.bf16.msra.mxu0 0
        %572 = vmatprep.subr.bf16.mxu0 0
        %573 = vmatpush1.bf16.msra.mxu0 0
        %574 = vmatprep.subr.bf16.mxu0 0
        %575 = vmatpush1.bf16.msra.mxu0 0
        %576 = vmatprep.subr.bf16.mxu0 0
        %577 = vmatpush1.bf16.msra.mxu0 0
        %578 = vmatprep.subr.bf16.mxu0 0
        %579 = vmatpush1.bf16.msra.mxu0 0
        %580 = vmatprep.mubr.bf16.mxu0 0
        %581 = vmatmul.mubr.bf16.gmra.mrb[0].mxu0 %v546
        %v582 = vpop.f32.mrb[0].mxu0
        %v583 = vadd.f32 0.0, %v582
        %v584 = vpop.f32.mrb[0].mxu0
        %v585 = vpop.f32.mrb[0].mxu0
        %v586 = vpop.f32.mrb[0].mxu0
        %587 = vdwg.mxu0
        %v596 = vunpack.c.l.b16 %v502
        %v597 = vunpack.c.l.b16 %v503
        %v598 = vunpack.c.l.b16 %v504
        %v599 = vunpack.c.l.b16 %v505
        %v600 = vunpack.c.l.b16 %v506
        %v601 = vunpack.c.l.b16 %v507
        %v602 = vunpack.c.l.b16 %v508
        %v603 = vunpack.c.l.b16 %v509
        %v604 = vpack.c.b16 %v597, %v596
        %v605 = vpack.c.b16 %v599, %v598
        %v606 = vpack.c.b16 %v601, %v600
        %v607 = vpack.c.b16 %v603, %v602
        %v613 = vsel %vm498, %v501, 0
        %615 = vmatprep.subr.bf16.mxu0 0
        %616 = vmatpush1.bf16.msra.mxu0 %v604
        %617 = vmatprep.subr.bf16.mxu0 0
        %618 = vmatpush1.bf16.msra.mxu0 %v605
        %619 = vmatprep.subr.bf16.mxu0 0
        %620 = vmatpush1.bf16.msra.mxu0 %v606
        %621 = vmatprep.subr.bf16.mxu0 0
        %622 = vmatpush1.bf16.msra.mxu0 %v607
        %623 = vmatprep.subr.bf16.mxu0 0
        %624 = vmatpush1.bf16.msra.mxu0 0
        %625 = vmatprep.subr.bf16.mxu0 0
        %626 = vmatpush1.bf16.msra.mxu0 0
        %627 = vmatprep.subr.bf16.mxu0 0
        %628 = vmatpush1.bf16.msra.mxu0 0
        %629 = vmatprep.subr.bf16.mxu0 0
        %630 = vmatpush1.bf16.msra.mxu0 0
        %631 = vmatprep.subr.bf16.mxu0 0
        %632 = vmatpush1.bf16.msra.mxu0 0
        %633 = vmatprep.subr.bf16.mxu0 0
        %634 = vmatpush1.bf16.msra.mxu0 0
        %635 = vmatprep.subr.bf16.mxu0 0
        %636 = vmatpush1.bf16.msra.mxu0 0
        %637 = vmatprep.subr.bf16.mxu0 0
        %638 = vmatpush1.bf16.msra.mxu0 0
        %639 = vmatprep.subr.bf16.mxu0 0
        %640 = vmatpush1.bf16.msra.mxu0 0
        %641 = vmatprep.subr.bf16.mxu0 0
        %642 = vmatpush1.bf16.msra.mxu0 0
        %643 = vmatprep.subr.bf16.mxu0 0
        %644 = vmatpush1.bf16.msra.mxu0 0
        %645 = vmatprep.subr.bf16.mxu0 0
        %646 = vmatpush1.bf16.msra.mxu0 0
        %647 = vmatprep.mubr.bf16.mxu0 0
        %648 = vmatmul.mubr.bf16.gmra.mrb[0].mxu0 %v613
        %v649 = vpop.f32.mrb[0].mxu0
        %v650 = vadd.f32 %v583, %v649
        %v651 = vpop.f32.mrb[0].mxu0
        %v652 = vpop.f32.mrb[0].mxu0
        %v653 = vpop.f32.mrb[0].mxu0
        %654 = vdwg.mxu0
        %v655 = vld [vmem:[#allocation2 + $0x2] sm:$0xff]
        %v656 = vpack.c.bf16 %v655, %v655
        %s657 = scalar_lea.vmem [#allocation7], 64
        %v658 = vld [vmem:[%s657] sm:$0xf]
        %v659 = vld [vmem:[%s657 + $0x4] sm:$0xf]
        %v660 = vld [vmem:[%s657 + $0x8] sm:$0xf]
        %v661 = vld [vmem:[%s657 + $0xc] sm:$0xf]
        %v662 = vld [vmem:[%s657 + $0x10] sm:$0xf]
        %v663 = vld [vmem:[%s657 + $0x14] sm:$0xf]
        %v664 = vld [vmem:[%s657 + $0x18] sm:$0xf]
        %v665 = vld [vmem:[%s657 + $0x1c] sm:$0xf]
        %v674 = vunpack.c.l.b16 %v658
        %v675 = vunpack.c.l.b16 %v659
        %v676 = vunpack.c.l.b16 %v660
        %v677 = vunpack.c.l.b16 %v661
        %v678 = vunpack.c.l.b16 %v662
        %v679 = vunpack.c.l.b16 %v663
        %v680 = vunpack.c.l.b16 %v664
        %v681 = vunpack.c.l.b16 %v665
        %v682 = vpack.c.b16 %v675, %v674
        %v683 = vpack.c.b16 %v677, %v676
        %v684 = vpack.c.b16 %v679, %v678
        %v685 = vpack.c.b16 %v681, %v680
        %v691 = vsel %vm498, %v656, 0
        %693 = vmatprep.subr.bf16.mxu0 0
        %694 = vmatpush1.bf16.msra.mxu0 %v682
        %695 = vmatprep.subr.bf16.mxu0 0
        %696 = vmatpush1.bf16.msra.mxu0 %v683
        %697 = vmatprep.subr.bf16.mxu0 0
        %698 = vmatpush1.bf16.msra.mxu0 %v684
        %699 = vmatprep.subr.bf16.mxu0 0
        %700 = vmatpush1.bf16.msra.mxu0 %v685
        %701 = vmatprep.subr.bf16.mxu0 0
        %702 = vmatpush1.bf16.msra.mxu0 0
        %703 = vmatprep.subr.bf16.mxu0 0
        %704 = vmatpush1.bf16.msra.mxu0 0
        %705 = vmatprep.subr.bf16.mxu0 0
        %706 = vmatpush1.bf16.msra.mxu0 0
        %707 = vmatprep.subr.bf16.mxu0 0
        %708 = vmatpush1.bf16.msra.mxu0 0
        %709 = vmatprep.subr.bf16.mxu0 0
        %710 = vmatpush1.bf16.msra.mxu0 0
        %711 = vmatprep.subr.bf16.mxu0 0
        %712 = vmatpush1.bf16.msra.mxu0 0
        %713 = vmatprep.subr.bf16.mxu0 0
        %714 = vmatpush1.bf16.msra.mxu0 0
        %715 = vmatprep.subr.bf16.mxu0 0
        %716 = vmatpush1.bf16.msra.mxu0 0
        %717 = vmatprep.subr.bf16.mxu0 0
        %718 = vmatpush1.bf16.msra.mxu0 0
        %719 = vmatprep.subr.bf16.mxu0 0
        %720 = vmatpush1.bf16.msra.mxu0 0
        %721 = vmatprep.subr.bf16.mxu0 0
        %722 = vmatpush1.bf16.msra.mxu0 0
        %723 = vmatprep.subr.bf16.mxu0 0
        %724 = vmatpush1.bf16.msra.mxu0 0
        %725 = vmatprep.mubr.bf16.mxu0 0
        %726 = vmatmul.mubr.bf16.gmra.mrb[0].mxu0 %v691
        %v727 = vpop.f32.mrb[0].mxu0
        %v728 = vadd.f32 0.0, %v727
        %v729 = vpop.f32.mrb[0].mxu0
        %v730 = vpop.f32.mrb[0].mxu0
        %v731 = vpop.f32.mrb[0].mxu0
        %732 = vdwg.mxu0
        %v733 = vadd.f32 %v650, %v728
        %v734 = vld [vmem:[%s2] sm:$0x1]
        %v736 = vlaneseq
        %v737 = vshrl.u32 %v736, 7
        %v738 = vsub.s32 0, %v737
        %v739 = vrot.slane %v734, %v738
        %v741 = vadd.f32 %v733, %v739
        %v742 = vld [vmem:[%s3] sm:$0xf]
        %v743 = vld [vmem:[%s3 + $0x4] sm:$0xf]
        %v744 = vpack.c.bf16 %v741, %v741
        %v747 = vunpack.c.l.b16 %v742
        %v748 = vunpack.c.l.b16 %v743
        %v749 = vpack.c.b16 %v748, %v747
        %vm750 = vcmask 64512
        %v752 = vsel %vm750, %v749, 0
        %vm754 = vcmask 1043456
        %v756 = vsel %vm754, %v744, 0
        %758 = vmatprep.subr.bf16.mxu0 0
        %759 = vmatpush1.bf16.msra.mxu0 %v756
        %760 = vmatprep.subr.bf16.mxu0 0
        %761 = vmatpush1.bf16.msra.mxu0 0
        %762 = vmatprep.subr.bf16.mxu0 0
        %763 = vmatpush1.bf16.msra.mxu0 0
        %764 = vmatprep.subr.bf16.mxu0 0
        %765 = vmatpush1.bf16.msra.mxu0 0
        %766 = vmatprep.subr.bf16.mxu0 0
        %767 = vmatpush1.bf16.msra.mxu0 0
        %768 = vmatprep.subr.bf16.mxu0 0
        %769 = vmatpush1.bf16.msra.mxu0 0
        %770 = vmatprep.subr.bf16.mxu0 0
        %771 = vmatpush1.bf16.msra.mxu0 0
        %772 = vmatprep.subr.bf16.mxu0 0
        %773 = vmatpush1.bf16.msra.mxu0 0
        %774 = vmatprep.subr.bf16.mxu0 0
        %775 = vmatpush1.bf16.msra.mxu0 0
        %776 = vmatprep.subr.bf16.mxu0 0
        %777 = vmatpush1.bf16.msra.mxu0 0
        %778 = vmatprep.subr.bf16.mxu0 0
        %779 = vmatpush1.bf16.msra.mxu0 0
        %780 = vmatprep.subr.bf16.mxu0 0
        %781 = vmatpush1.bf16.msra.mxu0 0
        %782 = vmatprep.subr.bf16.mxu0 0
        %783 = vmatpush1.bf16.msra.mxu0 0
        %784 = vmatprep.subr.bf16.mxu0 0
        %785 = vmatpush1.bf16.msra.mxu0 0
        %786 = vmatprep.subr.bf16.mxu0 0
        %787 = vmatpush1.bf16.msra.mxu0 0
        %788 = vmatprep.subr.bf16.mxu0 0
        %789 = vmatpush1.bf16.msra.mxu0 0
        %790 = vmatprep.mubr.bf16.mxu0 0
        %791 = vmatmul.mubr.bf16.gmra.mrb[0].mxu0 %v752
        %v792 = vpop.f32.mrb[0].mxu0
        %v793 = vadd.f32 0.0, %v792
        %v794 = vpop.f32.mrb[0].mxu0
        %v795 = vpop.f32.mrb[0].mxu0
        %v796 = vadd.f32 0.0, %v795
        %v797 = vpop.f32.mrb[0].mxu0
        %798 = vdwg.mxu0
        %799 = vst [vmem:[#allocation3] sm:$0x1] 0.0
        %800 = vst [vmem:[#allocation3 + $0x11] sm:$0x1] 0.0
        %801 = vst [vmem:[#allocation3 + $0x1] sm:$0xff] %v793
        %802 = vst [vmem:[#allocation3 + $0x9] sm:$0xff] %v796
        %v803 = vld [vmem:[#allocation3] sm:$0xff]
        %v804 = vld [vmem:[#allocation3 + $0x8] sm:$0xff]
        %v805 = vpack.c.bf16 %v804, %v803
        %v806 = vld [vmem:[%s4] sm:$0xf]
        %v807 = vld [vmem:[%s4 + $0x4] sm:$0xf]
        %v808 = vld [vmem:[%s4 + $0x8] sm:$0xf]
        %v809 = vld [vmem:[%s4 + $0xc] sm:$0xf]
        %v810 = vld [vmem:[%s4 + $0x10] sm:$0xf]
        %v811 = vld [vmem:[%s4 + $0x14] sm:$0xf]
        %v812 = vld [vmem:[%s4 + $0x18] sm:$0xf]
        %v813 = vld [vmem:[%s4 + $0x1c] sm:$0xf]
        %v814 = vld [vmem:[%s4 + $0x20] sm:$0xf]
        %v815 = vld [vmem:[%s4 + $0x24] sm:$0xf]
        %v816 = vld [vmem:[%s4 + $0x28] sm:$0xf]
        %v817 = vld [vmem:[%s4 + $0x2c] sm:$0xf]
        %v818 = vld [vmem:[%s4 + $0x30] sm:$0xf]
        %v819 = vld [vmem:[%s4 + $0x34] sm:$0xf]
        %v820 = vld [vmem:[%s4 + $0x38] sm:$0xf]
        %v821 = vld [vmem:[%s4 + $0x3c] sm:$0xf]
        %v822 = vld [vmem:[#allocation3 + $0x1] sm:$0xff]
        %v823 = vld [vmem:[#allocation3 + $0x9] sm:$0xff]
        %v824 = vpack.c.bf16 %v823, %v822
        %s825 = scalar_lea.vmem %s4, 64
        %v826 = vld [vmem:[%s825] sm:$0xf]
        %v827 = vld [vmem:[%s825 + $0x4] sm:$0xf]
        %v828 = vld [vmem:[%s825 + $0x8] sm:$0xf]
        %v829 = vld [vmem:[%s825 + $0xc] sm:$0xf]
        %v830 = vld [vmem:[%s825 + $0x10] sm:$0xf]
        %v831 = vld [vmem:[%s825 + $0x14] sm:$0xf]
        %v832 = vld [vmem:[%s825 + $0x18] sm:$0xf]
        %v833 = vld [vmem:[%s825 + $0x1c] sm:$0xf]
        %v834 = vld [vmem:[%s825 + $0x20] sm:$0xf]
        %v835 = vld [vmem:[%s825 + $0x24] sm:$0xf]
        %v836 = vld [vmem:[%s825 + $0x28] sm:$0xf]
        %v837 = vld [vmem:[%s825 + $0x2c] sm:$0xf]
        %v838 = vld [vmem:[%s825 + $0x30] sm:$0xf]
        %v839 = vld [vmem:[%s825 + $0x34] sm:$0xf]
        %v840 = vld [vmem:[%s825 + $0x38] sm:$0xf]
        %v841 = vld [vmem:[%s825 + $0x3c] sm:$0xf]
        %v858 = vunpack.c.l.b16 %v826
        %v859 = vunpack.c.l.b16 %v827
        %v860 = vunpack.c.l.b16 %v828
        %v861 = vunpack.c.l.b16 %v829
        %v862 = vunpack.c.l.b16 %v830
        %v863 = vunpack.c.l.b16 %v831
        %v864 = vunpack.c.l.b16 %v832
        %v865 = vunpack.c.l.b16 %v833
        %v866 = vunpack.c.l.b16 %v834
        %v867 = vunpack.c.l.b16 %v835
        %v868 = vunpack.c.l.b16 %v836
        %v869 = vunpack.c.l.b16 %v837
        %v870 = vunpack.c.l.b16 %v838
        %v871 = vunpack.c.l.b16 %v839
        %v872 = vunpack.c.l.b16 %v840
        %v873 = vunpack.c.l.b16 %v841
        %v874 = vpack.c.b16 %v859, %v858
        %v875 = vpack.c.b16 %v861, %v860
        %v876 = vpack.c.b16 %v863, %v862
        %v877 = vpack.c.b16 %v865, %v864
        %v878 = vpack.c.b16 %v867, %v866
        %v879 = vpack.c.b16 %v869, %v868
        %v880 = vpack.c.b16 %v871, %v870
        %v881 = vpack.c.b16 %v873, %v872
        %890 = vmatprep.subr.bf16.mxu0 0
        %891 = vmatpush1.bf16.msra.mxu0 %v874
        %892 = vmatprep.subr.bf16.mxu0 0
        %893 = vmatpush1.bf16.msra.mxu0 %v875
        %894 = vmatprep.subr.bf16.mxu0 0
        %895 = vmatpush1.bf16.msra.mxu0 %v876
        %896 = vmatprep.subr.bf16.mxu0 0
        %897 = vmatpush1.bf16.msra.mxu0 %v877
        %898 = vmatprep.subr.bf16.mxu0 0
        %899 = vmatpush1.bf16.msra.mxu0 %v878
        %900 = vmatprep.subr.bf16.mxu0 0
        %901 = vmatpush1.bf16.msra.mxu0 %v879
        %902 = vmatprep.subr.bf16.mxu0 0
        %903 = vmatpush1.bf16.msra.mxu0 %v880
        %904 = vmatprep.subr.bf16.mxu0 0
        %905 = vmatpush1.bf16.msra.mxu0 %v881
        %906 = vmatprep.subr.bf16.mxu0 0
        %907 = vmatpush1.bf16.msra.mxu0 0
        %908 = vmatprep.subr.bf16.mxu0 0
        %909 = vmatpush1.bf16.msra.mxu0 0
        %910 = vmatprep.subr.bf16.mxu0 0
        %911 = vmatpush1.bf16.msra.mxu0 0
        %912 = vmatprep.subr.bf16.mxu0 0
        %913 = vmatpush1.bf16.msra.mxu0 0
        %914 = vmatprep.subr.bf16.mxu0 0
        %915 = vmatpush1.bf16.msra.mxu0 0
        %916 = vmatprep.subr.bf16.mxu0 0
        %917 = vmatpush1.bf16.msra.mxu0 0
        %918 = vmatprep.subr.bf16.mxu0 0
        %919 = vmatpush1.bf16.msra.mxu0 0
        %920 = vmatprep.subr.bf16.mxu0 0
        %921 = vmatpush1.bf16.msra.mxu0 0
        %922 = vmatprep.mubr.bf16.mxu0 0
        %923 = vmatmul.mubr.bf16.gmra.mrb[0].mxu0 %v824
        %v924 = vpop.f32.mrb[0].mxu0
        %v925 = vadd.f32 0.0, %v924
        %v926 = vpop.f32.mrb[0].mxu0
        %v927 = vpop.f32.mrb[0].mxu0
        %v928 = vadd.f32 0.0, %v927
        %v929 = vpop.f32.mrb[0].mxu0
        %930 = vdwg.mxu0
        %v947 = vunpack.c.l.b16 %v806
        %v948 = vunpack.c.l.b16 %v807
        %v949 = vunpack.c.l.b16 %v808
        %v950 = vunpack.c.l.b16 %v809
        %v951 = vunpack.c.l.b16 %v810
        %v952 = vunpack.c.l.b16 %v811
        %v953 = vunpack.c.l.b16 %v812
        %v954 = vunpack.c.l.b16 %v813
        %v955 = vunpack.c.l.b16 %v814
        %v956 = vunpack.c.l.b16 %v815
        %v957 = vunpack.c.l.b16 %v816
        %v958 = vunpack.c.l.b16 %v817
        %v959 = vunpack.c.l.b16 %v818
        %v960 = vunpack.c.l.b16 %v819
        %v961 = vunpack.c.l.b16 %v820
        %v962 = vunpack.c.l.b16 %v821
        %v963 = vpack.c.b16 %v948, %v947
        %v964 = vpack.c.b16 %v950, %v949
        %v965 = vpack.c.b16 %v952, %v951
        %v966 = vpack.c.b16 %v954, %v953
        %v967 = vpack.c.b16 %v956, %v955
        %v968 = vpack.c.b16 %v958, %v957
        %v969 = vpack.c.b16 %v960, %v959
        %v970 = vpack.c.b16 %v962, %v961
        %979 = vmatprep.subr.bf16.mxu0 0
        %980 = vmatpush1.bf16.msra.mxu0 %v963
        %981 = vmatprep.subr.bf16.mxu0 0
        %982 = vmatpush1.bf16.msra.mxu0 %v964
        %983 = vmatprep.subr.bf16.mxu0 0
        %984 = vmatpush1.bf16.msra.mxu0 %v965
        %985 = vmatprep.subr.bf16.mxu0 0
        %986 = vmatpush1.bf16.msra.mxu0 %v966
        %987 = vmatprep.subr.bf16.mxu0 0
        %988 = vmatpush1.bf16.msra.mxu0 %v967
        %989 = vmatprep.subr.bf16.mxu0 0
        %990 = vmatpush1.bf16.msra.mxu0 %v968
        %991 = vmatprep.subr.bf16.mxu0 0
        %992 = vmatpush1.bf16.msra.mxu0 %v969
        %993 = vmatprep.subr.bf16.mxu0 0
        %994 = vmatpush1.bf16.msra.mxu0 %v970
        %995 = vmatprep.subr.bf16.mxu0 0
        %996 = vmatpush1.bf16.msra.mxu0 0
        %997 = vmatprep.subr.bf16.mxu0 0
        %998 = vmatpush1.bf16.msra.mxu0 0
        %999 = vmatprep.subr.bf16.mxu0 0
        %1000 = vmatpush1.bf16.msra.mxu0 0
        %1001 = vmatprep.subr.bf16.mxu0 0
        %1002 = vmatpush1.bf16.msra.mxu0 0
        %1003 = vmatprep.subr.bf16.mxu0 0
        %1004 = vmatpush1.bf16.msra.mxu0 0
        %1005 = vmatprep.subr.bf16.mxu0 0
        %1006 = vmatpush1.bf16.msra.mxu0 0
        %1007 = vmatprep.subr.bf16.mxu0 0
        %1008 = vmatpush1.bf16.msra.mxu0 0
        %1009 = vmatprep.subr.bf16.mxu0 0
        %1010 = vmatpush1.bf16.msra.mxu0 0
        %1011 = vmatprep.mubr.bf16.mxu0 0
        %1012 = vmatmul.mubr.bf16.gmra.mrb[0].mxu0 %v805
        %v1013 = vpop.f32.mrb[0].mxu0
        %v1014 = vadd.f32 %v925, %v1013
        %v1015 = vpop.f32.mrb[0].mxu0
        %v1016 = vpop.f32.mrb[0].mxu0
        %v1017 = vadd.f32 %v928, %v1016
        %v1018 = vpop.f32.mrb[0].mxu0
        %1019 = vdwg.mxu0
        %v1020 = vld [vmem:[#allocation3 + $0x2] sm:$0xff]
        %v1021 = vld [vmem:[#allocation3 + $0xa] sm:$0xff]
        %v1022 = vpack.c.bf16 %v1021, %v1020
        %s1023 = scalar_lea.vmem %s4, 128
        %v1024 = vld [vmem:[%s1023] sm:$0xf]
        %v1025 = vld [vmem:[%s1023 + $0x4] sm:$0xf]
        %v1026 = vld [vmem:[%s1023 + $0x8] sm:$0xf]
        %v1027 = vld [vmem:[%s1023 + $0xc] sm:$0xf]
        %v1028 = vld [vmem:[%s1023 + $0x10] sm:$0xf]
        %v1029 = vld [vmem:[%s1023 + $0x14] sm:$0xf]
        %v1030 = vld [vmem:[%s1023 + $0x18] sm:$0xf]
        %v1031 = vld [vmem:[%s1023 + $0x1c] sm:$0xf]
        %v1032 = vld [vmem:[%s1023 + $0x20] sm:$0xf]
        %v1033 = vld [vmem:[%s1023 + $0x24] sm:$0xf]
        %v1034 = vld [vmem:[%s1023 + $0x28] sm:$0xf]
        %v1035 = vld [vmem:[%s1023 + $0x2c] sm:$0xf]
        %v1036 = vld [vmem:[%s1023 + $0x30] sm:$0xf]
        %v1037 = vld [vmem:[%s1023 + $0x34] sm:$0xf]
        %v1038 = vld [vmem:[%s1023 + $0x38] sm:$0xf]
        %v1039 = vld [vmem:[%s1023 + $0x3c] sm:$0xf]
        %v1056 = vunpack.c.l.b16 %v1024
        %v1057 = vunpack.c.l.b16 %v1025
        %v1058 = vunpack.c.l.b16 %v1026
        %v1059 = vunpack.c.l.b16 %v1027
        %v1060 = vunpack.c.l.b16 %v1028
        %v1061 = vunpack.c.l.b16 %v1029
        %v1062 = vunpack.c.l.b16 %v1030
        %v1063 = vunpack.c.l.b16 %v1031
        %v1064 = vunpack.c.l.b16 %v1032
        %v1065 = vunpack.c.l.b16 %v1033
        %v1066 = vunpack.c.l.b16 %v1034
        %v1067 = vunpack.c.l.b16 %v1035
        %v1068 = vunpack.c.l.b16 %v1036
        %v1069 = vunpack.c.l.b16 %v1037
        %v1070 = vunpack.c.l.b16 %v1038
        %v1071 = vunpack.c.l.b16 %v1039
        %v1072 = vpack.c.b16 %v1057, %v1056
        %v1073 = vpack.c.b16 %v1059, %v1058
        %v1074 = vpack.c.b16 %v1061, %v1060
        %v1075 = vpack.c.b16 %v1063, %v1062
        %v1076 = vpack.c.b16 %v1065, %v1064
        %v1077 = vpack.c.b16 %v1067, %v1066
        %v1078 = vpack.c.b16 %v1069, %v1068
        %v1079 = vpack.c.b16 %v1071, %v1070
        %1088 = vmatprep.subr.bf16.mxu0 0
        %1089 = vmatpush1.bf16.msra.mxu0 %v1072
        %1090 = vmatprep.subr.bf16.mxu0 0
        %1091 = vmatpush1.bf16.msra.mxu0 %v1073
        %1092 = vmatprep.subr.bf16.mxu0 0
        %1093 = vmatpush1.bf16.msra.mxu0 %v1074
        %1094 = vmatprep.subr.bf16.mxu0 0
        %1095 = vmatpush1.bf16.msra.mxu0 %v1075
        %1096 = vmatprep.subr.bf16.mxu0 0
        %1097 = vmatpush1.bf16.msra.mxu0 %v1076
        %1098 = vmatprep.subr.bf16.mxu0 0
        %1099 = vmatpush1.bf16.msra.mxu0 %v1077
        %1100 = vmatprep.subr.bf16.mxu0 0
        %1101 = vmatpush1.bf16.msra.mxu0 %v1078
        %1102 = vmatprep.subr.bf16.mxu0 0
        %1103 = vmatpush1.bf16.msra.mxu0 %v1079
        %1104 = vmatprep.subr.bf16.mxu0 0
        %1105 = vmatpush1.bf16.msra.mxu0 0
        %1106 = vmatprep.subr.bf16.mxu0 0
        %1107 = vmatpush1.bf16.msra.mxu0 0
        %1108 = vmatprep.subr.bf16.mxu0 0
        %1109 = vmatpush1.bf16.msra.mxu0 0
        %1110 = vmatprep.subr.bf16.mxu0 0
        %1111 = vmatpush1.bf16.msra.mxu0 0
        %1112 = vmatprep.subr.bf16.mxu0 0
        %1113 = vmatpush1.bf16.msra.mxu0 0
        %1114 = vmatprep.subr.bf16.mxu0 0
        %1115 = vmatpush1.bf16.msra.mxu0 0
        %1116 = vmatprep.subr.bf16.mxu0 0
        %1117 = vmatpush1.bf16.msra.mxu0 0
        %1118 = vmatprep.subr.bf16.mxu0 0
        %1119 = vmatpush1.bf16.msra.mxu0 0
        %1120 = vmatprep.mubr.bf16.mxu0 0
        %1121 = vmatmul.mubr.bf16.gmra.mrb[0].mxu0 %v1022
        %v1122 = vpop.f32.mrb[0].mxu0
        %v1123 = vadd.f32 0.0, %v1122
        %v1124 = vpop.f32.mrb[0].mxu0
        %v1125 = vpop.f32.mrb[0].mxu0
        %v1126 = vadd.f32 0.0, %v1125
        %v1127 = vpop.f32.mrb[0].mxu0
        %1128 = vdwg.mxu0
        %v1129 = vadd.f32 %v1014, %v1123
        %v1130 = vadd.f32 %v1017, %v1126
        %v1131 = vld [vmem:[%s5] sm:$0x1]
        %v1133 = vlaneseq
        %v1134 = vshrl.u32 %v1133, 7
        %v1135 = vsub.s32 0, %v1134
        %v1136 = vrot.slane %v1131, %v1135
        %v1138 = vadd.f32 %v1129, %v1136
        %v1139 = vadd.f32 %v1130, %v1136
        %v1140 = vmax.f32 %v1138, 0.0
        %v1141 = vmax.f32 %v1139, 0.0
        %v1142 = vld [vmem:[%s6] sm:$0xf]
        %v1143 = vld [vmem:[%s6 + $0x4] sm:$0xf]
        %v1144 = vld [vmem:[%s6 + $0x8] sm:$0xf]
        %v1145 = vld [vmem:[%s6 + $0xc] sm:$0xf]
        %v1146 = vpack.c.bf16 %v1141, %v1140
        %v1151 = vunpack.c.l.b16 %v1142
        %v1152 = vunpack.c.l.b16 %v1143
        %v1153 = vunpack.c.l.b16 %v1144
        %v1154 = vunpack.c.l.b16 %v1145
        %v1155 = vpack.c.b16 %v1152, %v1151
        %v1156 = vpack.c.b16 %v1154, %v1153
        %vm1157 = vcmask 130048
        %v1159 = vsel %vm1157, %v1155, 0
        %v1162 = vsel %vm1157, %v1156, 0
        %1164 = vmatprep.subr.bf16.mxu0 0
        %1165 = vmatpush1.bf16.msra.mxu0 %v1146
        %1166 = vmatprep.subr.bf16.mxu0 0
        %1167 = vmatpush1.bf16.msra.mxu0 0
        %1168 = vmatprep.subr.bf16.mxu0 0
        %1169 = vmatpush1.bf16.msra.mxu0 0
        %1170 = vmatprep.subr.bf16.mxu0 0
        %1171 = vmatpush1.bf16.msra.mxu0 0
        %1172 = vmatprep.subr.bf16.mxu0 0
        %1173 = vmatpush1.bf16.msra.mxu0 0
        %1174 = vmatprep.subr.bf16.mxu0 0
        %1175 = vmatpush1.bf16.msra.mxu0 0
        %1176 = vmatprep.subr.bf16.mxu0 0
        %1177 = vmatpush1.bf16.msra.mxu0 0
        %1178 = vmatprep.subr.bf16.mxu0 0
        %1179 = vmatpush1.bf16.msra.mxu0 0
        %1180 = vmatprep.subr.bf16.mxu0 0
        %1181 = vmatpush1.bf16.msra.mxu0 0
        %1182 = vmatprep.subr.bf16.mxu0 0
        %1183 = vmatpush1.bf16.msra.mxu0 0
        %1184 = vmatprep.subr.bf16.mxu0 0
        %1185 = vmatpush1.bf16.msra.mxu0 0
        %1186 = vmatprep.subr.bf16.mxu0 0
        %1187 = vmatpush1.bf16.msra.mxu0 0
        %1188 = vmatprep.subr.bf16.mxu0 0
        %1189 = vmatpush1.bf16.msra.mxu0 0
        %1190 = vmatprep.subr.bf16.mxu0 0
        %1191 = vmatpush1.bf16.msra.mxu0 0
        %1192 = vmatprep.subr.bf16.mxu0 0
        %1193 = vmatpush1.bf16.msra.mxu0 0
        %1194 = vmatprep.subr.bf16.mxu0 0
        %1195 = vmatpush1.bf16.msra.mxu0 0
        %1196 = vmatprep.mubr.bf16.mxu0 0
        %1197 = vmatmul.mubr.bf16.gmra.mrb[0].mxu0 %v1159
        %v1198 = vpop.f32.mrb[0].mxu0
        %v1199 = vadd.f32 0.0, %v1198
        %v1200 = vpop.f32.mrb[0].mxu0
        %v1201 = vpop.f32.mrb[0].mxu0
        %v1202 = vadd.f32 0.0, %v1201
        %v1203 = vpop.f32.mrb[0].mxu0
        %1204 = vmatprep.mubr.bf16.mxu0 0
        %1205 = vmatmul.mubr.bf16.gmra.mrb[0].mxu0 %v1162
        %v1206 = vpop.f32.mrb[0].mxu0
        %v1207 = vadd.f32 0.0, %v1206
        %v1208 = vpop.f32.mrb[0].mxu0
        %v1209 = vpop.f32.mrb[0].mxu0
        %v1210 = vadd.f32 0.0, %v1209
        %v1211 = vpop.f32.mrb[0].mxu0
        %1212 = vdwg.mxu0
        %1213 = vst [vmem:[#allocation4] sm:$0x1] 0.0
        %1214 = vst [vmem:[#allocation4 + $0x21] sm:$0x1] 0.0
        %1215 = vst [vmem:[#allocation4 + $0x1] sm:$0xff] %v1199
        %1216 = vst [vmem:[#allocation4 + $0x9] sm:$0xff] %v1202
        %1217 = vst [vmem:[#allocation4 + $0x11] sm:$0xff] %v1207
        %1218 = vst [vmem:[#allocation4 + $0x19] sm:$0xff] %v1210
        %v1219 = vld [vmem:[#allocation4] sm:$0xff]
        %v1220 = vld [vmem:[#allocation4 + $0x8] sm:$0xff]
        %v1221 = vld [vmem:[#allocation4 + $0x10] sm:$0xff]
        %v1222 = vld [vmem:[#allocation4 + $0x18] sm:$0xff]
        %v1223 = vpack.c.bf16 %v1220, %v1219
        %v1224 = vpack.c.bf16 %v1222, %v1221
        %v1225 = vld [vmem:[#allocation10] sm:$0xf]
        %v1226 = vld [vmem:[#allocation10 + $0x4] sm:$0xf]
        %v1227 = vld [vmem:[#allocation10 + $0x8] sm:$0xf]
        %v1228 = vld [vmem:[#allocation10 + $0xc] sm:$0xf]
        %v1229 = vld [vmem:[#allocation10 + $0x10] sm:$0xf]
        %v1230 = vld [vmem:[#allocation10 + $0x14] sm:$0xf]
        %v1231 = vld [vmem:[#allocation10 + $0x18] sm:$0xf]
        %v1232 = vld [vmem:[#allocation10 + $0x1c] sm:$0xf]
        %v1233 = vld [vmem:[#allocation10 + $0x20] sm:$0xf]
        %v1234 = vld [vmem:[#allocation10 + $0x24] sm:$0xf]
        %v1235 = vld [vmem:[#allocation10 + $0x28] sm:$0xf]
        %v1236 = vld [vmem:[#allocation10 + $0x2c] sm:$0xf]
        %v1237 = vld [vmem:[#allocation10 + $0x30] sm:$0xf]
        %v1238 = vld [vmem:[#allocation10 + $0x34] sm:$0xf]
        %v1239 = vld [vmem:[#allocation10 + $0x38] sm:$0xf]
        %v1240 = vld [vmem:[#allocation10 + $0x3c] sm:$0xf]
        %v1241 = vld [vmem:[#allocation4 + $0x1] sm:$0xff]
        %v1242 = vld [vmem:[#allocation4 + $0x9] sm:$0xff]
        %v1243 = vld [vmem:[#allocation4 + $0x11] sm:$0xff]
        %v1244 = vld [vmem:[#allocation4 + $0x19] sm:$0xff]
        %v1245 = vpack.c.bf16 %v1242, %v1241
        %v1246 = vpack.c.bf16 %v1244, %v1243
        %s1247 = scalar_lea.vmem [#allocation10], 64
        %v1248 = vld [vmem:[%s1247] sm:$0xf]
        %v1249 = vld [vmem:[%s1247 + $0x4] sm:$0xf]
        %v1250 = vld [vmem:[%s1247 + $0x8] sm:$0xf]
        %v1251 = vld [vmem:[%s1247 + $0xc] sm:$0xf]
        %v1252 = vld [vmem:[%s1247 + $0x10] sm:$0xf]
        %v1253 = vld [vmem:[%s1247 + $0x14] sm:$0xf]
        %v1254 = vld [vmem:[%s1247 + $0x18] sm:$0xf]
        %v1255 = vld [vmem:[%s1247 + $0x1c] sm:$0xf]
        %v1256 = vld [vmem:[%s1247 + $0x20] sm:$0xf]
        %v1257 = vld [vmem:[%s1247 + $0x24] sm:$0xf]
        %v1258 = vld [vmem:[%s1247 + $0x28] sm:$0xf]
        %v1259 = vld [vmem:[%s1247 + $0x2c] sm:$0xf]
        %v1260 = vld [vmem:[%s1247 + $0x30] sm:$0xf]
        %v1261 = vld [vmem:[%s1247 + $0x34] sm:$0xf]
        %v1262 = vld [vmem:[%s1247 + $0x38] sm:$0xf]
        %v1263 = vld [vmem:[%s1247 + $0x3c] sm:$0xf]
        %v1280 = vunpack.c.l.b16 %v1248
        %v1281 = vunpack.c.l.b16 %v1249
        %v1282 = vunpack.c.l.b16 %v1250
        %v1283 = vunpack.c.l.b16 %v1251
        %v1284 = vunpack.c.l.b16 %v1252
        %v1285 = vunpack.c.l.b16 %v1253
        %v1286 = vunpack.c.l.b16 %v1254
        %v1287 = vunpack.c.l.b16 %v1255
        %v1288 = vunpack.c.l.b16 %v1256
        %v1289 = vunpack.c.l.b16 %v1257
        %v1290 = vunpack.c.l.b16 %v1258
        %v1291 = vunpack.c.l.b16 %v1259
        %v1292 = vunpack.c.l.b16 %v1260
        %v1293 = vunpack.c.l.b16 %v1261
        %v1294 = vunpack.c.l.b16 %v1262
        %v1295 = vunpack.c.l.b16 %v1263
        %v1296 = vpack.c.b16 %v1281, %v1280
        %v1297 = vpack.c.b16 %v1283, %v1282
        %v1298 = vpack.c.b16 %v1285, %v1284
        %v1299 = vpack.c.b16 %v1287, %v1286
        %v1300 = vpack.c.b16 %v1289, %v1288
        %v1301 = vpack.c.b16 %v1291, %v1290
        %v1302 = vpack.c.b16 %v1293, %v1292
        %v1303 = vpack.c.b16 %v1295, %v1294
        %1312 = vmatprep.subr.bf16.mxu0 0
        %1313 = vmatpush1.bf16.msra.mxu0 %v1296
        %1314 = vmatprep.subr.bf16.mxu0 0
        %1315 = vmatpush1.bf16.msra.mxu0 %v1297
        %1316 = vmatprep.subr.bf16.mxu0 0
        %1317 = vmatpush1.bf16.msra.mxu0 %v1298
        %1318 = vmatprep.subr.bf16.mxu0 0
        %1319 = vmatpush1.bf16.msra.mxu0 %v1299
        %1320 = vmatprep.subr.bf16.mxu0 0
        %1321 = vmatpush1.bf16.msra.mxu0 %v1300
        %1322 = vmatprep.subr.bf16.mxu0 0
        %1323 = vmatpush1.bf16.msra.mxu0 %v1301
        %1324 = vmatprep.subr.bf16.mxu0 0
        %1325 = vmatpush1.bf16.msra.mxu0 %v1302
        %1326 = vmatprep.subr.bf16.mxu0 0
        %1327 = vmatpush1.bf16.msra.mxu0 %v1303
        %1328 = vmatprep.subr.bf16.mxu0 0
        %1329 = vmatpush1.bf16.msra.mxu0 0
        %1330 = vmatprep.subr.bf16.mxu0 0
        %1331 = vmatpush1.bf16.msra.mxu0 0
        %1332 = vmatprep.subr.bf16.mxu0 0
        %1333 = vmatpush1.bf16.msra.mxu0 0
        %1334 = vmatprep.subr.bf16.mxu0 0
        %1335 = vmatpush1.bf16.msra.mxu0 0
        %1336 = vmatprep.subr.bf16.mxu0 0
        %1337 = vmatpush1.bf16.msra.mxu0 0
        %1338 = vmatprep.subr.bf16.mxu0 0
        %1339 = vmatpush1.bf16.msra.mxu0 0
        %1340 = vmatprep.subr.bf16.mxu0 0
        %1341 = vmatpush1.bf16.msra.mxu0 0
        %1342 = vmatprep.subr.bf16.mxu0 0
        %1343 = vmatpush1.bf16.msra.mxu0 0
        %1344 = vmatprep.mubr.bf16.mxu0 0
        %1345 = vmatmul.mubr.bf16.gmra.mrb[0].mxu0 %v1245
        %v1346 = vpop.f32.mrb[0].mxu0
        %v1347 = vadd.f32 0.0, %v1346
        %v1348 = vpop.f32.mrb[0].mxu0
        %v1349 = vpop.f32.mrb[0].mxu0
        %v1350 = vadd.f32 0.0, %v1349
        %v1351 = vpop.f32.mrb[0].mxu0
        %1352 = vmatprep.mubr.bf16.mxu0 0
        %1353 = vmatmul.mubr.bf16.gmra.mrb[0].mxu0 %v1246
        %v1354 = vpop.f32.mrb[0].mxu0
        %v1355 = vadd.f32 0.0, %v1354
        %v1356 = vpop.f32.mrb[0].mxu0
        %v1357 = vpop.f32.mrb[0].mxu0
        %v1358 = vadd.f32 0.0, %v1357
        %v1359 = vpop.f32.mrb[0].mxu0
        %1360 = vdwg.mxu0
        %v1377 = vunpack.c.l.b16 %v1225
        %v1378 = vunpack.c.l.b16 %v1226
        %v1379 = vunpack.c.l.b16 %v1227
        %v1380 = vunpack.c.l.b16 %v1228
        %v1381 = vunpack.c.l.b16 %v1229
        %v1382 = vunpack.c.l.b16 %v1230
        %v1383 = vunpack.c.l.b16 %v1231
        %v1384 = vunpack.c.l.b16 %v1232
        %v1385 = vunpack.c.l.b16 %v1233
        %v1386 = vunpack.c.l.b16 %v1234
        %v1387 = vunpack.c.l.b16 %v1235
        %v1388 = vunpack.c.l.b16 %v1236
        %v1389 = vunpack.c.l.b16 %v1237
        %v1390 = vunpack.c.l.b16 %v1238
        %v1391 = vunpack.c.l.b16 %v1239
        %v1392 = vunpack.c.l.b16 %v1240
        %v1393 = vpack.c.b16 %v1378, %v1377
        %v1394 = vpack.c.b16 %v1380, %v1379
        %v1395 = vpack.c.b16 %v1382, %v1381
        %v1396 = vpack.c.b16 %v1384, %v1383
        %v1397 = vpack.c.b16 %v1386, %v1385
        %v1398 = vpack.c.b16 %v1388, %v1387
        %v1399 = vpack.c.b16 %v1390, %v1389
        %v1400 = vpack.c.b16 %v1392, %v1391
        %1409 = vmatprep.subr.bf16.mxu0 0
        %1410 = vmatpush1.bf16.msra.mxu0 %v1393
        %1411 = vmatprep.subr.bf16.mxu0 0
        %1412 = vmatpush1.bf16.msra.mxu0 %v1394
        %1413 = vmatprep.subr.bf16.mxu0 0
        %1414 = vmatpush1.bf16.msra.mxu0 %v1395
        %1415 = vmatprep.subr.bf16.mxu0 0
        %1416 = vmatpush1.bf16.msra.mxu0 %v1396
        %1417 = vmatprep.subr.bf16.mxu0 0
        %1418 = vmatpush1.bf16.msra.mxu0 %v1397
        %1419 = vmatprep.subr.bf16.mxu0 0
        %1420 = vmatpush1.bf16.msra.mxu0 %v1398
        %1421 = vmatprep.subr.bf16.mxu0 0
        %1422 = vmatpush1.bf16.msra.mxu0 %v1399
        %1423 = vmatprep.subr.bf16.mxu0 0
        %1424 = vmatpush1.bf16.msra.mxu0 %v1400
        %1425 = vmatprep.subr.bf16.mxu0 0
        %1426 = vmatpush1.bf16.msra.mxu0 0
        %1427 = vmatprep.subr.bf16.mxu0 0
        %1428 = vmatpush1.bf16.msra.mxu0 0
        %1429 = vmatprep.subr.bf16.mxu0 0
        %1430 = vmatpush1.bf16.msra.mxu0 0
        %1431 = vmatprep.subr.bf16.mxu0 0
        %1432 = vmatpush1.bf16.msra.mxu0 0
        %1433 = vmatprep.subr.bf16.mxu0 0
        %1434 = vmatpush1.bf16.msra.mxu0 0
        %1435 = vmatprep.subr.bf16.mxu0 0
        %1436 = vmatpush1.bf16.msra.mxu0 0
        %1437 = vmatprep.subr.bf16.mxu0 0
        %1438 = vmatpush1.bf16.msra.mxu0 0
        %1439 = vmatprep.subr.bf16.mxu0 0
        %1440 = vmatpush1.bf16.msra.mxu0 0
        %1441 = vmatprep.mubr.bf16.mxu0 0
        %1442 = vmatmul.mubr.bf16.gmra.mrb[0].mxu0 %v1223
        %v1443 = vpop.f32.mrb[0].mxu0
        %v1444 = vadd.f32 %v1347, %v1443
        %v1445 = vpop.f32.mrb[0].mxu0
        %v1446 = vpop.f32.mrb[0].mxu0
        %v1447 = vadd.f32 %v1350, %v1446
        %v1448 = vpop.f32.mrb[0].mxu0
        %1449 = vmatprep.mubr.bf16.mxu0 0
        %1450 = vmatmul.mubr.bf16.gmra.mrb[0].mxu0 %v1224
        %v1451 = vpop.f32.mrb[0].mxu0
        %v1452 = vadd.f32 %v1355, %v1451
        %v1453 = vpop.f32.mrb[0].mxu0
        %v1454 = vpop.f32.mrb[0].mxu0
        %v1455 = vadd.f32 %v1358, %v1454
        %v1456 = vpop.f32.mrb[0].mxu0
        %1457 = vdwg.mxu0
        %v1458 = vld [vmem:[#allocation4 + $0x2] sm:$0xff]
        %v1459 = vld [vmem:[#allocation4 + $0xa] sm:$0xff]
        %v1460 = vld [vmem:[#allocation4 + $0x12] sm:$0xff]
        %v1461 = vld [vmem:[#allocation4 + $0x1a] sm:$0xff]
        %v1462 = vpack.c.bf16 %v1459, %v1458
        %v1463 = vpack.c.bf16 %v1461, %v1460
        %s1464 = scalar_lea.vmem [#allocation10], 128
        %v1465 = vld [vmem:[%s1464] sm:$0xf]
        %v1466 = vld [vmem:[%s1464 + $0x4] sm:$0xf]
        %v1467 = vld [vmem:[%s1464 + $0x8] sm:$0xf]
        %v1468 = vld [vmem:[%s1464 + $0xc] sm:$0xf]
        %v1469 = vld [vmem:[%s1464 + $0x10] sm:$0xf]
        %v1470 = vld [vmem:[%s1464 + $0x14] sm:$0xf]
        %v1471 = vld [vmem:[%s1464 + $0x18] sm:$0xf]
        %v1472 = vld [vmem:[%s1464 + $0x1c] sm:$0xf]
        %v1473 = vld [vmem:[%s1464 + $0x20] sm:$0xf]
        %v1474 = vld [vmem:[%s1464 + $0x24] sm:$0xf]
        %v1475 = vld [vmem:[%s1464 + $0x28] sm:$0xf]
        %v1476 = vld [vmem:[%s1464 + $0x2c] sm:$0xf]
        %v1477 = vld [vmem:[%s1464 + $0x30] sm:$0xf]
        %v1478 = vld [vmem:[%s1464 + $0x34] sm:$0xf]
        %v1479 = vld [vmem:[%s1464 + $0x38] sm:$0xf]
        %v1480 = vld [vmem:[%s1464 + $0x3c] sm:$0xf]
        %v1497 = vunpack.c.l.b16 %v1465
        %v1498 = vunpack.c.l.b16 %v1466
        %v1499 = vunpack.c.l.b16 %v1467
        %v1500 = vunpack.c.l.b16 %v1468
        %v1501 = vunpack.c.l.b16 %v1469
        %v1502 = vunpack.c.l.b16 %v1470
        %v1503 = vunpack.c.l.b16 %v1471
        %v1504 = vunpack.c.l.b16 %v1472
        %v1505 = vunpack.c.l.b16 %v1473
        %v1506 = vunpack.c.l.b16 %v1474
        %v1507 = vunpack.c.l.b16 %v1475
        %v1508 = vunpack.c.l.b16 %v1476
        %v1509 = vunpack.c.l.b16 %v1477
        %v1510 = vunpack.c.l.b16 %v1478
        %v1511 = vunpack.c.l.b16 %v1479
        %v1512 = vunpack.c.l.b16 %v1480
        %v1513 = vpack.c.b16 %v1498, %v1497
        %v1514 = vpack.c.b16 %v1500, %v1499
        %v1515 = vpack.c.b16 %v1502, %v1501
        %v1516 = vpack.c.b16 %v1504, %v1503
        %v1517 = vpack.c.b16 %v1506, %v1505
        %v1518 = vpack.c.b16 %v1508, %v1507
        %v1519 = vpack.c.b16 %v1510, %v1509
        %v1520 = vpack.c.b16 %v1512, %v1511
        %1529 = vmatprep.subr.bf16.mxu0 0
        %1530 = vmatpush1.bf16.msra.mxu0 %v1513
        %1531 = vmatprep.subr.bf16.mxu0 0
        %1532 = vmatpush1.bf16.msra.mxu0 %v1514
        %1533 = vmatprep.subr.bf16.mxu0 0
        %1534 = vmatpush1.bf16.msra.mxu0 %v1515
        %1535 = vmatprep.subr.bf16.mxu0 0
        %1536 = vmatpush1.bf16.msra.mxu0 %v1516
        %1537 = vmatprep.subr.bf16.mxu0 0
        %1538 = vmatpush1.bf16.msra.mxu0 %v1517
        %1539 = vmatprep.subr.bf16.mxu0 0
        %1540 = vmatpush1.bf16.msra.mxu0 %v1518
        %1541 = vmatprep.subr.bf16.mxu0 0
        %1542 = vmatpush1.bf16.msra.mxu0 %v1519
        %1543 = vmatprep.subr.bf16.mxu0 0
        %1544 = vmatpush1.bf16.msra.mxu0 %v1520
        %1545 = vmatprep.subr.bf16.mxu0 0
        %1546 = vmatpush1.bf16.msra.mxu0 0
        %1547 = vmatprep.subr.bf16.mxu0 0
        %1548 = vmatpush1.bf16.msra.mxu0 0
        %1549 = vmatprep.subr.bf16.mxu0 0
        %1550 = vmatpush1.bf16.msra.mxu0 0
        %1551 = vmatprep.subr.bf16.mxu0 0
        %1552 = vmatpush1.bf16.msra.mxu0 0
        %1553 = vmatprep.subr.bf16.mxu0 0
        %1554 = vmatpush1.bf16.msra.mxu0 0
        %1555 = vmatprep.subr.bf16.mxu0 0
        %1556 = vmatpush1.bf16.msra.mxu0 0
        %1557 = vmatprep.subr.bf16.mxu0 0
        %1558 = vmatpush1.bf16.msra.mxu0 0
        %1559 = vmatprep.subr.bf16.mxu0 0
        %1560 = vmatpush1.bf16.msra.mxu0 0
        %1561 = vmatprep.mubr.bf16.mxu0 0
        %1562 = vmatmul.mubr.bf16.gmra.mrb[0].mxu0 %v1462
        %v1563 = vpop.f32.mrb[0].mxu0
        %v1564 = vadd.f32 0.0, %v1563
        %v1565 = vpop.f32.mrb[0].mxu0
        %v1566 = vpop.f32.mrb[0].mxu0
        %v1567 = vadd.f32 0.0, %v1566
        %v1568 = vpop.f32.mrb[0].mxu0
        %1569 = vmatprep.mubr.bf16.mxu0 0
        %1570 = vmatmul.mubr.bf16.gmra.mrb[0].mxu0 %v1463
        %v1571 = vpop.f32.mrb[0].mxu0
        %v1572 = vadd.f32 0.0, %v1571
        %v1573 = vpop.f32.mrb[0].mxu0
        %v1574 = vpop.f32.mrb[0].mxu0
        %v1575 = vadd.f32 0.0, %v1574
        %v1576 = vpop.f32.mrb[0].mxu0
        %1577 = vdwg.mxu0
        %v1578 = vadd.f32 %v1444, %v1564
        %v1579 = vadd.f32 %v1447, %v1567
        %v1580 = vadd.f32 %v1452, %v1572
        %v1581 = vadd.f32 %v1455, %v1575
        %v1582 = vld [vmem:[%s8] sm:$0x1]
        %v1584 = vlaneseq
        %v1585 = vshrl.u32 %v1584, 7
        %v1586 = vsub.s32 0, %v1585
        %v1587 = vrot.slane %v1582, %v1586
        %v1589 = vadd.f32 %v1578, %v1587
        %v1590 = vadd.f32 %v1579, %v1587
        %v1591 = vadd.f32 %v1580, %v1587
        %v1592 = vadd.f32 %v1581, %v1587
        %v1593 = vmax.f32 %v1589, 0.0
        %v1594 = vmax.f32 %v1590, 0.0
        %v1595 = vmax.f32 %v1591, 0.0
        %v1596 = vmax.f32 %v1592, 0.0
        %v1597 = vld [vmem:[%s9] sm:$0xf]
        %v1598 = vld [vmem:[%s9 + $0x4] sm:$0xf]
        %v1599 = vld [vmem:[%s9 + $0x8] sm:$0xf]
        %v1600 = vld [vmem:[%s9 + $0xc] sm:$0xf]
        %v1601 = vld [vmem:[%s9 + $0x10] sm:$0xf]
        %v1602 = vld [vmem:[%s9 + $0x14] sm:$0xf]
        %v1603 = vld [vmem:[%s9 + $0x18] sm:$0xf]
        %v1604 = vld [vmem:[%s9 + $0x1c] sm:$0xf]
        %v1605 = vpack.c.bf16 %v1594, %v1593
        %v1606 = vpack.c.bf16 %v1596, %v1595
        %v1615 = vunpack.c.l.b16 %v1597
        %v1616 = vunpack.c.l.b16 %v1598
        %v1617 = vunpack.c.l.b16 %v1599
        %v1618 = vunpack.c.l.b16 %v1600
        %v1619 = vunpack.c.l.b16 %v1601
        %v1620 = vunpack.c.l.b16 %v1602
        %v1621 = vunpack.c.l.b16 %v1603
        %v1622 = vunpack.c.l.b16 %v1604
        %v1623 = vpack.c.b16 %v1616, %v1615
        %v1624 = vpack.c.b16 %v1618, %v1617
        %v1625 = vpack.c.b16 %v1620, %v1619
        %v1626 = vpack.c.b16 %v1622, %v1621
        %vm1627 = vcmask 261120
        %v1629 = vsel %vm1627, %v1623, 0
        %v1632 = vsel %vm1627, %v1624, 0
        %v1635 = vsel %vm1627, %v1625, 0
        %v1638 = vsel %vm1627, %v1626, 0
        %1640 = vmatprep.subr.bf16.mxu0 0
        %1641 = vmatpush1.bf16.msra.mxu0 %v1605
        %1642 = vmatprep.subr.bf16.mxu0 0
        %1643 = vmatpush1.bf16.msra.mxu0 %v1606
        %1644 = vmatprep.subr.bf16.mxu0 0
        %1645 = vmatpush1.bf16.msra.mxu0 0
        %1646 = vmatprep.subr.bf16.mxu0 0
        %1647 = vmatpush1.bf16.msra.mxu0 0
        %1648 = vmatprep.subr.bf16.mxu0 0
        %1649 = vmatpush1.bf16.msra.mxu0 0
        %1650 = vmatprep.subr.bf16.mxu0 0
        %1651 = vmatpush1.bf16.msra.mxu0 0
        %1652 = vmatprep.subr.bf16.mxu0 0
        %1653 = vmatpush1.bf16.msra.mxu0 0
        %1654 = vmatprep.subr.bf16.mxu0 0
        %1655 = vmatpush1.bf16.msra.mxu0 0
        %1656 = vmatprep.subr.bf16.mxu0 0
        %1657 = vmatpush1.bf16.msra.mxu0 0
        %1658 = vmatprep.subr.bf16.mxu0 0
        %1659 = vmatpush1.bf16.msra.mxu0 0
        %1660 = vmatprep.subr.bf16.mxu0 0
        %1661 = vmatpush1.bf16.msra.mxu0 0
        %1662 = vmatprep.subr.bf16.mxu0 0
        %1663 = vmatpush1.bf16.msra.mxu0 0
        %1664 = vmatprep.subr.bf16.mxu0 0
        %1665 = vmatpush1.bf16.msra.mxu0 0
        %1666 = vmatprep.subr.bf16.mxu0 0
        %1667 = vmatpush1.bf16.msra.mxu0 0
        %1668 = vmatprep.subr.bf16.mxu0 0
        %1669 = vmatpush1.bf16.msra.mxu0 0
        %1670 = vmatprep.subr.bf16.mxu0 0
        %1671 = vmatpush1.bf16.msra.mxu0 0
        %1672 = vmatprep.mubr.bf16.mxu0 0
        %1673 = vmatmul.mubr.bf16.gmra.mrb[0].mxu0 %v1629
        %v1674 = vpop.f32.mrb[0].mxu0
        %v1675 = vadd.f32 0.0, %v1674
        %v1676 = vpop.f32.mrb[0].mxu0
        %v1677 = vpop.f32.mrb[0].mxu0
        %v1678 = vadd.f32 0.0, %v1677
        %v1679 = vpop.f32.mrb[0].mxu0
        %1680 = vmatprep.mubr.bf16.mxu0 0
        %1681 = vmatmul.mubr.bf16.gmra.mrb[0].mxu0 %v1632
        %v1682 = vpop.f32.mrb[0].mxu0
        %v1683 = vadd.f32 0.0, %v1682
        %v1684 = vpop.f32.mrb[0].mxu0
        %v1685 = vpop.f32.mrb[0].mxu0
        %v1686 = vadd.f32 0.0, %v1685
        %v1687 = vpop.f32.mrb[0].mxu0
        %1688 = vmatprep.mubr.bf16.mxu0 0
        %1689 = vmatmul.mubr.bf16.gmra.mrb[0].mxu0 %v1635
        %v1690 = vpop.f32.mrb[0].mxu0
        %v1691 = vadd.f32 0.0, %v1690
        %v1692 = vpop.f32.mrb[0].mxu0
        %v1693 = vpop.f32.mrb[0].mxu0
        %v1694 = vadd.f32 0.0, %v1693
        %v1695 = vpop.f32.mrb[0].mxu0
        %1696 = vmatprep.mubr.bf16.mxu0 0
        %1697 = vmatmul.mubr.bf16.gmra.mrb[0].mxu0 %v1638
        %v1698 = vpop.f32.mrb[0].mxu0
        %v1699 = vadd.f32 0.0, %v1698
        %v1700 = vpop.f32.mrb[0].mxu0
        %v1701 = vpop.f32.mrb[0].mxu0
        %v1702 = vadd.f32 0.0, %v1701
        %v1703 = vpop.f32.mrb[0].mxu0
        %1704 = vdwg.mxu0
        %1705 = vst [vmem:[#allocation5] sm:$0x1] 0.0
        %1706 = vst [vmem:[#allocation5 + $0x41] sm:$0x1] 0.0
        %1707 = vst [vmem:[#allocation5 + $0x1] sm:$0xff] %v1675
        %1708 = vst [vmem:[#allocation5 + $0x9] sm:$0xff] %v1678
        %1709 = vst [vmem:[#allocation5 + $0x11] sm:$0xff] %v1683
        %1710 = vst [vmem:[#allocation5 + $0x19] sm:$0xff] %v1686
        %1711 = vst [vmem:[#allocation5 + $0x21] sm:$0xff] %v1691
        %1712 = vst [vmem:[#allocation5 + $0x29] sm:$0xff] %v1694
        %1713 = vst [vmem:[#allocation5 + $0x31] sm:$0xff] %v1699
        %1714 = vst [vmem:[#allocation5 + $0x39] sm:$0xff] %v1702
        %v1715 = vld [vmem:[#allocation5] sm:$0xff]
        %v1716 = vld [vmem:[#allocation5 + $0x8] sm:$0xff]
        %v1717 = vld [vmem:[#allocation5 + $0x10] sm:$0xff]
        %v1718 = vld [vmem:[#allocation5 + $0x18] sm:$0xff]
        %v1719 = vld [vmem:[#allocation5 + $0x20] sm:$0xff]
        %v1720 = vld [vmem:[#allocation5 + $0x28] sm:$0xff]
        %v1721 = vld [vmem:[#allocation5 + $0x30] sm:$0xff]
        %v1722 = vld [vmem:[#allocation5 + $0x38] sm:$0xff]
        %v1723 = vpack.c.bf16 %v1716, %v1715
        %v1724 = vpack.c.bf16 %v1718, %v1717
        %v1725 = vpack.c.bf16 %v1720, %v1719
        %v1726 = vpack.c.bf16 %v1722, %v1721
        %v1727 = vld [vmem:[%s10] sm:$0xff]
        %v1728 = vld [vmem:[%s10 + $0x8] sm:$0xff]
        %v1729 = vld [vmem:[%s10 + $0x10] sm:$0xff]
        %v1730 = vld [vmem:[%s10 + $0x18] sm:$0xff]
        %v1731 = vld [vmem:[%s10 + $0x20] sm:$0xff]
        %v1732 = vld [vmem:[%s10 + $0x28] sm:$0xff]
        %v1733 = vld [vmem:[%s10 + $0x30] sm:$0xff]
        %v1734 = vld [vmem:[%s10 + $0x38] sm:$0xff]
        %v1735 = vld [vmem:[%s10 + $0x40] sm:$0xff]
        %v1736 = vld [vmem:[%s10 + $0x48] sm:$0xff]
        %v1737 = vld [vmem:[%s10 + $0x50] sm:$0xff]
        %v1738 = vld [vmem:[%s10 + $0x58] sm:$0xff]
        %v1739 = vld [vmem:[%s10 + $0x60] sm:$0xff]
        %v1740 = vld [vmem:[%s10 + $0x68] sm:$0xff]
        %v1741 = vld [vmem:[%s10 + $0x70] sm:$0xff]
        %v1742 = vld [vmem:[%s10 + $0x78] sm:$0xff]
        %v1743 = vld [vmem:[#allocation5 + $0x1] sm:$0xff]
        %v1744 = vld [vmem:[#allocation5 + $0x9] sm:$0xff]
        %v1745 = vld [vmem:[#allocation5 + $0x11] sm:$0xff]
        %v1746 = vld [vmem:[#allocation5 + $0x19] sm:$0xff]
        %v1747 = vld [vmem:[#allocation5 + $0x21] sm:$0xff]
        %v1748 = vld [vmem:[#allocation5 + $0x29] sm:$0xff]
        %v1749 = vld [vmem:[#allocation5 + $0x31] sm:$0xff]
        %v1750 = vld [vmem:[#allocation5 + $0x39] sm:$0xff]
        %v1751 = vpack.c.bf16 %v1744, %v1743
        %v1752 = vpack.c.bf16 %v1746, %v1745
        %v1753 = vpack.c.bf16 %v1748, %v1747
        %v1754 = vpack.c.bf16 %v1750, %v1749
        %s1755 = scalar_lea.vmem %s10, 128
        %v1756 = vld [vmem:[%s1755] sm:$0xff]
        %v1757 = vld [vmem:[%s1755 + $0x8] sm:$0xff]
        %v1758 = vld [vmem:[%s1755 + $0x10] sm:$0xff]
        %v1759 = vld [vmem:[%s1755 + $0x18] sm:$0xff]
        %v1760 = vld [vmem:[%s1755 + $0x20] sm:$0xff]
        %v1761 = vld [vmem:[%s1755 + $0x28] sm:$0xff]
        %v1762 = vld [vmem:[%s1755 + $0x30] sm:$0xff]
        %v1763 = vld [vmem:[%s1755 + $0x38] sm:$0xff]
        %v1764 = vld [vmem:[%s1755 + $0x40] sm:$0xff]
        %v1765 = vld [vmem:[%s1755 + $0x48] sm:$0xff]
        %v1766 = vld [vmem:[%s1755 + $0x50] sm:$0xff]
        %v1767 = vld [vmem:[%s1755 + $0x58] sm:$0xff]
        %v1768 = vld [vmem:[%s1755 + $0x60] sm:$0xff]
        %v1769 = vld [vmem:[%s1755 + $0x68] sm:$0xff]
        %v1770 = vld [vmem:[%s1755 + $0x70] sm:$0xff]
        %v1771 = vld [vmem:[%s1755 + $0x78] sm:$0xff]
        %v1788 = vunpack.c.l.b16 %v1756
        %v1789 = vunpack.c.h.b16 %v1756
        %v1790 = vunpack.c.l.b16 %v1757
        %v1791 = vunpack.c.h.b16 %v1757
        %v1792 = vunpack.c.l.b16 %v1758
        %v1793 = vunpack.c.h.b16 %v1758
        %v1794 = vunpack.c.l.b16 %v1759
        %v1795 = vunpack.c.h.b16 %v1759
        %v1796 = vunpack.c.l.b16 %v1760
        %v1797 = vunpack.c.h.b16 %v1760
        %v1798 = vunpack.c.l.b16 %v1761
        %v1799 = vunpack.c.h.b16 %v1761
        %v1800 = vunpack.c.l.b16 %v1762
        %v1801 = vunpack.c.h.b16 %v1762
        %v1802 = vunpack.c.l.b16 %v1763
        %v1803 = vunpack.c.h.b16 %v1763
        %v1804 = vunpack.c.l.b16 %v1764
        %v1805 = vunpack.c.h.b16 %v1764
        %v1806 = vunpack.c.l.b16 %v1765
        %v1807 = vunpack.c.h.b16 %v1765
        %v1808 = vunpack.c.l.b16 %v1766
        %v1809 = vunpack.c.h.b16 %v1766
        %v1810 = vunpack.c.l.b16 %v1767
        %v1811 = vunpack.c.h.b16 %v1767
        %v1812 = vunpack.c.l.b16 %v1768
        %v1813 = vunpack.c.h.b16 %v1768
        %v1814 = vunpack.c.l.b16 %v1769
        %v1815 = vunpack.c.h.b16 %v1769
        %v1816 = vunpack.c.l.b16 %v1770
        %v1817 = vunpack.c.h.b16 %v1770
        %v1818 = vunpack.c.l.b16 %v1771
        %v1819 = vunpack.c.h.b16 %v1771
        %v1820 = vpack.c.b16 %v1790, %v1788
        %v1821 = vpack.c.b16 %v1791, %v1789
        %v1822 = vpack.c.b16 %v1794, %v1792
        %v1823 = vpack.c.b16 %v1795, %v1793
        %v1824 = vpack.c.b16 %v1798, %v1796
        %v1825 = vpack.c.b16 %v1799, %v1797
        %v1826 = vpack.c.b16 %v1802, %v1800
        %v1827 = vpack.c.b16 %v1803, %v1801
        %v1828 = vpack.c.b16 %v1806, %v1804
        %v1829 = vpack.c.b16 %v1807, %v1805
        %v1830 = vpack.c.b16 %v1810, %v1808
        %v1831 = vpack.c.b16 %v1811, %v1809
        %v1832 = vpack.c.b16 %v1814, %v1812
        %v1833 = vpack.c.b16 %v1815, %v1813
        %v1834 = vpack.c.b16 %v1818, %v1816
        %v1835 = vpack.c.b16 %v1819, %v1817
        %1852 = vmatprep.subr.bf16.mxu0 %v1821
        %1853 = vmatpush1.bf16.msra.mxu0 %v1820
        %1854 = vmatprep.subr.bf16.mxu0 %v1823
        %1855 = vmatpush1.bf16.msra.mxu0 %v1822
        %1856 = vmatprep.subr.bf16.mxu0 %v1825
        %1857 = vmatpush1.bf16.msra.mxu0 %v1824
        %1858 = vmatprep.subr.bf16.mxu0 %v1827
        %1859 = vmatpush1.bf16.msra.mxu0 %v1826
        %1860 = vmatprep.subr.bf16.mxu0 %v1829
        %1861 = vmatpush1.bf16.msra.mxu0 %v1828
        %1862 = vmatprep.subr.bf16.mxu0 %v1831
        %1863 = vmatpush1.bf16.msra.mxu0 %v1830
        %1864 = vmatprep.subr.bf16.mxu0 %v1833
        %1865 = vmatpush1.bf16.msra.mxu0 %v1832
        %1866 = vmatprep.subr.bf16.mxu0 %v1835
        %1867 = vmatpush1.bf16.msra.mxu0 %v1834
        %1868 = vmatprep.subr.bf16.mxu0 0
        %1869 = vmatpush1.bf16.msra.mxu0 0
        %1870 = vmatprep.subr.bf16.mxu0 0
        %1871 = vmatpush1.bf16.msra.mxu0 0
        %1872 = vmatprep.subr.bf16.mxu0 0
        %1873 = vmatpush1.bf16.msra.mxu0 0
        %1874 = vmatprep.subr.bf16.mxu0 0
        %1875 = vmatpush1.bf16.msra.mxu0 0
        %1876 = vmatprep.subr.bf16.mxu0 0
        %1877 = vmatpush1.bf16.msra.mxu0 0
        %1878 = vmatprep.subr.bf16.mxu0 0
        %1879 = vmatpush1.bf16.msra.mxu0 0
        %1880 = vmatprep.subr.bf16.mxu0 0
        %1881 = vmatpush1.bf16.msra.mxu0 0
        %1882 = vmatprep.subr.bf16.mxu0 0
        %1883 = vmatpush1.bf16.msra.mxu0 0
        %1884 = vmatprep.mubr.bf16.mxu0 0
        %1885 = vmatmul.mubr.bf16.gmra.mrb[0].mxu0 %v1751
        %v1886 = vpop.f32.mrb[0].mxu0
        %v1887 = vadd.f32 0.0, %v1886
        %v1888 = vpop.f32.mrb[0].mxu0
        %v1889 = vadd.f32 0.0, %v1888
        %v1890 = vpop.f32.mrb[0].mxu0
        %v1891 = vadd.f32 0.0, %v1890
        %v1892 = vpop.f32.mrb[0].mxu0
        %v1893 = vadd.f32 0.0, %v1892
        %1894 = vmatprep.mubr.bf16.mxu0 0
        %1895 = vmatmul.mubr.bf16.gmra.mrb[0].mxu0 %v1752
        %v1896 = vpop.f32.mrb[0].mxu0
        %v1897 = vadd.f32 0.0, %v1896
        %v1898 = vpop.f32.mrb[0].mxu0
        %v1899 = vadd.f32 0.0, %v1898
        %v1900 = vpop.f32.mrb[0].mxu0
        %v1901 = vadd.f32 0.0, %v1900
        %v1902 = vpop.f32.mrb[0].mxu0
        %v1903 = vadd.f32 0.0, %v1902
        %1904 = vmatprep.mubr.bf16.mxu0 0
        %1905 = vmatmul.mubr.bf16.gmra.mrb[0].mxu0 %v1753
        %v1906 = vpop.f32.mrb[0].mxu0
        %v1907 = vadd.f32 0.0, %v1906
        %v1908 = vpop.f32.mrb[0].mxu0
        %v1909 = vadd.f32 0.0, %v1908
        %v1910 = vpop.f32.mrb[0].mxu0
        %v1911 = vadd.f32 0.0, %v1910
        %v1912 = vpop.f32.mrb[0].mxu0
        %v1913 = vadd.f32 0.0, %v1912
        %1914 = vmatprep.mubr.bf16.mxu0 0
        %1915 = vmatmul.mubr.bf16.gmra.mrb[0].mxu0 %v1754
        %v1916 = vpop.f32.mrb[0].mxu0
        %v1917 = vadd.f32 0.0, %v1916
        %v1918 = vpop.f32.mrb[0].mxu0
        %v1919 = vadd.f32 0.0, %v1918
        %v1920 = vpop.f32.mrb[0].mxu0
        %v1921 = vadd.f32 0.0, %v1920
        %v1922 = vpop.f32.mrb[0].mxu0
        %v1923 = vadd.f32 0.0, %v1922
        %1924 = vdwg.mxu0
        %v1941 = vunpack.c.l.b16 %v1727
        %v1942 = vunpack.c.h.b16 %v1727
        %v1943 = vunpack.c.l.b16 %v1728
        %v1944 = vunpack.c.h.b16 %v1728
        %v1945 = vunpack.c.l.b16 %v1729
        %v1946 = vunpack.c.h.b16 %v1729
        %v1947 = vunpack.c.l.b16 %v1730
        %v1948 = vunpack.c.h.b16 %v1730
        %v1949 = vunpack.c.l.b16 %v1731
        %v1950 = vunpack.c.h.b16 %v1731
        %v1951 = vunpack.c.l.b16 %v1732
        %v1952 = vunpack.c.h.b16 %v1732
        %v1953 = vunpack.c.l.b16 %v1733
        %v1954 = vunpack.c.h.b16 %v1733
        %v1955 = vunpack.c.l.b16 %v1734
        %v1956 = vunpack.c.h.b16 %v1734
        %v1957 = vunpack.c.l.b16 %v1735
        %v1958 = vunpack.c.h.b16 %v1735
        %v1959 = vunpack.c.l.b16 %v1736
        %v1960 = vunpack.c.h.b16 %v1736
        %v1961 = vunpack.c.l.b16 %v1737
        %v1962 = vunpack.c.h.b16 %v1737
        %v1963 = vunpack.c.l.b16 %v1738
        %v1964 = vunpack.c.h.b16 %v1738
        %v1965 = vunpack.c.l.b16 %v1739
        %v1966 = vunpack.c.h.b16 %v1739
        %v1967 = vunpack.c.l.b16 %v1740
        %v1968 = vunpack.c.h.b16 %v1740
        %v1969 = vunpack.c.l.b16 %v1741
        %v1970 = vunpack.c.h.b16 %v1741
        %v1971 = vunpack.c.l.b16 %v1742
        %v1972 = vunpack.c.h.b16 %v1742
        %v1973 = vpack.c.b16 %v1943, %v1941
        %v1974 = vpack.c.b16 %v1944, %v1942
        %v1975 = vpack.c.b16 %v1947, %v1945
        %v1976 = vpack.c.b16 %v1948, %v1946
        %v1977 = vpack.c.b16 %v1951, %v1949
        %v1978 = vpack.c.b16 %v1952, %v1950
        %v1979 = vpack.c.b16 %v1955, %v1953
        %v1980 = vpack.c.b16 %v1956, %v1954
        %v1981 = vpack.c.b16 %v1959, %v1957
        %v1982 = vpack.c.b16 %v1960, %v1958
        %v1983 = vpack.c.b16 %v1963, %v1961
        %v1984 = vpack.c.b16 %v1964, %v1962
        %v1985 = vpack.c.b16 %v1967, %v1965
        %v1986 = vpack.c.b16 %v1968, %v1966
        %v1987 = vpack.c.b16 %v1971, %v1969
        %v1988 = vpack.c.b16 %v1972, %v1970
        %2005 = vmatprep.subr.bf16.mxu0 %v1974
        %2006 = vmatpush1.bf16.msra.mxu0 %v1973
        %2007 = vmatprep.subr.bf16.mxu0 %v1976
        %2008 = vmatpush1.bf16.msra.mxu0 %v1975
        %2009 = vmatprep.subr.bf16.mxu0 %v1978
        %2010 = vmatpush1.bf16.msra.mxu0 %v1977
        %2011 = vmatprep.subr.bf16.mxu0 %v1980
        %2012 = vmatpush1.bf16.msra.mxu0 %v1979
        %2013 = vmatprep.subr.bf16.mxu0 %v1982
        %2014 = vmatpush1.bf16.msra.mxu0 %v1981
        %2015 = vmatprep.subr.bf16.mxu0 %v1984
        %2016 = vmatpush1.bf16.msra.mxu0 %v1983
        %2017 = vmatprep.subr.bf16.mxu0 %v1986
        %2018 = vmatpush1.bf16.msra.mxu0 %v1985
        %2019 = vmatprep.subr.bf16.mxu0 %v1988
        %2020 = vmatpush1.bf16.msra.mxu0 %v1987
        %2021 = vmatprep.subr.bf16.mxu0 0
        %2022 = vmatpush1.bf16.msra.mxu0 0
        %2023 = vmatprep.subr.bf16.mxu0 0
        %2024 = vmatpush1.bf16.msra.mxu0 0
        %2025 = vmatprep.subr.bf16.mxu0 0
        %2026 = vmatpush1.bf16.msra.mxu0 0
        %2027 = vmatprep.subr.bf16.mxu0 0
        %2028 = vmatpush1.bf16.msra.mxu0 0
        %2029 = vmatprep.subr.bf16.mxu0 0
        %2030 = vmatpush1.bf16.msra.mxu0 0
        %2031 = vmatprep.subr.bf16.mxu0 0
        %2032 = vmatpush1.bf16.msra.mxu0 0
        %2033 = vmatprep.subr.bf16.mxu0 0
        %2034 = vmatpush1.bf16.msra.mxu0 0
        %2035 = vmatprep.subr.bf16.mxu0 0
        %2036 = vmatpush1.bf16.msra.mxu0 0
        %2037 = vmatprep.mubr.bf16.mxu0 0
        %2038 = vmatmul.mubr.bf16.gmra.mrb[0].mxu0 %v1723
        %v2039 = vpop.f32.mrb[0].mxu0
        %v2040 = vadd.f32 %v1887, %v2039
        %v2041 = vpop.f32.mrb[0].mxu0
        %v2042 = vadd.f32 %v1889, %v2041
        %v2043 = vpop.f32.mrb[0].mxu0
        %v2044 = vadd.f32 %v1891, %v2043
        %v2045 = vpop.f32.mrb[0].mxu0
        %v2046 = vadd.f32 %v1893, %v2045
        %2047 = vmatprep.mubr.bf16.mxu0 0
        %2048 = vmatmul.mubr.bf16.gmra.mrb[0].mxu0 %v1724
        %v2049 = vpop.f32.mrb[0].mxu0
        %v2050 = vadd.f32 %v1897, %v2049
        %v2051 = vpop.f32.mrb[0].mxu0
        %v2052 = vadd.f32 %v1899, %v2051
        %v2053 = vpop.f32.mrb[0].mxu0
        %v2054 = vadd.f32 %v1901, %v2053
        %v2055 = vpop.f32.mrb[0].mxu0
        %v2056 = vadd.f32 %v1903, %v2055
        %2057 = vmatprep.mubr.bf16.mxu0 0
        %2058 = vmatmul.mubr.bf16.gmra.mrb[0].mxu0 %v1725
        %v2059 = vpop.f32.mrb[0].mxu0
        %v2060 = vadd.f32 %v1907, %v2059
        %v2061 = vpop.f32.mrb[0].mxu0
        %v2062 = vadd.f32 %v1909, %v2061
        %v2063 = vpop.f32.mrb[0].mxu0
        %v2064 = vadd.f32 %v1911, %v2063
        %v2065 = vpop.f32.mrb[0].mxu0
        %v2066 = vadd.f32 %v1913, %v2065
        %2067 = vmatprep.mubr.bf16.mxu0 0
        %2068 = vmatmul.mubr.bf16.gmra.mrb[0].mxu0 %v1726
        %v2069 = vpop.f32.mrb[0].mxu0
        %v2070 = vadd.f32 %v1917, %v2069
        %v2071 = vpop.f32.mrb[0].mxu0
        %v2072 = vadd.f32 %v1919, %v2071
        %v2073 = vpop.f32.mrb[0].mxu0
        %v2074 = vadd.f32 %v1921, %v2073
        %v2075 = vpop.f32.mrb[0].mxu0
        %v2076 = vadd.f32 %v1923, %v2075
        %2077 = vdwg.mxu0
        %v2078 = vld [vmem:[#allocation5 + $0x2] sm:$0xff]
        %v2079 = vld [vmem:[#allocation5 + $0xa] sm:$0xff]
        %v2080 = vld [vmem:[#allocation5 + $0x12] sm:$0xff]
        %v2081 = vld [vmem:[#allocation5 + $0x1a] sm:$0xff]
        %v2082 = vld [vmem:[#allocation5 + $0x22] sm:$0xff]
        %v2083 = vld [vmem:[#allocation5 + $0x2a] sm:$0xff]
        %v2084 = vld [vmem:[#allocation5 + $0x32] sm:$0xff]
        %v2085 = vld [vmem:[#allocation5 + $0x3a] sm:$0xff]
        %v2086 = vpack.c.bf16 %v2079, %v2078
        %v2087 = vpack.c.bf16 %v2081, %v2080
        %v2088 = vpack.c.bf16 %v2083, %v2082
        %v2089 = vpack.c.bf16 %v2085, %v2084
        %s2090 = scalar_lea.vmem %s10, 256
        %v2091 = vld [vmem:[%s2090] sm:$0xff]
        %v2092 = vld [vmem:[%s2090 + $0x8] sm:$0xff]
        %v2093 = vld [vmem:[%s2090 + $0x10] sm:$0xff]
        %v2094 = vld [vmem:[%s2090 + $0x18] sm:$0xff]
        %v2095 = vld [vmem:[%s2090 + $0x20] sm:$0xff]
        %v2096 = vld [vmem:[%s2090 + $0x28] sm:$0xff]
        %v2097 = vld [vmem:[%s2090 + $0x30] sm:$0xff]
        %v2098 = vld [vmem:[%s2090 + $0x38] sm:$0xff]
        %v2099 = vld [vmem:[%s2090 + $0x40] sm:$0xff]
        %v2100 = vld [vmem:[%s2090 + $0x48] sm:$0xff]
        %v2101 = vld [vmem:[%s2090 + $0x50] sm:$0xff]
        %v2102 = vld [vmem:[%s2090 + $0x58] sm:$0xff]
        %v2103 = vld [vmem:[%s2090 + $0x60] sm:$0xff]
        %v2104 = vld [vmem:[%s2090 + $0x68] sm:$0xff]
        %v2105 = vld [vmem:[%s2090 + $0x70] sm:$0xff]
        %v2106 = vld [vmem:[%s2090 + $0x78] sm:$0xff]
        %v2123 = vunpack.c.l.b16 %v2091
        %v2124 = vunpack.c.h.b16 %v2091
        %v2125 = vunpack.c.l.b16 %v2092
        %v2126 = vunpack.c.h.b16 %v2092
        %v2127 = vunpack.c.l.b16 %v2093
        %v2128 = vunpack.c.h.b16 %v2093
        %v2129 = vunpack.c.l.b16 %v2094
        %v2130 = vunpack.c.h.b16 %v2094
        %v2131 = vunpack.c.l.b16 %v2095
        %v2132 = vunpack.c.h.b16 %v2095
        %v2133 = vunpack.c.l.b16 %v2096
        %v2134 = vunpack.c.h.b16 %v2096
        %v2135 = vunpack.c.l.b16 %v2097
        %v2136 = vunpack.c.h.b16 %v2097
        %v2137 = vunpack.c.l.b16 %v2098
        %v2138 = vunpack.c.h.b16 %v2098
        %v2139 = vunpack.c.l.b16 %v2099
        %v2140 = vunpack.c.h.b16 %v2099
        %v2141 = vunpack.c.l.b16 %v2100
        %v2142 = vunpack.c.h.b16 %v2100
        %v2143 = vunpack.c.l.b16 %v2101
        %v2144 = vunpack.c.h.b16 %v2101
        %v2145 = vunpack.c.l.b16 %v2102
        %v2146 = vunpack.c.h.b16 %v2102
        %v2147 = vunpack.c.l.b16 %v2103
        %v2148 = vunpack.c.h.b16 %v2103
        %v2149 = vunpack.c.l.b16 %v2104
        %v2150 = vunpack.c.h.b16 %v2104
        %v2151 = vunpack.c.l.b16 %v2105
        %v2152 = vunpack.c.h.b16 %v2105
        %v2153 = vunpack.c.l.b16 %v2106
        %v2154 = vunpack.c.h.b16 %v2106
        %v2155 = vpack.c.b16 %v2125, %v2123
        %v2156 = vpack.c.b16 %v2126, %v2124
        %v2157 = vpack.c.b16 %v2129, %v2127
        %v2158 = vpack.c.b16 %v2130, %v2128
        %v2159 = vpack.c.b16 %v2133, %v2131
        %v2160 = vpack.c.b16 %v2134, %v2132
        %v2161 = vpack.c.b16 %v2137, %v2135
        %v2162 = vpack.c.b16 %v2138, %v2136
        %v2163 = vpack.c.b16 %v2141, %v2139
        %v2164 = vpack.c.b16 %v2142, %v2140
        %v2165 = vpack.c.b16 %v2145, %v2143
        %v2166 = vpack.c.b16 %v2146, %v2144
        %v2167 = vpack.c.b16 %v2149, %v2147
        %v2168 = vpack.c.b16 %v2150, %v2148
        %v2169 = vpack.c.b16 %v2153, %v2151
        %v2170 = vpack.c.b16 %v2154, %v2152
        %2187 = vmatprep.subr.bf16.mxu0 %v2156
        %2188 = vmatpush1.bf16.msra.mxu0 %v2155
        %2189 = vmatprep.subr.bf16.mxu0 %v2158
        %2190 = vmatpush1.bf16.msra.mxu0 %v2157
        %2191 = vmatprep.subr.bf16.mxu0 %v2160
        %2192 = vmatpush1.bf16.msra.mxu0 %v2159
        %2193 = vmatprep.subr.bf16.mxu0 %v2162
        %2194 = vmatpush1.bf16.msra.mxu0 %v2161
        %2195 = vmatprep.subr.bf16.mxu0 %v2164
        %2196 = vmatpush1.bf16.msra.mxu0 %v2163
        %2197 = vmatprep.subr.bf16.mxu0 %v2166
        %2198 = vmatpush1.bf16.msra.mxu0 %v2165
        %2199 = vmatprep.subr.bf16.mxu0 %v2168
        %2200 = vmatpush1.bf16.msra.mxu0 %v2167
        %2201 = vmatprep.subr.bf16.mxu0 %v2170
        %2202 = vmatpush1.bf16.msra.mxu0 %v2169
        %2203 = vmatprep.subr.bf16.mxu0 0
        %2204 = vmatpush1.bf16.msra.mxu0 0
        %2205 = vmatprep.subr.bf16.mxu0 0
        %2206 = vmatpush1.bf16.msra.mxu0 0
        %2207 = vmatprep.subr.bf16.mxu0 0
        %2208 = vmatpush1.bf16.msra.mxu0 0
        %2209 = vmatprep.subr.bf16.mxu0 0
        %2210 = vmatpush1.bf16.msra.mxu0 0
        %2211 = vmatprep.subr.bf16.mxu0 0
        %2212 = vmatpush1.bf16.msra.mxu0 0
        %2213 = vmatprep.subr.bf16.mxu0 0
        %2214 = vmatpush1.bf16.msra.mxu0 0
        %2215 = vmatprep.subr.bf16.mxu0 0
        %2216 = vmatpush1.bf16.msra.mxu0 0
        %2217 = vmatprep.subr.bf16.mxu0 0
        %2218 = vmatpush1.bf16.msra.mxu0 0
        %2219 = vmatprep.mubr.bf16.mxu0 0
        %2220 = vmatmul.mubr.bf16.gmra.mrb[0].mxu0 %v2086
        %v2221 = vpop.f32.mrb[0].mxu0
        %v2222 = vadd.f32 0.0, %v2221
        %v2223 = vpop.f32.mrb[0].mxu0
        %v2224 = vadd.f32 0.0, %v2223
        %v2225 = vpop.f32.mrb[0].mxu0
        %v2226 = vadd.f32 0.0, %v2225
        %v2227 = vpop.f32.mrb[0].mxu0
        %v2228 = vadd.f32 0.0, %v2227
        %2229 = vmatprep.mubr.bf16.mxu0 0
        %2230 = vmatmul.mubr.bf16.gmra.mrb[0].mxu0 %v2087
        %v2231 = vpop.f32.mrb[0].mxu0
        %v2232 = vadd.f32 0.0, %v2231
        %v2233 = vpop.f32.mrb[0].mxu0
        %v2234 = vadd.f32 0.0, %v2233
        %v2235 = vpop.f32.mrb[0].mxu0
        %v2236 = vadd.f32 0.0, %v2235
        %v2237 = vpop.f32.mrb[0].mxu0
        %v2238 = vadd.f32 0.0, %v2237
        %2239 = vmatprep.mubr.bf16.mxu0 0
        %2240 = vmatmul.mubr.bf16.gmra.mrb[0].mxu0 %v2088
        %v2241 = vpop.f32.mrb[0].mxu0
        %v2242 = vadd.f32 0.0, %v2241
        %v2243 = vpop.f32.mrb[0].mxu0
        %v2244 = vadd.f32 0.0, %v2243
        %v2245 = vpop.f32.mrb[0].mxu0
        %v2246 = vadd.f32 0.0, %v2245
        %v2247 = vpop.f32.mrb[0].mxu0
        %v2248 = vadd.f32 0.0, %v2247
        %2249 = vmatprep.mubr.bf16.mxu0 0
        %2250 = vmatmul.mubr.bf16.gmra.mrb[0].mxu0 %v2089
        %v2251 = vpop.f32.mrb[0].mxu0
        %v2252 = vadd.f32 0.0, %v2251
        %v2253 = vpop.f32.mrb[0].mxu0
        %v2254 = vadd.f32 0.0, %v2253
        %v2255 = vpop.f32.mrb[0].mxu0
        %v2256 = vadd.f32 0.0, %v2255
        %v2257 = vpop.f32.mrb[0].mxu0
        %v2258 = vadd.f32 0.0, %v2257
        %2259 = vdwg.mxu0
        %v2260 = vadd.f32 %v2040, %v2222
        %v2261 = vadd.f32 %v2042, %v2224
        %v2262 = vadd.f32 %v2044, %v2226
        %v2263 = vadd.f32 %v2046, %v2228
        %v2264 = vadd.f32 %v2050, %v2232
        %v2265 = vadd.f32 %v2052, %v2234
        %v2266 = vadd.f32 %v2054, %v2236
        %v2267 = vadd.f32 %v2056, %v2238
        %v2268 = vadd.f32 %v2060, %v2242
        %v2269 = vadd.f32 %v2062, %v2244
        %v2270 = vadd.f32 %v2064, %v2246
        %v2271 = vadd.f32 %v2066, %v2248
        %v2272 = vadd.f32 %v2070, %v2252
        %v2273 = vadd.f32 %v2072, %v2254
        %v2274 = vadd.f32 %v2074, %v2256
        %v2275 = vadd.f32 %v2076, %v2258
        %v2276 = vld [vmem:[%s11] sm:$0x3]
        %v2278 = vlaneseq
        %v2279 = vshrl.u32 %v2278, 7
        %v2280 = vsub.s32 0, %v2279
        %v2281 = vrot.slane %v2276, %v2280
        %v2282 = vlaneseq
        %v2283 = vshrl.u32 %v2282, 7
        %v2284 = vsub.s32 1, %v2283
        %v2285 = vrot.slane %v2276, %v2284
        %v2288 = vadd.f32 %v2260, %v2281
        %v2289 = vadd.f32 %v2261, %v2285
        %v2290 = vadd.f32 %v2262, %v2281
        %v2291 = vadd.f32 %v2263, %v2285
        %v2292 = vadd.f32 %v2264, %v2281
        %v2293 = vadd.f32 %v2265, %v2285
        %v2294 = vadd.f32 %v2266, %v2281
        %v2295 = vadd.f32 %v2267, %v2285
        %v2296 = vadd.f32 %v2268, %v2281
        %v2297 = vadd.f32 %v2269, %v2285
        %v2298 = vadd.f32 %v2270, %v2281
        %v2299 = vadd.f32 %v2271, %v2285
        %v2300 = vadd.f32 %v2272, %v2281
        %v2301 = vadd.f32 %v2273, %v2285
        %v2302 = vadd.f32 %v2274, %v2281
        %v2303 = vadd.f32 %v2275, %v2285
        %v2304 = vmax.f32 %v2288, 0.0
        %v2305 = vmax.f32 %v2289, 0.0
        %v2306 = vmax.f32 %v2290, 0.0
        %v2307 = vmax.f32 %v2291, 0.0
        %v2308 = vmax.f32 %v2292, 0.0
        %v2309 = vmax.f32 %v2293, 0.0
        %v2310 = vmax.f32 %v2294, 0.0
        %v2311 = vmax.f32 %v2295, 0.0
        %v2312 = vmax.f32 %v2296, 0.0
        %v2313 = vmax.f32 %v2297, 0.0
        %v2314 = vmax.f32 %v2298, 0.0
        %v2315 = vmax.f32 %v2299, 0.0
        %v2316 = vmax.f32 %v2300, 0.0
        %v2317 = vmax.f32 %v2301, 0.0
        %v2318 = vmax.f32 %v2302, 0.0
        %v2319 = vmax.f32 %v2303, 0.0
        %v2320 = vlaneseq
        %vm2321 = vcmp.ge.s32.totalorder %v2320, 0
        %vm2322 = vcmp.lt.s32.totalorder %v2320, 192
        %vm2323 = vmand %vm2321, %vm2322
        %2324 = vst.msk [vmem:[#allocation6] ss:$8 sm:$0x3] %vm2323, 0.0
        %2325 = vst.msk [vmem:[#allocation6] ss:$8 sm:$0x0] %vm2323, 0.0
        %s2326 = scalar_lea.vmem [#allocation6], 129
        %2327 = vst.msk [vmem:[%s2326] ss:$8 sm:$0x3] %vm2323, 0.0
        %2328 = vst.msk [vmem:[%s2326] ss:$8 sm:$0x0] %vm2323, 0.0
        %vm2345 = vcmask 1040384
        %v2346 = vrot.slane %v2304, 7
        %v2347 = vrot.slane %v2305, 7
        %v2348 = vrot.slane %v2306, 7
        %v2349 = vsel %vm2345, %v2346, %v2348
        %v2350 = vrot.slane %v2307, 7
        %v2351 = vsel %vm2345, %v2347, %v2350
        %v2352 = vrot.slane %v2308, 7
        %v2353 = vsel %vm2345, %v2348, %v2352
        %v2354 = vrot.slane %v2309, 7
        %v2355 = vsel %vm2345, %v2350, %v2354
        %v2356 = vrot.slane %v2310, 7
        %v2357 = vsel %vm2345, %v2352, %v2356
        %v2358 = vrot.slane %v2311, 7
        %v2359 = vsel %vm2345, %v2354, %v2358
        %v2360 = vrot.slane %v2312, 7
        %v2361 = vsel %vm2345, %v2356, %v2360
        %v2362 = vrot.slane %v2313, 7
        %v2363 = vsel %vm2345, %v2358, %v2362
        %v2364 = vrot.slane %v2314, 7
        %v2365 = vsel %vm2345, %v2360, %v2364
        %v2366 = vrot.slane %v2315, 7
        %v2367 = vsel %vm2345, %v2362, %v2366
        %v2368 = vrot.slane %v2316, 7
        %v2369 = vsel %vm2345, %v2364, %v2368
        %v2370 = vrot.slane %v2317, 7
        %v2371 = vsel %vm2345, %v2366, %v2370
        %v2372 = vrot.slane %v2318, 7
        %v2373 = vsel %vm2345, %v2368, %v2372
        %v2374 = vrot.slane %v2319, 7
        %v2375 = vsel %vm2345, %v2370, %v2374
        %2394 = vst [vmem:[#allocation6] sm:$0xfe] %v2346
        %vm2395 = vcmask 523265
        %2396 = vst.msk [vmem:[#allocation6 + $0x8] sm:$0xfe] %vm2395, %v2347
        %2397 = vst [vmem:[#allocation6 + $0x10] sm:$0xff] %v2349
        %2398 = vst.msk [vmem:[#allocation6 + $0x18] sm:$0xff] %vm498, %v2351
        %2399 = vst [vmem:[#allocation6 + $0x20] sm:$0xff] %v2353
        %2400 = vst.msk [vmem:[#allocation6 + $0x28] sm:$0xff] %vm498, %v2355
        %2401 = vst [vmem:[#allocation6 + $0x30] sm:$0xff] %v2357
        %2402 = vst.msk [vmem:[#allocation6 + $0x38] sm:$0xff] %vm498, %v2359
        %2403 = vst [vmem:[#allocation6 + $0x40] sm:$0xff] %v2361
        %2404 = vst.msk [vmem:[#allocation6 + $0x48] sm:$0xff] %vm498, %v2363
        %2405 = vst [vmem:[#allocation6 + $0x50] sm:$0xff] %v2365
        %2406 = vst.msk [vmem:[#allocation6 + $0x58] sm:$0xff] %vm498, %v2367
        %2407 = vst [vmem:[#allocation6 + $0x60] sm:$0xff] %v2369
        %2408 = vst.msk [vmem:[#allocation6 + $0x68] sm:$0xff] %vm498, %v2371
        %2409 = vst [vmem:[#allocation6 + $0x70] sm:$0xff] %v2373
        %2410 = vst.msk [vmem:[#allocation6 + $0x78] sm:$0xff] %vm498, %v2375
        %2411 = vst [vmem:[#allocation6 + $0x80] sm:$0x1] %v2372
        %2412 = vst.msk [vmem:[#allocation6 + $0x88] sm:$0x1] %vm495, %v2374
        %v2413 = vld [vmem:[#allocation6] sm:$0xff]
        %v2414 = vld [vmem:[#allocation6 + $0x8] sm:$0xff]
        %v2415 = vld [vmem:[#allocation6 + $0x10] sm:$0xff]
        %v2416 = vld [vmem:[#allocation6 + $0x18] sm:$0xff]
        %v2417 = vld [vmem:[#allocation6 + $0x20] sm:$0xff]
        %v2418 = vld [vmem:[#allocation6 + $0x28] sm:$0xff]
        %v2419 = vld [vmem:[#allocation6 + $0x30] sm:$0xff]
        %v2420 = vld [vmem:[#allocation6 + $0x38] sm:$0xff]
        %v2421 = vld [vmem:[#allocation6 + $0x40] sm:$0xff]
        %v2422 = vld [vmem:[#allocation6 + $0x48] sm:$0xff]
        %v2423 = vld [vmem:[#allocation6 + $0x50] sm:$0xff]
        %v2424 = vld [vmem:[#allocation6 + $0x58] sm:$0xff]
        %v2425 = vld [vmem:[#allocation6 + $0x60] sm:$0xff]
        %v2426 = vld [vmem:[#allocation6 + $0x68] sm:$0xff]
        %v2427 = vld [vmem:[#allocation6 + $0x70] sm:$0xff]
        %v2428 = vld [vmem:[#allocation6 + $0x78] sm:$0xff]
        %v2429 = vpack.c.bf16 %v2415, %v2413
        %v2430 = vpack.c.bf16 %v2416, %v2414
        %v2431 = vpack.c.bf16 %v2419, %v2417
        %v2432 = vpack.c.bf16 %v2420, %v2418
        %v2433 = vpack.c.bf16 %v2423, %v2421
        %v2434 = vpack.c.bf16 %v2424, %v2422
        %v2435 = vpack.c.bf16 %v2427, %v2425
        %v2436 = vpack.c.bf16 %v2428, %v2426
        %v2437 = vld [vmem:[%s12] sm:$0xff]
        %v2438 = vld [vmem:[%s12 + $0x8] sm:$0xff]
        %v2439 = vld [vmem:[%s12 + $0x10] sm:$0xff]
        %v2440 = vld [vmem:[%s12 + $0x18] sm:$0xff]
        %v2441 = vld [vmem:[%s12 + $0x20] sm:$0xff]
        %v2442 = vld [vmem:[%s12 + $0x28] sm:$0xff]
        %v2443 = vld [vmem:[%s12 + $0x30] sm:$0xff]
        %v2444 = vld [vmem:[%s12 + $0x38] sm:$0xff]
        %v2445 = vld [vmem:[%s12 + $0x40] sm:$0xff]
        %v2446 = vld [vmem:[%s12 + $0x48] sm:$0xff]
        %v2447 = vld [vmem:[%s12 + $0x50] sm:$0xff]
        %v2448 = vld [vmem:[%s12 + $0x58] sm:$0xff]
        %v2449 = vld [vmem:[%s12 + $0x60] sm:$0xff]
        %v2450 = vld [vmem:[%s12 + $0x68] sm:$0xff]
        %v2451 = vld [vmem:[%s12 + $0x70] sm:$0xff]
        %v2452 = vld [vmem:[%s12 + $0x78] sm:$0xff]
        %v2453 = vld [vmem:[%s12 + $0x80] sm:$0xff]
        %v2454 = vld [vmem:[%s12 + $0x88] sm:$0xff]
        %v2455 = vld [vmem:[%s12 + $0x90] sm:$0xff]
        %v2456 = vld [vmem:[%s12 + $0x98] sm:$0xff]
        %v2457 = vld [vmem:[%s12 + $0xa0] sm:$0xff]
        %v2458 = vld [vmem:[%s12 + $0xa8] sm:$0xff]
        %v2459 = vld [vmem:[%s12 + $0xb0] sm:$0xff]
        %v2460 = vld [vmem:[%s12 + $0xb8] sm:$0xff]
        %v2461 = vld [vmem:[#allocation6] sm:$0xfe]
        %v2462 = vld [vmem:[#allocation6 + $0x8] sm:$0xfe]
        %v2463 = vld [vmem:[#allocation6 + $0x80] sm:$0x1]
        %v2464 = vld [vmem:[#allocation6 + $0x88] sm:$0x1]
        %v2465 = vpack.c.bf16 %v2415, %v2461
        %v2466 = vpack.c.bf16 %v2416, %v2462
        %v2467 = vpack.c.bf16 %v2463, %v2463
        %v2468 = vpack.c.bf16 %v2464, %v2464
        %s2469 = scalar_lea.vmem %s12, 192
        %v2470 = vld [vmem:[%s2469] sm:$0xff]
        %v2471 = vld [vmem:[%s2469 + $0x8] sm:$0xff]
        %v2472 = vld [vmem:[%s2469 + $0x10] sm:$0xff]
        %v2473 = vld [vmem:[%s2469 + $0x18] sm:$0xff]
        %v2474 = vld [vmem:[%s2469 + $0x20] sm:$0xff]
        %v2475 = vld [vmem:[%s2469 + $0x28] sm:$0xff]
        %v2476 = vld [vmem:[%s2469 + $0x30] sm:$0xff]
        %v2477 = vld [vmem:[%s2469 + $0x38] sm:$0xff]
        %v2478 = vld [vmem:[%s2469 + $0x40] sm:$0xff]
        %v2479 = vld [vmem:[%s2469 + $0x48] sm:$0xff]
        %v2480 = vld [vmem:[%s2469 + $0x50] sm:$0xff]
        %v2481 = vld [vmem:[%s2469 + $0x58] sm:$0xff]
        %v2482 = vld [vmem:[%s2469 + $0x60] sm:$0xff]
        %v2483 = vld [vmem:[%s2469 + $0x68] sm:$0xff]
        %v2484 = vld [vmem:[%s2469 + $0x70] sm:$0xff]
        %v2485 = vld [vmem:[%s2469 + $0x78] sm:$0xff]
        %v2486 = vld [vmem:[%s2469 + $0x80] sm:$0xff]
        %v2487 = vld [vmem:[%s2469 + $0x88] sm:$0xff]
        %v2488 = vld [vmem:[%s2469 + $0x90] sm:$0xff]
        %v2489 = vld [vmem:[%s2469 + $0x98] sm:$0xff]
        %v2490 = vld [vmem:[%s2469 + $0xa0] sm:$0xff]
        %v2491 = vld [vmem:[%s2469 + $0xa8] sm:$0xff]
        %v2492 = vld [vmem:[%s2469 + $0xb0] sm:$0xff]
        %v2493 = vld [vmem:[%s2469 + $0xb8] sm:$0xff]
        %vm2494 = vsmask.f32 7424
        %v2496 = vshrl.u32 %v2465, 16
        %v2498 = vshll.u32 %v2465, 16
        %v2500 = vrot.slane %v2498, 1
        %v2501 = vor.u32 %v2496, %v2500
        %v2503 = vshll.u32 %v2431, 16
        %v2505 = vrot.slane %v2503, 1
        %v2506 = vsel %vm2494, %v2501, %v2505
        %v2508 = vshrl.u32 %v2466, 16
        %v2510 = vshll.u32 %v2466, 16
        %v2512 = vrot.slane %v2510, 1
        %v2513 = vor.u32 %v2508, %v2512
        %v2515 = vshll.u32 %v2432, 16
        %v2517 = vrot.slane %v2515, 1
        %v2518 = vsel %vm2494, %v2513, %v2517
        %v2519 = vshrl.u32 %v2431, 16
        %v2521 = vor.u32 %v2519, %v2505
        %v2523 = vshll.u32 %v2433, 16
        %v2525 = vrot.slane %v2523, 1
        %v2526 = vsel %vm2494, %v2521, %v2525
        %v2527 = vshrl.u32 %v2432, 16
        %v2529 = vor.u32 %v2527, %v2517
        %v2531 = vshll.u32 %v2434, 16
        %v2533 = vrot.slane %v2531, 1
        %v2534 = vsel %vm2494, %v2529, %v2533
        %v2535 = vshrl.u32 %v2433, 16
        %v2537 = vor.u32 %v2535, %v2525
        %v2539 = vshll.u32 %v2435, 16
        %v2541 = vrot.slane %v2539, 1
        %v2542 = vsel %vm2494, %v2537, %v2541
        %v2543 = vshrl.u32 %v2434, 16
        %v2545 = vor.u32 %v2543, %v2533
        %v2547 = vshll.u32 %v2436, 16
        %v2549 = vrot.slane %v2547, 1
        %v2550 = vsel %vm2494, %v2545, %v2549
        %v2551 = vshrl.u32 %v2435, 16
        %v2553 = vor.u32 %v2551, %v2541
        %v2555 = vshll.u32 %v2467, 16
        %v2557 = vrot.slane %v2555, 1
        %v2558 = vsel %vm2494, %v2553, %v2557
        %v2559 = vshrl.u32 %v2436, 16
        %v2561 = vor.u32 %v2559, %v2549
        %v2563 = vshll.u32 %v2468, 16
        %v2565 = vrot.slane %v2563, 1
        %v2566 = vsel %vm2494, %v2561, %v2565
        %v2595 = vunpack.c.l.b16 %v2470
        %v2596 = vunpack.c.h.b16 %v2470
        %v2597 = vunpack.c.l.b16 %v2471
        %v2598 = vunpack.c.h.b16 %v2471
        %v2599 = vunpack.c.l.b16 %v2472
        %v2600 = vunpack.c.h.b16 %v2472
        %v2601 = vunpack.c.l.b16 %v2473
        %v2602 = vunpack.c.h.b16 %v2473
        %v2603 = vunpack.c.l.b16 %v2474
        %v2604 = vunpack.c.h.b16 %v2474
        %v2605 = vunpack.c.l.b16 %v2475
        %v2606 = vunpack.c.h.b16 %v2475
        %v2607 = vunpack.c.l.b16 %v2476
        %v2608 = vunpack.c.h.b16 %v2476
        %v2609 = vunpack.c.l.b16 %v2477
        %v2610 = vunpack.c.h.b16 %v2477
        %v2611 = vunpack.c.l.b16 %v2478
        %v2612 = vunpack.c.h.b16 %v2478
        %v2613 = vunpack.c.l.b16 %v2479
        %v2614 = vunpack.c.h.b16 %v2479
        %v2615 = vunpack.c.l.b16 %v2480
        %v2616 = vunpack.c.h.b16 %v2480
        %v2617 = vunpack.c.l.b16 %v2481
        %v2618 = vunpack.c.h.b16 %v2481
        %v2619 = vunpack.c.l.b16 %v2482
        %v2620 = vunpack.c.h.b16 %v2482
        %v2621 = vunpack.c.l.b16 %v2483
        %v2622 = vunpack.c.h.b16 %v2483
        %v2623 = vunpack.c.l.b16 %v2484
        %v2624 = vunpack.c.h.b16 %v2484
        %v2625 = vunpack.c.l.b16 %v2485
        %v2626 = vunpack.c.h.b16 %v2485
        %v2627 = vunpack.c.l.b16 %v2486
        %v2628 = vunpack.c.h.b16 %v2486
        %v2629 = vunpack.c.l.b16 %v2487
        %v2630 = vunpack.c.h.b16 %v2487
        %v2631 = vunpack.c.l.b16 %v2488
        %v2632 = vunpack.c.h.b16 %v2488
        %v2633 = vunpack.c.l.b16 %v2489
        %v2634 = vunpack.c.h.b16 %v2489
        %v2635 = vunpack.c.l.b16 %v2490
        %v2636 = vunpack.c.h.b16 %v2490
        %v2637 = vunpack.c.l.b16 %v2491
        %v2638 = vunpack.c.h.b16 %v2491
        %v2639 = vunpack.c.l.b16 %v2492
        %v2640 = vunpack.c.h.b16 %v2492
        %v2641 = vunpack.c.l.b16 %v2493
        %v2642 = vunpack.c.h.b16 %v2493
        %v2643 = vpack.c.b16 %v2597, %v2595
        %v2644 = vpack.c.b16 %v2598, %v2596
        %v2645 = vpack.c.b16 %v2601, %v2599
        %v2646 = vpack.c.b16 %v2602, %v2600
        %v2647 = vpack.c.b16 %v2605, %v2603
        %v2648 = vpack.c.b16 %v2606, %v2604
        %v2649 = vpack.c.b16 %v2609, %v2607
        %v2650 = vpack.c.b16 %v2610, %v2608
        %v2651 = vpack.c.b16 %v2613, %v2611
        %v2652 = vpack.c.b16 %v2614, %v2612
        %v2653 = vpack.c.b16 %v2617, %v2615
        %v2654 = vpack.c.b16 %v2618, %v2616
        %v2655 = vpack.c.b16 %v2621, %v2619
        %v2656 = vpack.c.b16 %v2622, %v2620
        %v2657 = vpack.c.b16 %v2625, %v2623
        %v2658 = vpack.c.b16 %v2626, %v2624
        %v2659 = vpack.c.b16 %v2629, %v2627
        %v2660 = vpack.c.b16 %v2630, %v2628
        %v2661 = vpack.c.b16 %v2633, %v2631
        %v2662 = vpack.c.b16 %v2634, %v2632
        %v2663 = vpack.c.b16 %v2637, %v2635
        %v2664 = vpack.c.b16 %v2638, %v2636
        %v2665 = vpack.c.b16 %v2641, %v2639
        %v2666 = vpack.c.b16 %v2642, %v2640
        %v2692 = vsel %vm498, %v2518, 0
        %v2695 = vsel %vm498, %v2534, 0
        %v2698 = vsel %vm498, %v2550, 0
        %v2701 = vsel %vm498, %v2566, 0
        %2703 = vmatprep.subr.bf16.mxu0 %v2644
        %2704 = vmatpush1.bf16.msra.mxu0 %v2643
        %2705 = vmatprep.subr.bf16.mxu0 %v2646
        %2706 = vmatpush1.bf16.msra.mxu0 %v2645
        %2707 = vmatprep.subr.bf16.mxu0 %v2648
        %2708 = vmatpush1.bf16.msra.mxu0 %v2647
        %2709 = vmatprep.subr.bf16.mxu0 %v2650
        %2710 = vmatpush1.bf16.msra.mxu0 %v2649
        %2711 = vmatprep.subr.bf16.mxu0 %v2652
        %2712 = vmatpush1.bf16.msra.mxu0 %v2651
        %2713 = vmatprep.subr.bf16.mxu0 %v2654
        %2714 = vmatpush1.bf16.msra.mxu0 %v2653
        %2715 = vmatprep.subr.bf16.mxu0 %v2656
        %2716 = vmatpush1.bf16.msra.mxu0 %v2655
        %2717 = vmatprep.subr.bf16.mxu0 %v2658
        %2718 = vmatpush1.bf16.msra.mxu0 %v2657
        %2719 = vmatprep.subr.bf16.mxu0 %v2660
        %2720 = vmatpush1.bf16.msra.mxu0 %v2659
        %2721 = vmatprep.subr.bf16.mxu0 %v2662
        %2722 = vmatpush1.bf16.msra.mxu0 %v2661
        %2723 = vmatprep.subr.bf16.mxu0 %v2664
        %2724 = vmatpush1.bf16.msra.mxu0 %v2663
        %2725 = vmatprep.subr.bf16.mxu0 %v2666
        %2726 = vmatpush1.bf16.msra.mxu0 %v2665
        %2727 = vmatprep.subr.bf16.mxu0 0
        %2728 = vmatpush1.bf16.msra.mxu0 0
        %2729 = vmatprep.subr.bf16.mxu0 0
        %2730 = vmatpush1.bf16.msra.mxu0 0
        %2731 = vmatprep.subr.bf16.mxu0 0
        %2732 = vmatpush1.bf16.msra.mxu0 0
        %2733 = vmatprep.subr.bf16.mxu0 0
        %2734 = vmatpush1.bf16.msra.mxu0 0
        %2735 = vmatprep.mubr.bf16.mxu0 %v2692
        %2736 = vmatmul.mubr.bf16.gmra.mrb[0].mxu0 %v2506
        %v2737 = vpop.f32.mrb[0].mxu0
        %v2738 = vadd.f32 0.0, %v2737
        %v2739 = vpop.f32.mrb[0].mxu0
        %v2740 = vadd.f32 0.0, %v2739
        %v2741 = vpop.f32.mrb[0].mxu0
        %v2742 = vadd.f32 0.0, %v2741
        %v2743 = vpop.f32.mrb[0].mxu0
        %v2744 = vadd.f32 0.0, %v2743
        %2745 = vmatprep.mubr.bf16.mxu0 %v2695
        %2746 = vmatmul.mubr.bf16.gmra.mrb[0].mxu0 %v2526
        %v2747 = vpop.f32.mrb[0].mxu0
        %v2748 = vadd.f32 0.0, %v2747
        %v2749 = vpop.f32.mrb[0].mxu0
        %v2750 = vadd.f32 0.0, %v2749
        %v2751 = vpop.f32.mrb[0].mxu0
        %v2752 = vadd.f32 0.0, %v2751
        %v2753 = vpop.f32.mrb[0].mxu0
        %v2754 = vadd.f32 0.0, %v2753
        %2755 = vmatprep.mubr.bf16.mxu0 %v2698
        %2756 = vmatmul.mubr.bf16.gmra.mrb[0].mxu0 %v2542
        %v2757 = vpop.f32.mrb[0].mxu0
        %v2758 = vadd.f32 0.0, %v2757
        %v2759 = vpop.f32.mrb[0].mxu0
        %v2760 = vadd.f32 0.0, %v2759
        %v2761 = vpop.f32.mrb[0].mxu0
        %v2762 = vadd.f32 0.0, %v2761
        %v2763 = vpop.f32.mrb[0].mxu0
        %v2764 = vadd.f32 0.0, %v2763
        %2765 = vmatprep.mubr.bf16.mxu0 %v2701
        %2766 = vmatmul.mubr.bf16.gmra.mrb[0].mxu0 %v2558
        %v2767 = vpop.f32.mrb[0].mxu0
        %v2768 = vadd.f32 0.0, %v2767
        %v2769 = vpop.f32.mrb[0].mxu0
        %v2770 = vadd.f32 0.0, %v2769
        %v2771 = vpop.f32.mrb[0].mxu0
        %v2772 = vadd.f32 0.0, %v2771
        %v2773 = vpop.f32.mrb[0].mxu0
        %v2774 = vadd.f32 0.0, %v2773
        %2775 = vdwg.mxu0
        %v2800 = vunpack.c.l.b16 %v2437
        %v2801 = vunpack.c.h.b16 %v2437
        %v2802 = vunpack.c.l.b16 %v2438
        %v2803 = vunpack.c.h.b16 %v2438
        %v2804 = vunpack.c.l.b16 %v2439
        %v2805 = vunpack.c.h.b16 %v2439
        %v2806 = vunpack.c.l.b16 %v2440
        %v2807 = vunpack.c.h.b16 %v2440
        %v2808 = vunpack.c.l.b16 %v2441
        %v2809 = vunpack.c.h.b16 %v2441
        %v2810 = vunpack.c.l.b16 %v2442
        %v2811 = vunpack.c.h.b16 %v2442
        %v2812 = vunpack.c.l.b16 %v2443
        %v2813 = vunpack.c.h.b16 %v2443
        %v2814 = vunpack.c.l.b16 %v2444
        %v2815 = vunpack.c.h.b16 %v2444
        %v2816 = vunpack.c.l.b16 %v2445
        %v2817 = vunpack.c.h.b16 %v2445
        %v2818 = vunpack.c.l.b16 %v2446
        %v2819 = vunpack.c.h.b16 %v2446
        %v2820 = vunpack.c.l.b16 %v2447
        %v2821 = vunpack.c.h.b16 %v2447
        %v2822 = vunpack.c.l.b16 %v2448
        %v2823 = vunpack.c.h.b16 %v2448
        %v2824 = vunpack.c.l.b16 %v2449
        %v2825 = vunpack.c.h.b16 %v2449
        %v2826 = vunpack.c.l.b16 %v2450
        %v2827 = vunpack.c.h.b16 %v2450
        %v2828 = vunpack.c.l.b16 %v2451
        %v2829 = vunpack.c.h.b16 %v2451
        %v2830 = vunpack.c.l.b16 %v2452
        %v2831 = vunpack.c.h.b16 %v2452
        %v2832 = vunpack.c.l.b16 %v2453
        %v2833 = vunpack.c.h.b16 %v2453
        %v2834 = vunpack.c.l.b16 %v2454
        %v2835 = vunpack.c.h.b16 %v2454
        %v2836 = vunpack.c.l.b16 %v2455
        %v2837 = vunpack.c.h.b16 %v2455
        %v2838 = vunpack.c.l.b16 %v2456
        %v2839 = vunpack.c.h.b16 %v2456
        %v2840 = vunpack.c.l.b16 %v2457
        %v2841 = vunpack.c.h.b16 %v2457
        %v2842 = vunpack.c.l.b16 %v2458
        %v2843 = vunpack.c.h.b16 %v2458
        %v2844 = vunpack.c.l.b16 %v2459
        %v2845 = vunpack.c.h.b16 %v2459
        %v2846 = vunpack.c.l.b16 %v2460
        %v2847 = vunpack.c.h.b16 %v2460
        %v2848 = vpack.c.b16 %v2802, %v2800
        %v2849 = vpack.c.b16 %v2803, %v2801
        %v2850 = vpack.c.b16 %v2806, %v2804
        %v2851 = vpack.c.b16 %v2807, %v2805
        %v2852 = vpack.c.b16 %v2810, %v2808
        %v2853 = vpack.c.b16 %v2811, %v2809
        %v2854 = vpack.c.b16 %v2814, %v2812
        %v2855 = vpack.c.b16 %v2815, %v2813
        %v2856 = vpack.c.b16 %v2818, %v2816
        %v2857 = vpack.c.b16 %v2819, %v2817
        %v2858 = vpack.c.b16 %v2822, %v2820
        %v2859 = vpack.c.b16 %v2823, %v2821
        %v2860 = vpack.c.b16 %v2826, %v2824
        %v2861 = vpack.c.b16 %v2827, %v2825
        %v2862 = vpack.c.b16 %v2830, %v2828
        %v2863 = vpack.c.b16 %v2831, %v2829
        %v2864 = vpack.c.b16 %v2834, %v2832
        %v2865 = vpack.c.b16 %v2835, %v2833
        %v2866 = vpack.c.b16 %v2838, %v2836
        %v2867 = vpack.c.b16 %v2839, %v2837
        %v2868 = vpack.c.b16 %v2842, %v2840
        %v2869 = vpack.c.b16 %v2843, %v2841
        %v2870 = vpack.c.b16 %v2846, %v2844
        %v2871 = vpack.c.b16 %v2847, %v2845
        %v2897 = vsel %vm498, %v2430, 0
        %v2899 = vsel %vm498, %v2432, 0
        %v2901 = vsel %vm498, %v2434, 0
        %v2903 = vsel %vm498, %v2436, 0
        %2905 = vmatprep.subr.bf16.mxu0 %v2849
        %2906 = vmatpush1.bf16.msra.mxu0 %v2848
        %2907 = vmatprep.subr.bf16.mxu0 %v2851
        %2908 = vmatpush1.bf16.msra.mxu0 %v2850
        %2909 = vmatprep.subr.bf16.mxu0 %v2853
        %2910 = vmatpush1.bf16.msra.mxu0 %v2852
        %2911 = vmatprep.subr.bf16.mxu0 %v2855
        %2912 = vmatpush1.bf16.msra.mxu0 %v2854
        %2913 = vmatprep.subr.bf16.mxu0 %v2857
        %2914 = vmatpush1.bf16.msra.mxu0 %v2856
        %2915 = vmatprep.subr.bf16.mxu0 %v2859
        %2916 = vmatpush1.bf16.msra.mxu0 %v2858
        %2917 = vmatprep.subr.bf16.mxu0 %v2861
        %2918 = vmatpush1.bf16.msra.mxu0 %v2860
        %2919 = vmatprep.subr.bf16.mxu0 %v2863
        %2920 = vmatpush1.bf16.msra.mxu0 %v2862
        %2921 = vmatprep.subr.bf16.mxu0 %v2865
        %2922 = vmatpush1.bf16.msra.mxu0 %v2864
        %2923 = vmatprep.subr.bf16.mxu0 %v2867
        %2924 = vmatpush1.bf16.msra.mxu0 %v2866
        %2925 = vmatprep.subr.bf16.mxu0 %v2869
        %2926 = vmatpush1.bf16.msra.mxu0 %v2868
        %2927 = vmatprep.subr.bf16.mxu0 %v2871
        %2928 = vmatpush1.bf16.msra.mxu0 %v2870
        %2929 = vmatprep.subr.bf16.mxu0 0
        %2930 = vmatpush1.bf16.msra.mxu0 0
        %2931 = vmatprep.subr.bf16.mxu0 0
        %2932 = vmatpush1.bf16.msra.mxu0 0
        %2933 = vmatprep.subr.bf16.mxu0 0
        %2934 = vmatpush1.bf16.msra.mxu0 0
        %2935 = vmatprep.subr.bf16.mxu0 0
        %2936 = vmatpush1.bf16.msra.mxu0 0
        %2937 = vmatprep.mubr.bf16.mxu0 %v2897
        %2938 = vmatmul.mubr.bf16.gmra.mrb[0].mxu0 %v2429
        %v2939 = vpop.f32.mrb[0].mxu0
        %v2940 = vadd.f32 %v2738, %v2939
        %v2941 = vpop.f32.mrb[0].mxu0
        %v2942 = vadd.f32 %v2740, %v2941
        %v2943 = vpop.f32.mrb[0].mxu0
        %v2944 = vadd.f32 %v2742, %v2943
        %v2945 = vpop.f32.mrb[0].mxu0
        %v2946 = vadd.f32 %v2744, %v2945
        %2947 = vmatprep.mubr.bf16.mxu0 %v2899
        %2948 = vmatmul.mubr.bf16.gmra.mrb[0].mxu0 %v2431
        %v2949 = vpop.f32.mrb[0].mxu0
        %v2950 = vadd.f32 %v2748, %v2949
        %v2951 = vpop.f32.mrb[0].mxu0
        %v2952 = vadd.f32 %v2750, %v2951
        %v2953 = vpop.f32.mrb[0].mxu0
        %v2954 = vadd.f32 %v2752, %v2953
        %v2955 = vpop.f32.mrb[0].mxu0
        %v2956 = vadd.f32 %v2754, %v2955
        %2957 = vmatprep.mubr.bf16.mxu0 %v2901
        %2958 = vmatmul.mubr.bf16.gmra.mrb[0].mxu0 %v2433
        %v2959 = vpop.f32.mrb[0].mxu0
        %v2960 = vadd.f32 %v2758, %v2959
        %v2961 = vpop.f32.mrb[0].mxu0
        %v2962 = vadd.f32 %v2760, %v2961
        %v2963 = vpop.f32.mrb[0].mxu0
        %v2964 = vadd.f32 %v2762, %v2963
        %v2965 = vpop.f32.mrb[0].mxu0
        %v2966 = vadd.f32 %v2764, %v2965
        %2967 = vmatprep.mubr.bf16.mxu0 %v2903
        %2968 = vmatmul.mubr.bf16.gmra.mrb[0].mxu0 %v2435
        %v2969 = vpop.f32.mrb[0].mxu0
        %v2970 = vadd.f32 %v2768, %v2969
        %v2971 = vpop.f32.mrb[0].mxu0
        %v2972 = vadd.f32 %v2770, %v2971
        %v2973 = vpop.f32.mrb[0].mxu0
        %v2974 = vadd.f32 %v2772, %v2973
        %v2975 = vpop.f32.mrb[0].mxu0
        %v2976 = vadd.f32 %v2774, %v2975
        %2977 = vdwg.mxu0
        %v2978 = vld [vmem:[#allocation6] sm:$0xfc]
        %v2979 = vld [vmem:[#allocation6 + $0x8] sm:$0xfc]
        %v2980 = vld [vmem:[#allocation6 + $0x80] sm:$0x3]
        %v2981 = vld [vmem:[#allocation6 + $0x88] sm:$0x3]
        %v2982 = vpack.c.bf16 %v2415, %v2978
        %v2983 = vpack.c.bf16 %v2416, %v2979
        %v2984 = vpack.c.bf16 %v2980, %v2980
        %v2985 = vpack.c.bf16 %v2981, %v2981
        %s2986 = scalar_lea.vmem %s12, 384
        %v2987 = vld [vmem:[%s2986] sm:$0xff]
        %v2988 = vld [vmem:[%s2986 + $0x8] sm:$0xff]
        %v2989 = vld [vmem:[%s2986 + $0x10] sm:$0xff]
        %v2990 = vld [vmem:[%s2986 + $0x18] sm:$0xff]
        %v2991 = vld [vmem:[%s2986 + $0x20] sm:$0xff]
        %v2992 = vld [vmem:[%s2986 + $0x28] sm:$0xff]
        %v2993 = vld [vmem:[%s2986 + $0x30] sm:$0xff]
        %v2994 = vld [vmem:[%s2986 + $0x38] sm:$0xff]
        %v2995 = vld [vmem:[%s2986 + $0x40] sm:$0xff]
        %v2996 = vld [vmem:[%s2986 + $0x48] sm:$0xff]
        %v2997 = vld [vmem:[%s2986 + $0x50] sm:$0xff]
        %v2998 = vld [vmem:[%s2986 + $0x58] sm:$0xff]
        %v2999 = vld [vmem:[%s2986 + $0x60] sm:$0xff]
        %v3000 = vld [vmem:[%s2986 + $0x68] sm:$0xff]
        %v3001 = vld [vmem:[%s2986 + $0x70] sm:$0xff]
        %v3002 = vld [vmem:[%s2986 + $0x78] sm:$0xff]
        %v3003 = vld [vmem:[%s2986 + $0x80] sm:$0xff]
        %v3004 = vld [vmem:[%s2986 + $0x88] sm:$0xff]
        %v3005 = vld [vmem:[%s2986 + $0x90] sm:$0xff]
        %v3006 = vld [vmem:[%s2986 + $0x98] sm:$0xff]
        %v3007 = vld [vmem:[%s2986 + $0xa0] sm:$0xff]
        %v3008 = vld [vmem:[%s2986 + $0xa8] sm:$0xff]
        %v3009 = vld [vmem:[%s2986 + $0xb0] sm:$0xff]
        %v3010 = vld [vmem:[%s2986 + $0xb8] sm:$0xff]
        %vm3021 = vcmask 1046528
        %v3022 = vrot.slane %v2982, 1
        %v3023 = vrot.slane %v2431, 1
        %v3024 = vsel %vm3021, %v3022, %v3023
        %v3025 = vrot.slane %v2983, 1
        %v3026 = vrot.slane %v2432, 1
        %v3027 = vsel %vm3021, %v3025, %v3026
        %v3028 = vrot.slane %v2433, 1
        %v3029 = vsel %vm3021, %v3023, %v3028
        %v3030 = vrot.slane %v2434, 1
        %v3031 = vsel %vm3021, %v3026, %v3030
        %v3032 = vrot.slane %v2435, 1
        %v3033 = vsel %vm3021, %v3028, %v3032
        %v3034 = vrot.slane %v2436, 1
        %v3035 = vsel %vm3021, %v3030, %v3034
        %v3036 = vrot.slane %v2984, 1
        %v3037 = vsel %vm3021, %v3032, %v3036
        %v3038 = vrot.slane %v2985, 1
        %v3039 = vsel %vm3021, %v3034, %v3038
        %v3068 = vunpack.c.l.b16 %v2987
        %v3069 = vunpack.c.h.b16 %v2987
        %v3070 = vunpack.c.l.b16 %v2988
        %v3071 = vunpack.c.h.b16 %v2988
        %v3072 = vunpack.c.l.b16 %v2989
        %v3073 = vunpack.c.h.b16 %v2989
        %v3074 = vunpack.c.l.b16 %v2990
        %v3075 = vunpack.c.h.b16 %v2990
        %v3076 = vunpack.c.l.b16 %v2991
        %v3077 = vunpack.c.h.b16 %v2991
        %v3078 = vunpack.c.l.b16 %v2992
        %v3079 = vunpack.c.h.b16 %v2992
        %v3080 = vunpack.c.l.b16 %v2993
        %v3081 = vunpack.c.h.b16 %v2993
        %v3082 = vunpack.c.l.b16 %v2994
        %v3083 = vunpack.c.h.b16 %v2994
        %v3084 = vunpack.c.l.b16 %v2995
        %v3085 = vunpack.c.h.b16 %v2995
        %v3086 = vunpack.c.l.b16 %v2996
        %v3087 = vunpack.c.h.b16 %v2996
        %v3088 = vunpack.c.l.b16 %v2997
        %v3089 = vunpack.c.h.b16 %v2997
        %v3090 = vunpack.c.l.b16 %v2998
        %v3091 = vunpack.c.h.b16 %v2998
        %v3092 = vunpack.c.l.b16 %v2999
        %v3093 = vunpack.c.h.b16 %v2999
        %v3094 = vunpack.c.l.b16 %v3000
        %v3095 = vunpack.c.h.b16 %v3000
        %v3096 = vunpack.c.l.b16 %v3001
        %v3097 = vunpack.c.h.b16 %v3001
        %v3098 = vunpack.c.l.b16 %v3002
        %v3099 = vunpack.c.h.b16 %v3002
        %v3100 = vunpack.c.l.b16 %v3003
        %v3101 = vunpack.c.h.b16 %v3003
        %v3102 = vunpack.c.l.b16 %v3004
        %v3103 = vunpack.c.h.b16 %v3004
        %v3104 = vunpack.c.l.b16 %v3005
        %v3105 = vunpack.c.h.b16 %v3005
        %v3106 = vunpack.c.l.b16 %v3006
        %v3107 = vunpack.c.h.b16 %v3006
        %v3108 = vunpack.c.l.b16 %v3007
        %v3109 = vunpack.c.h.b16 %v3007
        %v3110 = vunpack.c.l.b16 %v3008
        %v3111 = vunpack.c.h.b16 %v3008
        %v3112 = vunpack.c.l.b16 %v3009
        %v3113 = vunpack.c.h.b16 %v3009
        %v3114 = vunpack.c.l.b16 %v3010
        %v3115 = vunpack.c.h.b16 %v3010
        %v3116 = vpack.c.b16 %v3070, %v3068
        %v3117 = vpack.c.b16 %v3071, %v3069
        %v3118 = vpack.c.b16 %v3074, %v3072
        %v3119 = vpack.c.b16 %v3075, %v3073
        %v3120 = vpack.c.b16 %v3078, %v3076
        %v3121 = vpack.c.b16 %v3079, %v3077
        %v3122 = vpack.c.b16 %v3082, %v3080
        %v3123 = vpack.c.b16 %v3083, %v3081
        %v3124 = vpack.c.b16 %v3086, %v3084
        %v3125 = vpack.c.b16 %v3087, %v3085
        %v3126 = vpack.c.b16 %v3090, %v3088
        %v3127 = vpack.c.b16 %v3091, %v3089
        %v3128 = vpack.c.b16 %v3094, %v3092
        %v3129 = vpack.c.b16 %v3095, %v3093
        %v3130 = vpack.c.b16 %v3098, %v3096
        %v3131 = vpack.c.b16 %v3099, %v3097
        %v3132 = vpack.c.b16 %v3102, %v3100
        %v3133 = vpack.c.b16 %v3103, %v3101
        %v3134 = vpack.c.b16 %v3106, %v3104
        %v3135 = vpack.c.b16 %v3107, %v3105
        %v3136 = vpack.c.b16 %v3110, %v3108
        %v3137 = vpack.c.b16 %v3111, %v3109
        %v3138 = vpack.c.b16 %v3114, %v3112
        %v3139 = vpack.c.b16 %v3115, %v3113
        %v3165 = vsel %vm498, %v3027, 0
        %v3168 = vsel %vm498, %v3031, 0
        %v3171 = vsel %vm498, %v3035, 0
        %v3174 = vsel %vm498, %v3039, 0
        %3176 = vmatprep.subr.bf16.mxu0 %v3117
        %3177 = vmatpush1.bf16.msra.mxu0 %v3116
        %3178 = vmatprep.subr.bf16.mxu0 %v3119
        %3179 = vmatpush1.bf16.msra.mxu0 %v3118
        %3180 = vmatprep.subr.bf16.mxu0 %v3121
        %3181 = vmatpush1.bf16.msra.mxu0 %v3120
        %3182 = vmatprep.subr.bf16.mxu0 %v3123
        %3183 = vmatpush1.bf16.msra.mxu0 %v3122
        %3184 = vmatprep.subr.bf16.mxu0 %v3125
        %3185 = vmatpush1.bf16.msra.mxu0 %v3124
        %3186 = vmatprep.subr.bf16.mxu0 %v3127
        %3187 = vmatpush1.bf16.msra.mxu0 %v3126
        %3188 = vmatprep.subr.bf16.mxu0 %v3129
        %3189 = vmatpush1.bf16.msra.mxu0 %v3128
        %3190 = vmatprep.subr.bf16.mxu0 %v3131
        %3191 = vmatpush1.bf16.msra.mxu0 %v3130
        %3192 = vmatprep.subr.bf16.mxu0 %v3133
        %3193 = vmatpush1.bf16.msra.mxu0 %v3132
        %3194 = vmatprep.subr.bf16.mxu0 %v3135
        %3195 = vmatpush1.bf16.msra.mxu0 %v3134
        %3196 = vmatprep.subr.bf16.mxu0 %v3137
        %3197 = vmatpush1.bf16.msra.mxu0 %v3136
        %3198 = vmatprep.subr.bf16.mxu0 %v3139
        %3199 = vmatpush1.bf16.msra.mxu0 %v3138
        %3200 = vmatprep.subr.bf16.mxu0 0
        %3201 = vmatpush1.bf16.msra.mxu0 0
        %3202 = vmatprep.subr.bf16.mxu0 0
        %3203 = vmatpush1.bf16.msra.mxu0 0
        %3204 = vmatprep.subr.bf16.mxu0 0
        %3205 = vmatpush1.bf16.msra.mxu0 0
        %3206 = vmatprep.subr.bf16.mxu0 0
        %3207 = vmatpush1.bf16.msra.mxu0 0
        %3208 = vmatprep.mubr.bf16.mxu0 %v3165
        %3209 = vmatmul.mubr.bf16.gmra.mrb[0].mxu0 %v3024
        %v3210 = vpop.f32.mrb[0].mxu0
        %v3211 = vadd.f32 0.0, %v3210
        %v3212 = vpop.f32.mrb[0].mxu0
        %v3213 = vadd.f32 0.0, %v3212
        %v3214 = vpop.f32.mrb[0].mxu0
        %v3215 = vadd.f32 0.0, %v3214
        %v3216 = vpop.f32.mrb[0].mxu0
        %v3217 = vadd.f32 0.0, %v3216
        %3218 = vmatprep.mubr.bf16.mxu0 %v3168
        %3219 = vmatmul.mubr.bf16.gmra.mrb[0].mxu0 %v3029
        %v3220 = vpop.f32.mrb[0].mxu0
        %v3221 = vadd.f32 0.0, %v3220
        %v3222 = vpop.f32.mrb[0].mxu0
        %v3223 = vadd.f32 0.0, %v3222
        %v3224 = vpop.f32.mrb[0].mxu0
        %v3225 = vadd.f32 0.0, %v3224
        %v3226 = vpop.f32.mrb[0].mxu0
        %v3227 = vadd.f32 0.0, %v3226
        %3228 = vmatprep.mubr.bf16.mxu0 %v3171
        %3229 = vmatmul.mubr.bf16.gmra.mrb[0].mxu0 %v3033
        %v3230 = vpop.f32.mrb[0].mxu0
        %v3231 = vadd.f32 0.0, %v3230
        %v3232 = vpop.f32.mrb[0].mxu0
        %v3233 = vadd.f32 0.0, %v3232
        %v3234 = vpop.f32.mrb[0].mxu0
        %v3235 = vadd.f32 0.0, %v3234
        %v3236 = vpop.f32.mrb[0].mxu0
        %v3237 = vadd.f32 0.0, %v3236
        %3238 = vmatprep.mubr.bf16.mxu0 %v3174
        %3239 = vmatmul.mubr.bf16.gmra.mrb[0].mxu0 %v3037
        %v3240 = vpop.f32.mrb[0].mxu0
        %v3241 = vadd.f32 0.0, %v3240
        %v3242 = vpop.f32.mrb[0].mxu0
        %v3243 = vadd.f32 0.0, %v3242
        %v3244 = vpop.f32.mrb[0].mxu0
        %v3245 = vadd.f32 0.0, %v3244
        %v3246 = vpop.f32.mrb[0].mxu0
        %v3247 = vadd.f32 0.0, %v3246
        %3248 = vdwg.mxu0
        %v3249 = vadd.f32 %v2940, %v3211
        %v3250 = vadd.f32 %v2942, %v3213
        %v3251 = vadd.f32 %v2944, %v3215
        %v3252 = vadd.f32 %v2946, %v3217
        %v3253 = vadd.f32 %v2950, %v3221
        %v3254 = vadd.f32 %v2952, %v3223
        %v3255 = vadd.f32 %v2954, %v3225
        %v3256 = vadd.f32 %v2956, %v3227
        %v3257 = vadd.f32 %v2960, %v3231
        %v3258 = vadd.f32 %v2962, %v3233
        %v3259 = vadd.f32 %v2964, %v3235
        %v3260 = vadd.f32 %v2966, %v3237
        %v3261 = vadd.f32 %v2970, %v3241
        %v3262 = vadd.f32 %v2972, %v3243
        %v3263 = vadd.f32 %v2974, %v3245
        %v3264 = vadd.f32 %v2976, %v3247
        %v3265 = vld [vmem:[%s13] sm:$0x3]
        %v3267 = vlaneseq
        %v3268 = vshrl.u32 %v3267, 7
        %v3269 = vsub.s32 0, %v3268
        %v3270 = vrot.slane %v3265, %v3269
        %v3271 = vlaneseq
        %v3272 = vshrl.u32 %v3271, 7
        %v3273 = vsub.s32 1, %v3272
        %v3274 = vrot.slane %v3265, %v3273
        %v3277 = vadd.f32 %v3249, %v3270
        %v3278 = vadd.f32 %v3250, %v3274
        %v3279 = vadd.f32 %v3251, %v3270
        %v3280 = vadd.f32 %v3252, %v3274
        %v3281 = vadd.f32 %v3253, %v3270
        %v3282 = vadd.f32 %v3254, %v3274
        %v3283 = vadd.f32 %v3255, %v3270
        %v3284 = vadd.f32 %v3256, %v3274
        %v3285 = vadd.f32 %v3257, %v3270
        %v3286 = vadd.f32 %v3258, %v3274
        %v3287 = vadd.f32 %v3259, %v3270
        %v3288 = vadd.f32 %v3260, %v3274
        %v3289 = vadd.f32 %v3261, %v3270
        %v3290 = vadd.f32 %v3262, %v3274
        %v3291 = vadd.f32 %v3263, %v3270
        %v3292 = vadd.f32 %v3264, %v3274
        %v3293 = vxor.u32 %v3277, 2147483648
        %v3294 = vxor.u32 %v3278, 2147483648
        %v3295 = vxor.u32 %v3279, 2147483648
        %v3296 = vxor.u32 %v3280, 2147483648
        %v3297 = vxor.u32 %v3281, 2147483648
        %v3298 = vxor.u32 %v3282, 2147483648
        %v3299 = vxor.u32 %v3283, 2147483648
        %v3300 = vxor.u32 %v3284, 2147483648
        %v3301 = vxor.u32 %v3285, 2147483648
        %v3302 = vxor.u32 %v3286, 2147483648
        %v3303 = vxor.u32 %v3287, 2147483648
        %v3304 = vxor.u32 %v3288, 2147483648
        %v3305 = vxor.u32 %v3289, 2147483648
        %v3306 = vxor.u32 %v3290, 2147483648
        %v3307 = vxor.u32 %v3291, 2147483648
        %v3308 = vxor.u32 %v3292, 2147483648
        %v3309 = vmul.f32 %v3293, 1.442695
        %v3310 = vpow.pop %v3309
        %v3311 = vmul.f32 %v3294, 1.442695
        %v3312 = vpow.pop %v3311
        %v3313 = vmul.f32 %v3295, 1.442695
        %v3314 = vpow.pop %v3313
        %v3315 = vmul.f32 %v3296, 1.442695
        %v3316 = vpow.pop %v3315
        %v3317 = vmul.f32 %v3297, 1.442695
        %v3318 = vpow.pop %v3317
        %v3319 = vmul.f32 %v3298, 1.442695
        %v3320 = vpow.pop %v3319
        %v3321 = vmul.f32 %v3299, 1.442695
        %v3322 = vpow.pop %v3321
        %v3323 = vmul.f32 %v3300, 1.442695
        %v3324 = vpow.pop %v3323
        %v3325 = vmul.f32 %v3301, 1.442695
        %v3326 = vpow.pop %v3325
        %v3327 = vmul.f32 %v3302, 1.442695
        %v3328 = vpow.pop %v3327
        %v3329 = vmul.f32 %v3303, 1.442695
        %v3330 = vpow.pop %v3329
        %v3331 = vmul.f32 %v3304, 1.442695
        %v3332 = vpow.pop %v3331
        %v3333 = vmul.f32 %v3305, 1.442695
        %v3334 = vpow.pop %v3333
        %v3335 = vmul.f32 %v3306, 1.442695
        %v3336 = vpow.pop %v3335
        %v3337 = vmul.f32 %v3307, 1.442695
        %v3338 = vpow.pop %v3337
        %v3339 = vmul.f32 %v3308, 1.442695
        %v3340 = vpow.pop %v3339
        %v3341 = vadd.f32 %v3310, 1.0
        %v3342 = vadd.f32 %v3312, 1.0
        %v3343 = vadd.f32 %v3314, 1.0
        %v3344 = vadd.f32 %v3316, 1.0
        %v3345 = vadd.f32 %v3318, 1.0
        %v3346 = vadd.f32 %v3320, 1.0
        %v3347 = vadd.f32 %v3322, 1.0
        %v3348 = vadd.f32 %v3324, 1.0
        %v3349 = vadd.f32 %v3326, 1.0
        %v3350 = vadd.f32 %v3328, 1.0
        %v3351 = vadd.f32 %v3330, 1.0
        %v3352 = vadd.f32 %v3332, 1.0
        %v3353 = vadd.f32 %v3334, 1.0
        %v3354 = vadd.f32 %v3336, 1.0
        %v3355 = vadd.f32 %v3338, 1.0
        %v3356 = vadd.f32 %v3340, 1.0
        %v3357 = vrcp.pop %v3341
        %v3358 = vmul.f32 1.0, %v3357
        %v3359 = vrcp.pop %v3342
        %v3360 = vmul.f32 1.0, %v3359
        %v3361 = vrcp.pop %v3343
        %v3362 = vmul.f32 1.0, %v3361
        %v3363 = vrcp.pop %v3344
        %v3364 = vmul.f32 1.0, %v3363
        %v3365 = vrcp.pop %v3345
        %v3366 = vmul.f32 1.0, %v3365
        %v3367 = vrcp.pop %v3346
        %v3368 = vmul.f32 1.0, %v3367
        %v3369 = vrcp.pop %v3347
        %v3370 = vmul.f32 1.0, %v3369
        %v3371 = vrcp.pop %v3348
        %v3372 = vmul.f32 1.0, %v3371
        %v3373 = vrcp.pop %v3349
        %v3374 = vmul.f32 1.0, %v3373
        %v3375 = vrcp.pop %v3350
        %v3376 = vmul.f32 1.0, %v3375
        %v3377 = vrcp.pop %v3351
        %v3378 = vmul.f32 1.0, %v3377
        %v3379 = vrcp.pop %v3352
        %v3380 = vmul.f32 1.0, %v3379
        %v3381 = vrcp.pop %v3353
        %v3382 = vmul.f32 1.0, %v3381
        %v3383 = vrcp.pop %v3354
        %v3384 = vmul.f32 1.0, %v3383
        %v3385 = vrcp.pop %v3355
        %v3386 = vmul.f32 1.0, %v3385
        %v3387 = vrcp.pop %v3356
        %v3388 = vmul.f32 1.0, %v3387
        %3389 = vst [vmem:[%s488] sm:$0xff] %v3358
        %3390 = vst.msk [vmem:[%s488 + $0x8] sm:$0xff] %vm498, %v3360
        %3391 = vst [vmem:[%s488 + $0x10] sm:$0xff] %v3362
        %3392 = vst.msk [vmem:[%s488 + $0x18] sm:$0xff] %vm498, %v3364
        %3393 = vst [vmem:[%s488 + $0x20] sm:$0xff] %v3366
        %3394 = vst.msk [vmem:[%s488 + $0x28] sm:$0xff] %vm498, %v3368
        %3395 = vst [vmem:[%s488 + $0x30] sm:$0xff] %v3370
        %3396 = vst.msk [vmem:[%s488 + $0x38] sm:$0xff] %vm498, %v3372
        %3397 = vst [vmem:[%s488 + $0x40] sm:$0xff] %v3374
        %3398 = vst.msk [vmem:[%s488 + $0x48] sm:$0xff] %vm498, %v3376
        %3399 = vst [vmem:[%s488 + $0x50] sm:$0xff] %v3378
        %3400 = vst.msk [vmem:[%s488 + $0x58] sm:$0xff] %vm498, %v3380
        %3401 = vst [vmem:[%s488 + $0x60] sm:$0xff] %v3382
        %3402 = vst.msk [vmem:[%s488 + $0x68] sm:$0xff] %vm498, %v3384
        %3403 = vst [vmem:[%s488 + $0x70] sm:$0xff] %v3386
        %3404 = vst.msk [vmem:[%s488 + $0x78] sm:$0xff] %vm498, %v3388
        %s3405 = sand.u32 %s337, 1
        %s3406 = scalar_lea.sflag [#allocation9], %s3405
        %s3407 = sand.u32 %s337, 1
        %s3408 = smul.addr %s3407, 128
        %s3409 = scalar_lea.vmem [#allocation12], %s3408
        // Predicated region
        $region85: #{tpu_custom_call.1} parent=75 // pred_check
          %p3410 = pneg %p347
        $region86: #{tpu_custom_call.1} parent=75 // pred_check_branch
          %3412 = sbr.rel (%p3410) target = $region88
        $region87: #{tpu_custom_call.1} parent=75 // pred_region
          %s3414 = ssub.s32 2048, 2048
          %3415 = vsyncadd %s3406, %s3414
          %s3416 = smul.addr %s30, 16
          %s3417 = smul.addr %s3416, 128
          %s3418 = scalar_lea.hbm %s14, %s3417
          %s3419 = sshll.u32 %s3409, 4
          %s3420 = int_to_ptr.vmem [resolvable:$true] %s3419
          %3425 = dma.vmem_to_hbm [thread:$0]  %s3420, 2048, %s3418, %s3406, 256, 256, 16
        $region88: #{tpu_custom_call.1} parent=75 // pred_fallthru
          _
      $region76: #{tpu_custom_call.1} parent=5 // pred_fallthru
        _
      %p3426 = scmp.le.s32.totalorder 2, %s25
      // Predicated region
      $region89: #{tpu_custom_call.1} parent=5 // pred_check
        %p3427 = pneg %p3426
      $region90: #{tpu_custom_call.1} parent=5 // pred_check_branch
        %3429 = sbr.rel (%p3427) target = $region92
      $region91: #{tpu_custom_call.1} parent=5 // pred_region
        %s3430 = ssub.s32 %s25, 2
        // Predicated region
        $region93: #{tpu_custom_call.1} parent=91 // pred_check
          %p3431 = pneg %p353
        $region94: #{tpu_custom_call.1} parent=91 // pred_check_branch
          %3433 = sbr.rel (%p3431) target = $region96
        $region95: #{tpu_custom_call.1} parent=91 // pred_region
          %s3434 = sand.u32 %s338, 1
          %s3435 = scalar_lea.sflag [#allocation9], %s3434
          %s3436 = sand.u32 %s338, 1
          %s3437 = smul.addr %s3436, 128
          %s3438 = scalar_lea.vmem [#allocation12], %s3437
          %3439 = dma.done %s3435, 2048
        $region96: #{tpu_custom_call.1} parent=91 // pred_fallthru
          _
      $region92: #{tpu_custom_call.1} parent=5 // pred_fallthru
        _
    $region6: #{tpu_custom_call.1} parent=1 // loop_footer
      %s29 = sadd.s32 1, %s25
    $region7: #{tpu_custom_call.1} parent=1 // loop_footer_branch
      %24 = sbr.rel target = $region3
    $region8: #{tpu_custom_call.1} parent=1 // loop_exit
      _
    %3440 = vsyncpa [#allocation8], 1
    %s3441 = scalar_lea.sflag [#allocation8], 1
    %3442 = vsyncpa %s3441, 1
    %3443 = vsyncpa [#allocation11], 1
    %3444 = vsyncpa [#allocation9], 1
    %s3445 = scalar_lea.sflag [#allocation9], 1
    %3446 = vsyncpa %s3445, 1

</llo_original>
